<compile_context>
chip_gen: v7x
topology: tpu7x:2x2x1
jax: 0.10.0
libtpu: 0.0.40
codegen_flags: <defaults>
</compile_context>

<pallas_src>
import functools

import jax
import jax.numpy as jnp
import numpy as np
from jax import lax
from jax.experimental import pallas as pl
from jax.experimental.pallas import tpu as pltpu


# ---------------------------------------------------------------------------
# Fused Pallas kernel: one batch image per grid step.
#
# Spatial layout inside the kernel is "flat padded": pixel (y, x) of the
# zero-padded (H+3, W+2) plane lives at flat row y*(W+2)+x.  Each of the 9
# deconv taps is then a contiguous 2-D slice of that flat plane at a static
# row offset, and the combined tap weight scatters into the 4 parity blocks of
# the stacked output, so everything stays plain 2-D matmuls.
# ---------------------------------------------------------------------------
def _decoder_block_kernel(H, W, mid, nf,
                          x_ref, msk_ref, w1_ref, t1_ref, wc_ref, t2_ref,
                          w3_ref, t3_ref, o_ref, xs_ref):
    WP = W + 2
    HP = H * WP

    # ---- stage 1: 1x1 conv + folded BN + ReLU (halo pixels masked to 0) ----
    z1 = jnp.dot(x_ref[0], w1_ref[...], preferred_element_type=jnp.float32)
    z1 = jnp.maximum(z1 + t1_ref[...], 0.0) * msk_ref[...]
    xs_ref[...] = z1.astype(xs_ref.dtype)            # flat padded x1, in VMEM

    # ---- stage 2: ConvTranspose2d(k=4,s=2,p=1) as 9 shifted matmuls --------
    acc = None
    for k in range(9):
        off = (k // 3) * WP + (k % 3)                # tap (ry, rx) flat offset
        part = jnp.dot(xs_ref[off:off + HP, :], wc_ref[k],
                       preferred_element_type=jnp.float32)
        acc = part if acc is None else acc + part
    a2 = jnp.maximum(acc + t2_ref[...], 0.0)         # (HP, 4*mid), f32

    # ---- stage 3: 1x1 conv (block-diag over parities) + folded BN + ReLU ---
    z3 = jnp.dot(a2.astype(w3_ref.dtype), w3_ref[...],
                 preferred_element_type=jnp.float32)
    o_ref[0] = jnp.maximum(z3 + t3_ref[...], 0.0).astype(o_ref.dtype)


# ---------------------------------------------------------------------------
# Parameter setup (deterministic, matches the torch module's shapes)
# ---------------------------------------------------------------------------
def _bn_init(key, c):
    k1, k2, k3, k4 = jax.random.split(key, 4)
    return dict(
        gamma=jax.random.uniform(k1, (c,), jnp.float32, 0.5, 1.5),
        beta=0.1 * jax.random.normal(k2, (c,), jnp.float32),
        mean=0.1 * jax.random.normal(k3, (c,), jnp.float32),
        var=jax.random.uniform(k4, (c,), jnp.float32, 0.5, 1.5),
    )


def init_params(key, in_channels, n_filters):
    mid = in_channels // 4
    ks = jax.random.split(key, 9)
    return dict(
        conv1_w=0.3 * jax.random.normal(ks[0], (mid, in_channels, 1, 1), jnp.float32),
        conv1_b=0.1 * jax.random.normal(ks[1], (mid,), jnp.float32),
        bn1=_bn_init(ks[2], mid),
        deconv2_w=0.3 * jax.random.normal(ks[3], (mid, mid, 4, 4), jnp.float32),
        deconv2_b=0.1 * jax.random.normal(ks[4], (mid,), jnp.float32),
        bn2=_bn_init(ks[5], mid),
        conv3_w=0.3 * jax.random.normal(ks[6], (n_filters, mid, 1, 1), jnp.float32),
        conv3_b=0.1 * jax.random.normal(ks[7], (n_filters,), jnp.float32),
        bn3=_bn_init(ks[8], n_filters),
    )


def _fold_bn(conv_bias, bn, eps=1e-5):
    s = bn["gamma"] / jnp.sqrt(bn["var"] + eps)
    t = (conv_bias - bn["mean"]) * s + bn["beta"]
    return s, t


# ConvTranspose2d(k=4, s=2, p=1): for output parity a (rows) / b (cols), the
# tap at padded-offset ry / rx uses kernel index ky / kx as below.
_TAP_K = {(0, 0): 3, (0, 1): 1, (1, 1): 2, (1, 2): 0}


# ---------------------------------------------------------------------------
# Forward pass (single fused pallas_call)
# ---------------------------------------------------------------------------
@functools.partial(jax.jit, static_argnames=("compute_dtype",))
def decoder_block_forward(params, x_nchw, compute_dtype=jnp.bfloat16):
    N, Cin, H, W = x_nchw.shape
    mid = params["conv1_w"].shape[0]
    nf = params["conv3_w"].shape[0]
    WP = W + 2
    P = (H + 3) * WP          # flat padded plane (1 top / 2 bottom / 1+1 cols)
    HP = H * WP               # rows of the output plane (last 2 cols = halo junk)

    # ---- fold BN into per-channel scale/shift; fold scale into weights -----
    s1, t1 = _fold_bn(params["conv1_b"], params["bn1"])
    s2, t2 = _fold_bn(params["deconv2_b"], params["bn2"])
    s3, t3 = _fold_bn(params["conv3_b"], params["bn3"])

    w1 = params["conv1_w"].reshape(mid, Cin).T * s1[None, :]        # (Cin, mid)

    wd = params["deconv2_w"]                                        # (mid, mid, 4, 4)

    def tap_block(a, b, ry, rx):
        if (a, ry) in _TAP_K and (b, rx) in _TAP_K:
            return wd[:, :, _TAP_K[(a, ry)], _TAP_K[(b, rx)]]
        return jnp.zeros((mid, mid), wd.dtype)

    # wc[k] : (mid, 4*mid), parity block p = 2a + b along the output columns.
    wc = jnp.stack([
        jnp.concatenate([tap_block(a, b, ry, rx)
                         for a in (0, 1) for b in (0, 1)], axis=1)
        for ry in range(3) for rx in range(3)], axis=0)             # (9, mid, 4*mid)
    wc = wc * jnp.tile(s2, 4)[None, None, :]

    w3 = params["conv3_w"].reshape(nf, mid).T * s3[None, :]         # (mid, nf)
    w3bd = jnp.kron(jnp.eye(4, dtype=w3.dtype), w3)                 # (4*mid, 4*nf)

    t1r = t1.reshape(1, mid).astype(jnp.float32)
    t2r = jnp.tile(t2, 4).reshape(1, 4 * mid).astype(jnp.float32)
    t3r = jnp.tile(t3, 4).reshape(1, 4 * nf).astype(jnp.float32)

    # ---- flat padded NHWC input + validity mask (zeros out the halo) -------
    x_nhwc = jnp.transpose(x_nchw, (0, 2, 3, 1))
    x_pad = jnp.pad(x_nhwc, ((0, 0), (1, 2), (1, 1), (0, 0)))
    x_flat = x_pad.reshape(N, P, Cin).astype(compute_dtype)

    rows = jnp.arange(H + 3)
    cols = jnp.arange(WP)
    valid = (((rows >= 1) & (rows <= H))[:, None]
             & ((cols >= 1) & (cols <= W))[None, :])
    mask = valid.astype(jnp.float32).reshape(P, 1)

    kernel = functools.partial(_decoder_block_kernel, H, W, mid, nf)
    out_flat = pl.pallas_call(
        kernel,
        out_shape=jax.ShapeDtypeStruct((N, HP, 4 * nf), jnp.float32),
        grid_spec=pltpu.PrefetchScalarGridSpec(
            num_scalar_prefetch=0,
            grid=(N,),
            in_specs=[
                pl.BlockSpec((1, P, Cin), lambda n: (n, 0, 0)),       # input image
                pl.BlockSpec((P, 1), lambda n: (0, 0)),               # halo mask
                pl.BlockSpec((Cin, mid), lambda n: (0, 0)),           # w1 (scale folded)
                pl.BlockSpec((1, mid), lambda n: (0, 0)),             # t1
                pl.BlockSpec((9, mid, 4 * mid), lambda n: (0, 0, 0)), # deconv taps
                pl.BlockSpec((1, 4 * mid), lambda n: (0, 0)),         # t2
                pl.BlockSpec((4 * mid, 4 * nf), lambda n: (0, 0)),    # w3 block-diag
                pl.BlockSpec((1, 4 * nf), lambda n: (0, 0)),          # t3
            ],
            out_specs=pl.BlockSpec((1, HP, 4 * nf), lambda n: (n, 0, 0)),
            scratch_shapes=[pltpu.VMEM((P, mid), compute_dtype)],
        ),
        compiler_params=pltpu.CompilerParams(
            dimension_semantics=("parallel",)),
    )(x_flat, mask,
      w1.astype(compute_dtype), t1r,
      wc.astype(compute_dtype), t2r,
      w3bd.astype(compute_dtype), t3r)

    # Parity-stacked output -> NCHW.  Column index is p*nf + c with p = 2a + b;
    # the trailing 2 columns of each pitch row are halo garbage and are sliced
    # off here (this slice fuses into the final transpose copy).
    of = out_flat.reshape(N, H, WP, 2, 2, nf)[:, :, :W]
    out = jnp.transpose(of, (0, 5, 1, 3, 2, 4)).reshape(N, nf, 2 * H, 2 * W)
    # Dropout2d(p=0.0) is the identity.
    return out


# ---------------------------------------------------------------------------
# Pure-JAX reference (for correctness check)
# ---------------------------------------------------------------------------
def reference_forward(params, x_nchw, eps=1e-5):
    def bn_relu(z, bn):
        g = bn["gamma"][None, :, None, None]
        b = bn["beta"][None, :, None, None]
        m = bn["mean"][None, :, None, None]
        v = bn["var"][None, :, None, None]
        return jax.nn.relu((z - m) / jnp.sqrt(v + eps) * g + b)

    dn = ("NCHW", "OIHW", "NCHW")
    z = lax.conv_general_dilated(x_nchw, params["conv1_w"], (1, 1), "VALID",
                                 dimension_numbers=dn)
    z = bn_relu(z + params["conv1_b"][None, :, None, None], params["bn1"])

    wd = jnp.transpose(jnp.flip(params["deconv2_w"], axis=(2, 3)), (1, 0, 2, 3))
    z = lax.conv_general_dilated(z, wd, (1, 1), [(2, 2), (2, 2)],
                                 lhs_dilation=(2, 2), dimension_numbers=dn)
    z = bn_relu(z + params["deconv2_b"][None, :, None, None], params["bn2"])

    z = lax.conv_general_dilated(z, params["conv3_w"], (1, 1), "VALID",
                                 dimension_numbers=dn)
    z = bn_relu(z + params["conv3_b"][None, :, None, None], params["bn3"])
    return z


if __name__ == "__main__":
    key = jax.random.PRNGKey(0)
    kp, kx = jax.random.split(key)

    in_channels, n_filters = 16, 8
    N, H, W = 2, 16, 16

    params = init_params(kp, in_channels, n_filters)
    x = jax.random.normal(kx, (N, in_channels, H, W), jnp.float32)

    ref = jax.block_until_ready(reference_forward(params, x))

    # exact-algorithm check with f32 operands, then the bf16 fast path
    out_f32 = jax.block_until_ready(
        decoder_block_forward(params, x, compute_dtype=jnp.float32))
    np.testing.assert_allclose(np.asarray(out_f32), np.asarray(ref),
                               rtol=5e-3, atol=5e-3)

    out = jax.block_until_ready(decoder_block_forward(params, x))
    assert out.shape == (N, n_filters, 2 * H, 2 * W), out.shape
    np.testing.assert_allclose(np.asarray(out), np.asarray(ref),
                               rtol=5e-2, atol=5e-2)
    print("KERNEL_OK")
</pallas_src>

<mosaic_0001>
module attributes {stable_mosaic.version = 11 : i64} {
  func.func @_decoder_block_kernel(%arg0: i32, %arg1: memref<1x342x16xf32, #tpu.memory_space<vmem>>, %arg2: memref<342x1xf32, #tpu.memory_space<vmem>>, %arg3: memref<16x4xf32, #tpu.memory_space<vmem>>, %arg4: memref<1x4xf32, #tpu.memory_space<vmem>>, %arg5: memref<9x4x16xf32, #tpu.memory_space<vmem>>, %arg6: memref<1x16xf32, #tpu.memory_space<vmem>>, %arg7: memref<16x32xf32, #tpu.memory_space<vmem>>, %arg8: memref<1x32xf32, #tpu.memory_space<vmem>>, %arg9: memref<1x288x32xf32, #tpu.memory_space<vmem>>, %arg10: memref<342x4xf32, #tpu.memory_space<vmem>>) attributes {dimension_semantics = [#tpu.dimension_semantics<parallel>], iteration_bounds = array<i64: 2>, scalar_prefetch = 0 : i64, scratch_operands = 1 : i64, tpu.core_type = #tpu.core_type<tc>, window_params = [{transform_indices = @transform_0, window_bounds = array<i64: 1, 342, 16>}, {pipeline_mode = #tpu.pipeline_mode<synchronous>, transform_indices = @transform_1, window_bounds = array<i64: 342, 1>}, {pipeline_mode = #tpu.pipeline_mode<synchronous>, transform_indices = @transform_2, window_bounds = array<i64: 16, 4>}, {pipeline_mode = #tpu.pipeline_mode<synchronous>, transform_indices = @transform_3, window_bounds = array<i64: 1, 4>}, {pipeline_mode = #tpu.pipeline_mode<synchronous>, transform_indices = @transform_4, window_bounds = array<i64: 9, 4, 16>}, {pipeline_mode = #tpu.pipeline_mode<synchronous>, transform_indices = @transform_5, window_bounds = array<i64: 1, 16>}, {pipeline_mode = #tpu.pipeline_mode<synchronous>, transform_indices = @transform_6, window_bounds = array<i64: 16, 32>}, {pipeline_mode = #tpu.pipeline_mode<synchronous>, transform_indices = @transform_7, window_bounds = array<i64: 1, 32>}, {transform_indices = @transform_8, window_bounds = array<i64: 1, 288, 32>}]} {
    %c0 = arith.constant 0 : index
    %c0_0 = arith.constant 0 : index
    %c0_1 = arith.constant 0 : index
    %0 = vector.load %arg1[%c0, %c0_0, %c0_1] : memref<1x342x16xf32, #tpu.memory_space<vmem>>, vector<1x342x16xf32>
    %1 = vector.shape_cast %0 : vector<1x342x16xf32> to vector<342x16xf32>
    %c0_2 = arith.constant 0 : index
    %c0_3 = arith.constant 0 : index
    %2 = vector.load %arg3[%c0_2, %c0_3] : memref<16x4xf32, #tpu.memory_space<vmem>>, vector<16x4xf32>
    %cst = arith.constant dense<0.000000e+00> : vector<342x4xf32>
    %3 = tpu.matmul %1, %2, %cst {dimension_numbers = #tpu.dot_dimension_numbers<[1], [0], [0], [1], [0, 0, 1, 1], [], []>} : vector<342x16xf32>, vector<16x4xf32>, vector<342x4xf32> -> vector<342x4xf32>
    %c0_4 = arith.constant 0 : index
    %c0_5 = arith.constant 0 : index
    %4 = vector.load %arg4[%c0_4, %c0_5] : memref<1x4xf32, #tpu.memory_space<vmem>>, vector<1x4xf32>
    %5 = vector.broadcast %4 : vector<1x4xf32> to vector<342x4xf32>
    %6 = arith.addf %3, %5 : vector<342x4xf32>
    %cst_6 = arith.constant 0.000000e+00 : f32
    %7 = vector.broadcast %cst_6 : f32 to vector<342x4xf32>
    %8 = arith.maximumf %6, %7 : vector<342x4xf32>
    %c0_7 = arith.constant 0 : index
    %c0_8 = arith.constant 0 : index
    %9 = vector.load %arg2[%c0_7, %c0_8] : memref<342x1xf32, #tpu.memory_space<vmem>>, vector<342x1xf32>
    %10 = vector.broadcast %9 : vector<342x1xf32> to vector<342x4xf32>
    %11 = arith.mulf %8, %10 : vector<342x4xf32>
    %c0_9 = arith.constant 0 : index
    %c0_10 = arith.constant 0 : index
    %12 = vector.load %arg10[%c0_9, %c0_10] : memref<342x4xf32, #tpu.memory_space<vmem>>, vector<342x4xf32>
    tpu.vector_store %arg10[%c0_9, %c0_10], %11 {strides = array<i32>} : memref<342x4xf32, #tpu.memory_space<vmem>>, vector<342x4xf32>,
    %c0_11 = arith.constant 0 : index
    %c0_12 = arith.constant 0 : index
    %13 = vector.load %arg10[%c0_11, %c0_12] : memref<342x4xf32, #tpu.memory_space<vmem>>, vector<288x4xf32>
    %c0_13 = arith.constant 0 : index
    %c0_14 = arith.constant 0 : index
    %c0_15 = arith.constant 0 : index
    %14 = vector.load %arg5[%c0_13, %c0_14, %c0_15] : memref<9x4x16xf32, #tpu.memory_space<vmem>>, vector<1x4x16xf32>
    %15 = vector.shape_cast %14 : vector<1x4x16xf32> to vector<4x16xf32>
    %cst_16 = arith.constant dense<0.000000e+00> : vector<288x16xf32>
    %16 = tpu.matmul %13, %15, %cst_16 {dimension_numbers = #tpu.dot_dimension_numbers<[1], [0], [0], [1], [0, 0, 1, 1], [], []>} : vector<288x4xf32>, vector<4x16xf32>, vector<288x16xf32> -> vector<288x16xf32>
    %c1 = arith.constant 1 : index
    %c0_17 = arith.constant 0 : index
    %17 = vector.load %arg10[%c1, %c0_17] : memref<342x4xf32, #tpu.memory_space<vmem>>, vector<288x4xf32>
    %c1_18 = arith.constant 1 : index
    %c0_19 = arith.constant 0 : index
    %c0_20 = arith.constant 0 : index
    %18 = vector.load %arg5[%c1_18, %c0_19, %c0_20] : memref<9x4x16xf32, #tpu.memory_space<vmem>>, vector<1x4x16xf32>
    %19 = vector.shape_cast %18 : vector<1x4x16xf32> to vector<4x16xf32>
    %cst_21 = arith.constant dense<0.000000e+00> : vector<288x16xf32>
    %20 = tpu.matmul %17, %19, %cst_21 {dimension_numbers = #tpu.dot_dimension_numbers<[1], [0], [0], [1], [0, 0, 1, 1], [], []>} : vector<288x4xf32>, vector<4x16xf32>, vector<288x16xf32> -> vector<288x16xf32>
    %21 = arith.addf %16, %20 : vector<288x16xf32>
    %c2 = arith.constant 2 : index
    %c0_22 = arith.constant 0 : index
    %22 = vector.load %arg10[%c2, %c0_22] : memref<342x4xf32, #tpu.memory_space<vmem>>, vector<288x4xf32>
    %c2_23 = arith.constant 2 : index
    %c0_24 = arith.constant 0 : index
    %c0_25 = arith.constant 0 : index
    %23 = vector.load %arg5[%c2_23, %c0_24, %c0_25] : memref<9x4x16xf32, #tpu.memory_space<vmem>>, vector<1x4x16xf32>
    %24 = vector.shape_cast %23 : vector<1x4x16xf32> to vector<4x16xf32>
    %cst_26 = arith.constant dense<0.000000e+00> : vector<288x16xf32>
    %25 = tpu.matmul %22, %24, %cst_26 {dimension_numbers = #tpu.dot_dimension_numbers<[1], [0], [0], [1], [0, 0, 1, 1], [], []>} : vector<288x4xf32>, vector<4x16xf32>, vector<288x16xf32> -> vector<288x16xf32>
    %26 = arith.addf %21, %25 : vector<288x16xf32>
    %c18 = arith.constant 18 : index
    %c0_27 = arith.constant 0 : index
    %27 = vector.load %arg10[%c18, %c0_27] : memref<342x4xf32, #tpu.memory_space<vmem>>, vector<288x4xf32>
    %c3 = arith.constant 3 : index
    %c0_28 = arith.constant 0 : index
    %c0_29 = arith.constant 0 : index
    %28 = vector.load %arg5[%c3, %c0_28, %c0_29] : memref<9x4x16xf32, #tpu.memory_space<vmem>>, vector<1x4x16xf32>
    %29 = vector.shape_cast %28 : vector<1x4x16xf32> to vector<4x16xf32>
    %cst_30 = arith.constant dense<0.000000e+00> : vector<288x16xf32>
    %30 = tpu.matmul %27, %29, %cst_30 {dimension_numbers = #tpu.dot_dimension_numbers<[1], [0], [0], [1], [0, 0, 1, 1], [], []>} : vector<288x4xf32>, vector<4x16xf32>, vector<288x16xf32> -> vector<288x16xf32>
    %31 = arith.addf %26, %30 : vector<288x16xf32>
    %c19 = arith.constant 19 : index
    %c0_31 = arith.constant 0 : index
    %32 = vector.load %arg10[%c19, %c0_31] : memref<342x4xf32, #tpu.memory_space<vmem>>, vector<288x4xf32>
    %c4 = arith.constant 4 : index
    %c0_32 = arith.constant 0 : index
    %c0_33 = arith.constant 0 : index
    %33 = vector.load %arg5[%c4, %c0_32, %c0_33] : memref<9x4x16xf32, #tpu.memory_space<vmem>>, vector<1x4x16xf32>
    %34 = vector.shape_cast %33 : vector<1x4x16xf32> to vector<4x16xf32>
    %cst_34 = arith.constant dense<0.000000e+00> : vector<288x16xf32>
    %35 = tpu.matmul %32, %34, %cst_34 {dimension_numbers = #tpu.dot_dimension_numbers<[1], [0], [0], [1], [0, 0, 1, 1], [], []>} : vector<288x4xf32>, vector<4x16xf32>, vector<288x16xf32> -> vector<288x16xf32>
    %36 = arith.addf %31, %35 : vector<288x16xf32>
    %c20 = arith.constant 20 : index
    %c0_35 = arith.constant 0 : index
    %37 = vector.load %arg10[%c20, %c0_35] : memref<342x4xf32, #tpu.memory_space<vmem>>, vector<288x4xf32>
    %c5 = arith.constant 5 : index
    %c0_36 = arith.constant 0 : index
    %c0_37 = arith.constant 0 : index
    %38 = vector.load %arg5[%c5, %c0_36, %c0_37] : memref<9x4x16xf32, #tpu.memory_space<vmem>>, vector<1x4x16xf32>
    %39 = vector.shape_cast %38 : vector<1x4x16xf32> to vector<4x16xf32>
    %cst_38 = arith.constant dense<0.000000e+00> : vector<288x16xf32>
    %40 = tpu.matmul %37, %39, %cst_38 {dimension_numbers = #tpu.dot_dimension_numbers<[1], [0], [0], [1], [0, 0, 1, 1], [], []>} : vector<288x4xf32>, vector<4x16xf32>, vector<288x16xf32> -> vector<288x16xf32>
    %41 = arith.addf %36, %40 : vector<288x16xf32>
    %c36 = arith.constant 36 : index
    %c0_39 = arith.constant 0 : index
    %42 = vector.load %arg10[%c36, %c0_39] : memref<342x4xf32, #tpu.memory_space<vmem>>, vector<288x4xf32>
    %c6 = arith.constant 6 : index
    %c0_40 = arith.constant 0 : index
    %c0_41 = arith.constant 0 : index
    %43 = vector.load %arg5[%c6, %c0_40, %c0_41] : memref<9x4x16xf32, #tpu.memory_space<vmem>>, vector<1x4x16xf32>
    %44 = vector.shape_cast %43 : vector<1x4x16xf32> to vector<4x16xf32>
    %cst_42 = arith.constant dense<0.000000e+00> : vector<288x16xf32>
    %45 = tpu.matmul %42, %44, %cst_42 {dimension_numbers = #tpu.dot_dimension_numbers<[1], [0], [0], [1], [0, 0, 1, 1], [], []>} : vector<288x4xf32>, vector<4x16xf32>, vector<288x16xf32> -> vector<288x16xf32>
    %46 = arith.addf %41, %45 : vector<288x16xf32>
    %c37 = arith.constant 37 : index
    %c0_43 = arith.constant 0 : index
    %47 = vector.load %arg10[%c37, %c0_43] : memref<342x4xf32, #tpu.memory_space<vmem>>, vector<288x4xf32>
    %c7 = arith.constant 7 : index
    %c0_44 = arith.constant 0 : index
    %c0_45 = arith.constant 0 : index
    %48 = vector.load %arg5[%c7, %c0_44, %c0_45] : memref<9x4x16xf32, #tpu.memory_space<vmem>>, vector<1x4x16xf32>
    %49 = vector.shape_cast %48 : vector<1x4x16xf32> to vector<4x16xf32>
    %cst_46 = arith.constant dense<0.000000e+00> : vector<288x16xf32>
    %50 = tpu.matmul %47, %49, %cst_46 {dimension_numbers = #tpu.dot_dimension_numbers<[1], [0], [0], [1], [0, 0, 1, 1], [], []>} : vector<288x4xf32>, vector<4x16xf32>, vector<288x16xf32> -> vector<288x16xf32>
    %51 = arith.addf %46, %50 : vector<288x16xf32>
    %c38 = arith.constant 38 : index
    %c0_47 = arith.constant 0 : index
    %52 = vector.load %arg10[%c38, %c0_47] : memref<342x4xf32, #tpu.memory_space<vmem>>, vector<288x4xf32>
    %c8 = arith.constant 8 : index
    %c0_48 = arith.constant 0 : index
    %c0_49 = arith.constant 0 : index
    %53 = vector.load %arg5[%c8, %c0_48, %c0_49] : memref<9x4x16xf32, #tpu.memory_space<vmem>>, vector<1x4x16xf32>
    %54 = vector.shape_cast %53 : vector<1x4x16xf32> to vector<4x16xf32>
    %cst_50 = arith.constant dense<0.000000e+00> : vector<288x16xf32>
    %55 = tpu.matmul %52, %54, %cst_50 {dimension_numbers = #tpu.dot_dimension_numbers<[1], [0], [0], [1], [0, 0, 1, 1], [], []>} : vector<288x4xf32>, vector<4x16xf32>, vector<288x16xf32> -> vector<288x16xf32>
    %56 = arith.addf %51, %55 : vector<288x16xf32>
    %c0_51 = arith.constant 0 : index
    %c0_52 = arith.constant 0 : index
    %57 = vector.load %arg6[%c0_51, %c0_52] : memref<1x16xf32, #tpu.memory_space<vmem>>, vector<1x16xf32>
    %58 = vector.broadcast %57 : vector<1x16xf32> to vector<288x16xf32>
    %59 = arith.addf %56, %58 : vector<288x16xf32>
    %cst_53 = arith.constant 0.000000e+00 : f32
    %60 = vector.broadcast %cst_53 : f32 to vector<288x16xf32>
    %61 = arith.maximumf %59, %60 : vector<288x16xf32>
    %c0_54 = arith.constant 0 : index
    %c0_55 = arith.constant 0 : index
    %62 = vector.load %arg7[%c0_54, %c0_55] : memref<16x32xf32, #tpu.memory_space<vmem>>, vector<16x32xf32>
    %cst_56 = arith.constant dense<0.000000e+00> : vector<288x32xf32>
    %63 = tpu.matmul %61, %62, %cst_56 {dimension_numbers = #tpu.dot_dimension_numbers<[1], [0], [0], [1], [0, 0, 1, 1], [], []>} : vector<288x16xf32>, vector<16x32xf32>, vector<288x32xf32> -> vector<288x32xf32>
    %c0_57 = arith.constant 0 : index
    %c0_58 = arith.constant 0 : index
    %64 = vector.load %arg8[%c0_57, %c0_58] : memref<1x32xf32, #tpu.memory_space<vmem>>, vector<1x32xf32>
    %65 = vector.broadcast %64 : vector<1x32xf32> to vector<288x32xf32>
    %66 = arith.addf %63, %65 : vector<288x32xf32>
    %cst_59 = arith.constant 0.000000e+00 : f32
    %67 = vector.broadcast %cst_59 : f32 to vector<288x32xf32>
    %68 = arith.maximumf %66, %67 : vector<288x32xf32>
    %c0_60 = arith.constant 0 : index
    %c0_61 = arith.constant 0 : index
    %c0_62 = arith.constant 0 : index
    %69 = vector.load %arg9[%c0_60, %c0_61, %c0_62] : memref<1x288x32xf32, #tpu.memory_space<vmem>>, vector<1x288x32xf32>
    %70 = vector.shape_cast %69 : vector<1x288x32xf32> to vector<288x32xf32>
    %71 = vector.shape_cast %68 : vector<288x32xf32> to vector<1x288x32xf32>
    tpu.vector_store %arg9[%c0_60, %c0_61, %c0_62], %71 {strides = array<i32>} : memref<1x288x32xf32, #tpu.memory_space<vmem>>, vector<1x288x32xf32>,
    return
  }
  func.func @transform_0(%arg0: i32) -> (i32, i32, i32) {
    %c0_i32 = arith.constant 0 : i32
    %c0_i32_0 = arith.constant 0 : i32
    %c0_i32_1 = arith.constant 0 : i32
    return %arg0, %c0_i32, %c0_i32_0 : i32, i32, i32
  }
  func.func @transform_1(%arg0: i32) -> (i32, i32) {
    %c0_i32 = arith.constant 0 : i32
    %c0_i32_0 = arith.constant 0 : i32
    %c0_i32_1 = arith.constant 0 : i32
    return %c0_i32, %c0_i32_0 : i32, i32
  }
  func.func @transform_2(%arg0: i32) -> (i32, i32) {
    %c0_i32 = arith.constant 0 : i32
    %c0_i32_0 = arith.constant 0 : i32
    %c0_i32_1 = arith.constant 0 : i32
    return %c0_i32, %c0_i32_0 : i32, i32
  }
  func.func @transform_3(%arg0: i32) -> (i32, i32) {
    %c0_i32 = arith.constant 0 : i32
    %c0_i32_0 = arith.constant 0 : i32
    %c0_i32_1 = arith.constant 0 : i32
    return %c0_i32, %c0_i32_0 : i32, i32
  }
  func.func @transform_4(%arg0: i32) -> (i32, i32, i32) {
    %c0_i32 = arith.constant 0 : i32
    %c0_i32_0 = arith.constant 0 : i32
    %c0_i32_1 = arith.constant 0 : i32
    %c0_i32_2 = arith.constant 0 : i32
    return %c0_i32, %c0_i32_0, %c0_i32_1 : i32, i32, i32
  }
  func.func @transform_5(%arg0: i32) -> (i32, i32) {
    %c0_i32 = arith.constant 0 : i32
    %c0_i32_0 = arith.constant 0 : i32
    %c0_i32_1 = arith.constant 0 : i32
    return %c0_i32, %c0_i32_0 : i32, i32
  }
  func.func @transform_6(%arg0: i32) -> (i32, i32) {
    %c0_i32 = arith.constant 0 : i32
    %c0_i32_0 = arith.constant 0 : i32
    %c0_i32_1 = arith.constant 0 : i32
    return %c0_i32, %c0_i32_0 : i32, i32
  }
  func.func @transform_7(%arg0: i32) -> (i32, i32) {
    %c0_i32 = arith.constant 0 : i32
    %c0_i32_0 = arith.constant 0 : i32
    %c0_i32_1 = arith.constant 0 : i32
    return %c0_i32, %c0_i32_0 : i32, i32
  }
  func.func @transform_8(%arg0: i32) -> (i32, i32, i32) {
    %c0_i32 = arith.constant 0 : i32
    %c0_i32_0 = arith.constant 0 : i32
    %c0_i32_1 = arith.constant 0 : i32
    return %arg0, %c0_i32, %c0_i32_0 : i32, i32, i32
  }
}

</mosaic_0001>

<llo_original>
// kernel: tile.23
$region0: #{tile.23}
  #allocation0 [shape = 's32[1]{0}', space=sflag, size = 0x4, scoped, tag = 'scoped memory for tile.23']
  %s0 = inlined_call_operand.vmem [shape: f32[4], index: 0, kind: input, shape index: {}]
  %s1 = inlined_call_operand.vmem [shape: f32[4,4], index: 1, kind: output, shape index: {}]
  // Predicated region
  $region2: #{tile.23} parent=0 // pred_check
    _
  $region3: #{tile.23} parent=0 // pred_check_branch
    %3 = sbr.rel (0) target = $region5
  $region4: #{tile.23} parent=0 // pred_region
    _
  $region5: #{tile.23} parent=0 // pred_fallthru
    _
  %v4 = vld [vmem:[%s0] ss:$0 sm:$0xff]
  %5 = vst [vmem:[%s1] sm:$0xf] %v4

// kernel: tile.29
$region0: #{tile.29}
  %s0 = inlined_call_operand.vmem [shape: f32[4,8], index: 0, kind: input, shape index: {}]
  %s1 = inlined_call_operand.vmem [shape: f32[1,32], index: 1, kind: output, shape index: {}]
  $region1: #{tile.29} parent=0
    #allocation0 [shape = 'u8[4096]{0}', space=vmem, size = 0x1000, scoped, tag = 'scoped mem for output reshape']
    #allocation1 [shape = 'u8[4096]{0}', space=vmem, size = 0x1000, scoped, tag = 'scoped mem for input reshape']
    %s3 = sshllo.u32 0, 4
    %v4 = vld [vmem:[%s0] sm:%s3]
    %5 = vst [vmem:[#allocation1] sm:%s3] %v4
    %v6 = vld [vmem:[#allocation1] sm:$0x1]
    %vm7 = vcmask 64512
    %8 = vst.msk [vmem:[#allocation0] sm:$0x1] %vm7, %v6
    %s9 = scalar_lea.vmem [#allocation1], 3
    %v10 = vld [vmem:[%s9] sm:$0x1]
    %11 = vrot.lane.b32.xlu0 %v10, 24
    %v12 = vpop.permute.xlu0 %11
    %vm13 = vcmask 261312
    %14 = vst.msk [vmem:[#allocation0] sm:$0x1] %vm13, %v12
    %s15 = scalar_lea.vmem [#allocation1], 2
    %v16 = vld [vmem:[%s15] sm:$0x1]
    %17 = vrot.lane.b32.xlu0 %v16, 16
    %v18 = vpop.permute.xlu0 %17
    %vm19 = vcmask 195712
    %20 = vst.msk [vmem:[#allocation0] sm:$0x1] %vm19, %v18
    %s21 = scalar_lea.vmem [#allocation1], 1
    %v22 = vld [vmem:[%s21] sm:$0x1]
    %23 = vrot.lane.b32.xlu0 %v22, 8
    %v24 = vpop.permute.xlu0 %23
    %vm25 = vcmask 130112
    %26 = vst.msk [vmem:[#allocation0] sm:$0x1] %vm25, %v24
    %s28 = sshllo.u32 0, 1
    %v30 = vld [vmem:[#allocation0] sm:%s28]
    %s31 = sshllo.u32 0, 1
    %32 = vst [vmem:[%s1] sm:%s31] %v30

// kernel: tile.24
$region0: #{tile.24}
  %s0 = inlined_call_operand.vmem [shape: f32[4,4], index: 0, kind: input, shape index: {}]
  %s1 = inlined_call_operand.vmem [shape: f32[1,16], index: 1, kind: output, shape index: {}]
  $region1: #{tile.24} parent=0
    #allocation0 [shape = 'u8[4096]{0}', space=vmem, size = 0x1000, scoped, tag = 'scoped mem for output reshape']
    #allocation1 [shape = 'u8[4096]{0}', space=vmem, size = 0x1000, scoped, tag = 'scoped mem for input reshape']
    %s3 = sshllo.u32 0, 4
    %v4 = vld [vmem:[%s0] sm:%s3]
    %5 = vst [vmem:[#allocation1] sm:%s3] %v4
    %v6 = vld [vmem:[#allocation1] sm:$0x1]
    %vm7 = vcmask 31744
    %8 = vst.msk [vmem:[#allocation0] sm:$0x1] %vm7, %v6
    %s9 = scalar_lea.vmem [#allocation1], 3
    %v10 = vld [vmem:[%s9] sm:$0x1]
    %11 = vrot.lane.b32.xlu0 %v10, 12
    %v12 = vpop.permute.xlu0 %11
    %vm13 = vcmask 130144
    %14 = vst.msk [vmem:[#allocation0] sm:$0x1] %vm13, %v12
    %s15 = scalar_lea.vmem [#allocation1], 2
    %v16 = vld [vmem:[%s15] sm:$0x1]
    %17 = vrot.lane.b32.xlu0 %v16, 8
    %v18 = vpop.permute.xlu0 %17
    %vm19 = vcmask 97344
    %20 = vst.msk [vmem:[#allocation0] sm:$0x1] %vm19, %v18
    %s21 = scalar_lea.vmem [#allocation1], 1
    %v22 = vld [vmem:[%s21] sm:$0x1]
    %23 = vrot.lane.b32.xlu0 %v22, 4
    %v24 = vpop.permute.xlu0 %23
    %vm25 = vcmask 64544
    %26 = vst.msk [vmem:[#allocation0] sm:$0x1] %vm25, %v24
    %s28 = sshllo.u32 0, 1
    %v30 = vld [vmem:[#allocation0] sm:%s28]
    %s31 = sshllo.u32 0, 1
    %32 = vst [vmem:[%s1] sm:%s31] %v30

// kernel: tile.28
$region0: #{tile.28}
  #allocation0 [shape = 's32[1]{0}', space=sflag, size = 0x4, scoped, tag = 'scoped memory for tile.28']
  %s0 = inlined_call_operand.vmem [shape: f32[8], index: 0, kind: input, shape index: {}]
  %s1 = inlined_call_operand.vmem [shape: f32[4,8], index: 1, kind: output, shape index: {}]
  // Predicated region
  $region2: #{tile.28} parent=0 // pred_check
    _
  $region3: #{tile.28} parent=0 // pred_check_branch
    %3 = sbr.rel (0) target = $region5
  $region4: #{tile.28} parent=0 // pred_region
    _
  $region5: #{tile.28} parent=0 // pred_fallthru
    _
  %v4 = vld [vmem:[%s0] ss:$0 sm:$0xff]
  %5 = vst [vmem:[%s1] sm:$0xf] %v4

// kernel: mul.37
$region0: #{mul.37}
  %s0 = inlined_call_operand.vmem [shape: f32[4,4], index: 0, kind: input, shape index: {}]
  %s1 = inlined_call_operand.vmem [shape: f32[16], index: 1, kind: output, shape index: {}]
  $region1: #{mul.37} parent=0
    #allocation0 [shape = 'u8[4096]{0}', space=vmem, size = 0x1000, scoped, tag = 'scoped mem for output reshape']
    #allocation1 [shape = 'u8[4096]{0}', space=vmem, size = 0x1000, scoped, tag = 'scoped mem for input reshape']
    %s3 = sshllo.u32 0, 4
    %v4 = vld [vmem:[%s0] sm:%s3]
    %5 = vst [vmem:[#allocation1] sm:%s3] %v4
    %v6 = vld [vmem:[#allocation1] sm:$0x1]
    %vm7 = vcmask 31744
    %8 = vst.msk [vmem:[#allocation0] sm:$0x1] %vm7, %v6
    %s9 = scalar_lea.vmem [#allocation1], 3
    %v10 = vld [vmem:[%s9] sm:$0x1]
    %11 = vrot.lane.b32.xlu0 %v10, 12
    %v12 = vpop.permute.xlu0 %11
    %vm13 = vcmask 130144
    %14 = vst.msk [vmem:[#allocation0] sm:$0x1] %vm13, %v12
    %s15 = scalar_lea.vmem [#allocation1], 2
    %v16 = vld [vmem:[%s15] sm:$0x1]
    %17 = vrot.lane.b32.xlu0 %v16, 8
    %v18 = vpop.permute.xlu0 %17
    %vm19 = vcmask 97344
    %20 = vst.msk [vmem:[#allocation0] sm:$0x1] %vm19, %v18
    %s21 = scalar_lea.vmem [#allocation1], 1
    %v22 = vld [vmem:[%s21] sm:$0x1]
    %23 = vrot.lane.b32.xlu0 %v22, 4
    %v24 = vpop.permute.xlu0 %23
    %vm25 = vcmask 64544
    %26 = vst.msk [vmem:[#allocation0] sm:$0x1] %vm25, %v24
    %s28 = sshllo.u32 0, 1
    %v30 = vld [vmem:[#allocation0] sm:%s28]
    %s31 = sshllo.u32 0, 1
    %32 = vst [vmem:[%s1] sm:%s31] %v30

// kernel: decoder_block_forward.1
$region0: #{decoder_block_forward.1}
  #allocation0 [shape = 'u32[]', space=smem, size = 0x4, offset = 0x4, fixed_abs, tag = 'smem constant byte address 0x4 - core index']
  #allocation1 [shape = 'u32[144,128]{1,0:T(1,128)}', space=vmem, size = 0x12000, scoped, tag = 'internal scratch']
  #allocation2 [shape = 'f32[342,4]{1,0:T(8,128)}', space=vmem, size = 0x2b000, scoped, tag = 'scratch operand']
  %s0 = inlined_call_operand.vmem [shape: f32[2,342,16], index: 0, kind: input, shape index: {}]
  %s1 = inlined_call_operand.vmem [shape: f32[342,1], index: 1, kind: input, shape index: {}]
  %s2 = inlined_call_operand.vmem [shape: f32[16,4], index: 2, kind: input, shape index: {}]
  %s3 = inlined_call_operand.vmem [shape: f32[1,4], index: 3, kind: input, shape index: {}]
  %s4 = inlined_call_operand.vmem [shape: f32[9,4,16], index: 4, kind: input, shape index: {}]
  %s5 = inlined_call_operand.vmem [shape: f32[1,16], index: 5, kind: input, shape index: {}]
  %s6 = inlined_call_operand.vmem [shape: f32[16,32], index: 6, kind: input, shape index: {}]
  %s7 = inlined_call_operand.vmem [shape: f32[1,32], index: 7, kind: input, shape index: {}]
  %s8 = inlined_call_operand.vmem [shape: f32[2,288,32], index: 8, kind: output, shape index: {}]
  %s9 = sld [smem:[#allocation0]]
  $region65: #{decoder_block_forward.1} parent=0
    _
  %s11 = ssub.s32 1, %s9
  %s12 = scalar_select 0, %s11, %s9
  loop: start=0, step=1, limit=4
  $region2: #{decoder_block_forward.1} parent=0 // loop_pre_header
    _
  $region3: #{decoder_block_forward.1} parent=0 // loop_header
    %s14 = sphi 0, %s18
    %p15 = scmp.ge.s32.totalorder %s14, 4
    %s24 = sphi 0, %s26
    %s27 = sphi 0, %s24
    %s28 = sphi 0, %s27
    %s44 = sphi 0, %s28
    %s48 = sphi 0, %s48
    %s50 = sphi 0, %s48
    %s51 = sphi 0, %s50
    %s65 = sphi 0, %s51
    %s69 = sphi 0, %s69
    %s71 = sphi 0, %s69
    %s72 = sphi 0, %s71
    %s86 = sphi 0, %s72
    %s90 = sphi 0, %s90
    %s92 = sphi 0, %s90
    %s93 = sphi 0, %s92
    %s107 = sphi 0, %s93
    %s111 = sphi 0, %s111
    %s113 = sphi 0, %s111
    %s114 = sphi 0, %s113
    %s128 = sphi 0, %s114
    %s132 = sphi 0, %s132
    %s134 = sphi 0, %s132
    %s135 = sphi 0, %s134
    %s149 = sphi 0, %s135
    %s153 = sphi 0, %s153
    %s155 = sphi 0, %s153
    %s156 = sphi 0, %s155
    %s170 = sphi 0, %s156
    %s174 = sphi 0, %s174
    %s176 = sphi 0, %s174
    %s177 = sphi 0, %s176
    %s191 = sphi 0, %s177
    %s197 = sphi 0, %s199
    %s200 = sphi 0, %s197
    %s201 = sphi 0, %s200
    %s217 = sphi 0, %s201
  $region4: #{decoder_block_forward.1} parent=0 // loop_header_branch
    %17 = sbr.rel (%p15) target = $region8
  $region5: #{decoder_block_forward.1} parent=0 // loop_body
    %s19 = ssub.s32 %s14, 1
    %s20 = ssub.s32 %s14, 2
    %s21 = sadd.s32 %s14, 1
    %s22 = ssub.s32 %s14, %s21
    %p23 = scmp.eq.s32.totalorder %s22, 0
    %s25 = sadd.s32 %s24, 1
    %s26 = scalar_select %p23, %s24, %s25
    %p29 = pneg %p23
    %p30 = scmp.eq.s32.totalorder %s14, 1
    %p31 = por %p29, %p30
    %p32 = scmp.ne.s32.totalorder %s24, %s27
    %p33 = scmp.eq.s32.totalorder %s14, 0
    %p34 = por %p32, %p33
    %p35 = scmp.ne.s32.totalorder %s24, %s27
    %p36 = scmp.eq.s32.totalorder %s19, 1
    %p37 = por %p35, %p36
    %p38 = scmp.ne.s32.totalorder %s27, %s28
    %p39 = scmp.eq.s32.totalorder %s19, 0
    %p40 = por %p38, %p39
    %p41 = scmp.ne.s32.totalorder %s27, %s28
    %p42 = scmp.eq.s32.totalorder %s20, 1
    %p43 = por %p41, %p42
    %p45 = scmp.ne.s32.totalorder %s28, %s44
    %p46 = scmp.eq.s32.totalorder %s20, 0
    %p47 = por %p45, %p46
    %s49 = sadd.s32 %s48, 1
    %p52 = scmp.eq.s32.totalorder %s14, 1
    %p53 = scmp.ne.s32.totalorder %s48, %s50
    %p54 = scmp.eq.s32.totalorder %s14, 0
    %p55 = por %p53, %p54
    %p56 = scmp.ne.s32.totalorder %s48, %s50
    %p57 = scmp.eq.s32.totalorder %s19, 1
    %p58 = por %p56, %p57
    %p59 = scmp.ne.s32.totalorder %s50, %s51
    %p60 = scmp.eq.s32.totalorder %s19, 0
    %p61 = por %p59, %p60
    %p62 = scmp.ne.s32.totalorder %s50, %s51
    %p63 = scmp.eq.s32.totalorder %s20, 1
    %p64 = por %p62, %p63
    %p66 = scmp.ne.s32.totalorder %s51, %s65
    %p67 = scmp.eq.s32.totalorder %s20, 0
    %p68 = por %p66, %p67
    %s70 = sadd.s32 %s69, 1
    %p73 = scmp.eq.s32.totalorder %s14, 1
    %p74 = scmp.ne.s32.totalorder %s69, %s71
    %p75 = scmp.eq.s32.totalorder %s14, 0
    %p76 = por %p74, %p75
    %p77 = scmp.ne.s32.totalorder %s69, %s71
    %p78 = scmp.eq.s32.totalorder %s19, 1
    %p79 = por %p77, %p78
    %p80 = scmp.ne.s32.totalorder %s71, %s72
    %p81 = scmp.eq.s32.totalorder %s19, 0
    %p82 = por %p80, %p81
    %p83 = scmp.ne.s32.totalorder %s71, %s72
    %p84 = scmp.eq.s32.totalorder %s20, 1
    %p85 = por %p83, %p84
    %p87 = scmp.ne.s32.totalorder %s72, %s86
    %p88 = scmp.eq.s32.totalorder %s20, 0
    %p89 = por %p87, %p88
    %s91 = sadd.s32 %s90, 1
    %p94 = scmp.eq.s32.totalorder %s14, 1
    %p95 = scmp.ne.s32.totalorder %s90, %s92
    %p96 = scmp.eq.s32.totalorder %s14, 0
    %p97 = por %p95, %p96
    %p98 = scmp.ne.s32.totalorder %s90, %s92
    %p99 = scmp.eq.s32.totalorder %s19, 1
    %p100 = por %p98, %p99
    %p101 = scmp.ne.s32.totalorder %s92, %s93
    %p102 = scmp.eq.s32.totalorder %s19, 0
    %p103 = por %p101, %p102
    %p104 = scmp.ne.s32.totalorder %s92, %s93
    %p105 = scmp.eq.s32.totalorder %s20, 1
    %p106 = por %p104, %p105
    %p108 = scmp.ne.s32.totalorder %s93, %s107
    %p109 = scmp.eq.s32.totalorder %s20, 0
    %p110 = por %p108, %p109
    %s112 = sadd.s32 %s111, 1
    %p115 = scmp.eq.s32.totalorder %s14, 1
    %p116 = scmp.ne.s32.totalorder %s111, %s113
    %p117 = scmp.eq.s32.totalorder %s14, 0
    %p118 = por %p116, %p117
    %p119 = scmp.ne.s32.totalorder %s111, %s113
    %p120 = scmp.eq.s32.totalorder %s19, 1
    %p121 = por %p119, %p120
    %p122 = scmp.ne.s32.totalorder %s113, %s114
    %p123 = scmp.eq.s32.totalorder %s19, 0
    %p124 = por %p122, %p123
    %p125 = scmp.ne.s32.totalorder %s113, %s114
    %p126 = scmp.eq.s32.totalorder %s20, 1
    %p127 = por %p125, %p126
    %p129 = scmp.ne.s32.totalorder %s114, %s128
    %p130 = scmp.eq.s32.totalorder %s20, 0
    %p131 = por %p129, %p130
    %s133 = sadd.s32 %s132, 1
    %p136 = scmp.eq.s32.totalorder %s14, 1
    %p137 = scmp.ne.s32.totalorder %s132, %s134
    %p138 = scmp.eq.s32.totalorder %s14, 0
    %p139 = por %p137, %p138
    %p140 = scmp.ne.s32.totalorder %s132, %s134
    %p141 = scmp.eq.s32.totalorder %s19, 1
    %p142 = por %p140, %p141
    %p143 = scmp.ne.s32.totalorder %s134, %s135
    %p144 = scmp.eq.s32.totalorder %s19, 0
    %p145 = por %p143, %p144
    %p146 = scmp.ne.s32.totalorder %s134, %s135
    %p147 = scmp.eq.s32.totalorder %s20, 1
    %p148 = por %p146, %p147
    %p150 = scmp.ne.s32.totalorder %s135, %s149
    %p151 = scmp.eq.s32.totalorder %s20, 0
    %p152 = por %p150, %p151
    %s154 = sadd.s32 %s153, 1
    %p157 = scmp.eq.s32.totalorder %s14, 1
    %p158 = scmp.ne.s32.totalorder %s153, %s155
    %p159 = scmp.eq.s32.totalorder %s14, 0
    %p160 = por %p158, %p159
    %p161 = scmp.ne.s32.totalorder %s153, %s155
    %p162 = scmp.eq.s32.totalorder %s19, 1
    %p163 = por %p161, %p162
    %p164 = scmp.ne.s32.totalorder %s155, %s156
    %p165 = scmp.eq.s32.totalorder %s19, 0
    %p166 = por %p164, %p165
    %p167 = scmp.ne.s32.totalorder %s155, %s156
    %p168 = scmp.eq.s32.totalorder %s20, 1
    %p169 = por %p167, %p168
    %p171 = scmp.ne.s32.totalorder %s156, %s170
    %p172 = scmp.eq.s32.totalorder %s20, 0
    %p173 = por %p171, %p172
    %s175 = sadd.s32 %s174, 1
    %p178 = scmp.eq.s32.totalorder %s14, 1
    %p179 = scmp.ne.s32.totalorder %s174, %s176
    %p180 = scmp.eq.s32.totalorder %s14, 0
    %p181 = por %p179, %p180
    %p182 = scmp.ne.s32.totalorder %s174, %s176
    %p183 = scmp.eq.s32.totalorder %s19, 1
    %p184 = por %p182, %p183
    %p185 = scmp.ne.s32.totalorder %s176, %s177
    %p186 = scmp.eq.s32.totalorder %s19, 0
    %p187 = por %p185, %p186
    %p188 = scmp.ne.s32.totalorder %s176, %s177
    %p189 = scmp.eq.s32.totalorder %s20, 1
    %p190 = por %p188, %p189
    %p192 = scmp.ne.s32.totalorder %s177, %s191
    %p193 = scmp.eq.s32.totalorder %s20, 0
    %p194 = por %p192, %p193
    %s195 = ssub.s32 %s14, %s21
    %p196 = scmp.eq.s32.totalorder %s195, 0
    %s198 = sadd.s32 %s197, 1
    %s199 = scalar_select %p196, %s197, %s198
    %p202 = pneg %p196
    %p203 = scmp.eq.s32.totalorder %s14, 1
    %p204 = por %p202, %p203
    %p205 = scmp.ne.s32.totalorder %s197, %s200
    %p206 = scmp.eq.s32.totalorder %s14, 0
    %p207 = por %p205, %p206
    %p208 = scmp.ne.s32.totalorder %s197, %s200
    %p209 = scmp.eq.s32.totalorder %s19, 1
    %p210 = por %p208, %p209
    %p211 = scmp.ne.s32.totalorder %s200, %s201
    %p212 = scmp.eq.s32.totalorder %s19, 0
    %p213 = por %p211, %p212
    %p214 = scmp.ne.s32.totalorder %s200, %s201
    %p215 = scmp.eq.s32.totalorder %s20, 1
    %p216 = por %p214, %p215
    %p218 = scmp.ne.s32.totalorder %s201, %s217
    %p219 = scmp.eq.s32.totalorder %s20, 0
    %p220 = por %p218, %p219
    %p221 = scmp.le.s32.totalorder 1, %s14
    %p222 = scmp.lt.s32.totalorder %s14, 3
    %p223 = pnand %p221, %p222
    %p224 = pneg %p223
    // Predicated region
    $region9: #{decoder_block_forward.1} parent=5 // pred_check
      _
    $region10: #{decoder_block_forward.1} parent=5 // pred_check_branch
      %226 = sbr.rel (%p223) target = $region12
    $region11: #{decoder_block_forward.1} parent=5 // pred_region
      %s227 = ssub.s32 %s14, 1
      // Predicated region
      $region13: #{decoder_block_forward.1} parent=11 // pred_check
        %p228 = pneg %p61
      $region14: #{decoder_block_forward.1} parent=11 // pred_check_branch
        %230 = sbr.rel (%p228) target = $region16
      $region15: #{decoder_block_forward.1} parent=11 // pred_region
        _
      $region16: #{decoder_block_forward.1} parent=11 // pred_fallthru
        _
      // Predicated region
      $region17: #{decoder_block_forward.1} parent=11 // pred_check
        %p231 = pneg %p82
      $region18: #{decoder_block_forward.1} parent=11 // pred_check_branch
        %233 = sbr.rel (%p231) target = $region20
      $region19: #{decoder_block_forward.1} parent=11 // pred_region
        _
      $region20: #{decoder_block_forward.1} parent=11 // pred_fallthru
        _
      // Predicated region
      $region21: #{decoder_block_forward.1} parent=11 // pred_check
        %p234 = pneg %p103
      $region22: #{decoder_block_forward.1} parent=11 // pred_check_branch
        %236 = sbr.rel (%p234) target = $region24
      $region23: #{decoder_block_forward.1} parent=11 // pred_region
        _
      $region24: #{decoder_block_forward.1} parent=11 // pred_fallthru
        _
      // Predicated region
      $region25: #{decoder_block_forward.1} parent=11 // pred_check
        %p237 = pneg %p124
      $region26: #{decoder_block_forward.1} parent=11 // pred_check_branch
        %239 = sbr.rel (%p237) target = $region28
      $region27: #{decoder_block_forward.1} parent=11 // pred_region
        _
      $region28: #{decoder_block_forward.1} parent=11 // pred_fallthru
        _
      // Predicated region
      $region29: #{decoder_block_forward.1} parent=11 // pred_check
        %p240 = pneg %p145
      $region30: #{decoder_block_forward.1} parent=11 // pred_check_branch
        %242 = sbr.rel (%p240) target = $region32
      $region31: #{decoder_block_forward.1} parent=11 // pred_region
        _
      $region32: #{decoder_block_forward.1} parent=11 // pred_fallthru
        _
      // Predicated region
      $region33: #{decoder_block_forward.1} parent=11 // pred_check
        %p243 = pneg %p166
      $region34: #{decoder_block_forward.1} parent=11 // pred_check_branch
        %245 = sbr.rel (%p243) target = $region36
      $region35: #{decoder_block_forward.1} parent=11 // pred_region
        _
      $region36: #{decoder_block_forward.1} parent=11 // pred_fallthru
        _
      // Predicated region
      $region37: #{decoder_block_forward.1} parent=11 // pred_check
        %p246 = pneg %p187
      $region38: #{decoder_block_forward.1} parent=11 // pred_check_branch
        %248 = sbr.rel (%p246) target = $region40
      $region39: #{decoder_block_forward.1} parent=11 // pred_region
        _
      $region40: #{decoder_block_forward.1} parent=11 // pred_fallthru
        _
    $region12: #{decoder_block_forward.1} parent=5 // pred_fallthru
      _
    %p249 = scmp.lt.s32.totalorder %s14, 2
    // Predicated region
    $region41: #{decoder_block_forward.1} parent=5 // pred_check
      %p250 = pneg %p249
    $region42: #{decoder_block_forward.1} parent=5 // pred_check_branch
      %252 = sbr.rel (%p250) target = $region44
    $region43: #{decoder_block_forward.1} parent=5 // pred_region
      // Predicated region
      $region45: #{decoder_block_forward.1} parent=43 // pred_check
        %p253 = pneg %p34
      $region46: #{decoder_block_forward.1} parent=43 // pred_check_branch
        %255 = sbr.rel (%p253) target = $region48
      $region47: #{decoder_block_forward.1} parent=43 // pred_region
        %p256 = scmp.lt.s32.totalorder %s14, 1
        %s257 = scalar_select %p256, %s14, 1
        %s258 = smul.addr %s257, 43
        %s259 = smul.addr %s258, 8
        %s260 = scalar_lea.vmem %s0, %s259
      $region48: #{decoder_block_forward.1} parent=43 // pred_fallthru
        _
    $region44: #{decoder_block_forward.1} parent=5 // pred_fallthru
      _
    %p261 = scmp.le.s32.totalorder 1, %s14
    %p262 = scmp.lt.s32.totalorder %s14, 3
    %p263 = pnand %p261, %p262
    %p264 = pneg %p263
    // Predicated region
    $region49: #{decoder_block_forward.1} parent=5 // pred_check
      _
    $region50: #{decoder_block_forward.1} parent=5 // pred_check_branch
      %266 = sbr.rel (%p263) target = $region52
    $region51: #{decoder_block_forward.1} parent=5 // pred_region
      %s267 = ssub.s32 %s14, 1
      %p268 = scmp.lt.s32.totalorder %s19, 1
      %s269 = scalar_select %p268, %s19, 1
      %s270 = smul.addr %s269, 43
      %s271 = smul.addr %s270, 8
      %s272 = scalar_lea.vmem %s0, %s271
      %p273 = pneg %p40
      %p274 = pneg %p37
      %p275 = pneg %p61
      %p276 = pneg %p58
      %p277 = pneg %p82
      %p278 = pneg %p79
      %p279 = pneg %p103
      %p280 = pneg %p100
      %p281 = pneg %p124
      %p282 = pneg %p121
      %p283 = pneg %p145
      %p284 = pneg %p142
      %p285 = pneg %p166
      %p286 = pneg %p163
      %p287 = pneg %p187
      %p288 = pneg %p184
      %p289 = pneg %p213
      %p290 = pneg %p210
      %p291 = scmp.lt.s32.totalorder %s19, 1
      %s292 = scalar_select %p291, %s19, 1
      %s293 = smul.addr %s292, 36
      %s294 = smul.addr %s293, 8
      %s295 = scalar_lea.vmem %s8, %s294
      %p296 = scmp.lt.s32.totalorder %s19, 1
      %s297 = scalar_select %p296, %s19, 1
      %s298 = smul.addr %s297, 43
      %s299 = smul.addr %s298, 8
      %s300 = scalar_lea.vmem %s0, %s299
      %p301 = scmp.lt.s32.totalorder %s19, 1
      %s302 = scalar_select %p301, %s19, 1
      %s303 = smul.addr %s302, 36
      %s304 = smul.addr %s303, 8
      %s305 = scalar_lea.vmem %s8, %s304
      %v306 = vld [vmem:[%s300] sm:$0xff]
      %v307 = vld [vmem:[%s300 + $0x8] sm:$0xff]
      %v308 = vld [vmem:[%s300 + $0x10] sm:$0xff]
      %v309 = vld [vmem:[%s300 + $0x18] sm:$0xff]
      %v310 = vld [vmem:[%s300 + $0x20] sm:$0xff]
      %v311 = vld [vmem:[%s300 + $0x28] sm:$0xff]
      %v312 = vld [vmem:[%s300 + $0x30] sm:$0xff]
      %v313 = vld [vmem:[%s300 + $0x38] sm:$0xff]
      %v314 = vld [vmem:[%s300 + $0x40] sm:$0xff]
      %v315 = vld [vmem:[%s300 + $0x48] sm:$0xff]
      %v316 = vld [vmem:[%s300 + $0x50] sm:$0xff]
      %v317 = vld [vmem:[%s300 + $0x58] sm:$0xff]
      %v318 = vld [vmem:[%s300 + $0x60] sm:$0xff]
      %v319 = vld [vmem:[%s300 + $0x68] sm:$0xff]
      %v320 = vld [vmem:[%s300 + $0x70] sm:$0xff]
      %v321 = vld [vmem:[%s300 + $0x78] sm:$0xff]
      %v322 = vld [vmem:[%s300 + $0x80] sm:$0xff]
      %v323 = vld [vmem:[%s300 + $0x88] sm:$0xff]
      %v324 = vld [vmem:[%s300 + $0x90] sm:$0xff]
      %v325 = vld [vmem:[%s300 + $0x98] sm:$0xff]
      %v326 = vld [vmem:[%s300 + $0xa0] sm:$0xff]
      %v327 = vld [vmem:[%s300 + $0xa8] sm:$0xff]
      %v328 = vld [vmem:[%s300 + $0xb0] sm:$0xff]
      %v329 = vld [vmem:[%s300 + $0xb8] sm:$0xff]
      %v330 = vld [vmem:[%s300 + $0xc0] sm:$0xff]
      %v331 = vld [vmem:[%s300 + $0xc8] sm:$0xff]
      %v332 = vld [vmem:[%s300 + $0xd0] sm:$0xff]
      %v333 = vld [vmem:[%s300 + $0xd8] sm:$0xff]
      %v334 = vld [vmem:[%s300 + $0xe0] sm:$0xff]
      %v335 = vld [vmem:[%s300 + $0xe8] sm:$0xff]
      %v336 = vld [vmem:[%s300 + $0xf0] sm:$0xff]
      %v337 = vld [vmem:[%s300 + $0xf8] sm:$0xff]
      %v338 = vld [vmem:[%s300 + $0x100] sm:$0xff]
      %v339 = vld [vmem:[%s300 + $0x108] sm:$0xff]
      %v340 = vld [vmem:[%s300 + $0x110] sm:$0xff]
      %v341 = vld [vmem:[%s300 + $0x118] sm:$0xff]
      %v342 = vld [vmem:[%s300 + $0x120] sm:$0xff]
      %v343 = vld [vmem:[%s300 + $0x128] sm:$0xff]
      %v344 = vld [vmem:[%s300 + $0x130] sm:$0xff]
      %v345 = vld [vmem:[%s300 + $0x138] sm:$0xff]
      %v346 = vld [vmem:[%s300 + $0x140] sm:$0xff]
      %v347 = vld [vmem:[%s300 + $0x148] sm:$0xff]
      %v348 = vld [vmem:[%s300 + $0x150] sm:$0x3f]
      %v349 = vld [vmem:[%s2] sm:$0xff]
      %v350 = vld [vmem:[%s2 + $0x8] sm:$0xff]
      %v351 = vld [vmem:[%s3] sm:$0x1]
      %v353 = vlaneseq
      %v354 = vshrl.u32 %v353, 7
      %v355 = vsub.s32 0, %v354
      %v356 = vrot.slane %v351, %v355
      %vm358 = vcmask 130048
      %v360 = vsel %vm358, %v306, 0
      %v363 = vsel %vm358, %v307, 0
      %v366 = vsel %vm358, %v308, 0
      %v369 = vsel %vm358, %v309, 0
      %v372 = vsel %vm358, %v310, 0
      %v375 = vsel %vm358, %v311, 0
      %v378 = vsel %vm358, %v312, 0
      %v381 = vsel %vm358, %v313, 0
      %v384 = vsel %vm358, %v314, 0
      %v387 = vsel %vm358, %v315, 0
      %v390 = vsel %vm358, %v316, 0
      %v393 = vsel %vm358, %v317, 0
      %v396 = vsel %vm358, %v318, 0
      %v399 = vsel %vm358, %v319, 0
      %v402 = vsel %vm358, %v320, 0
      %v405 = vsel %vm358, %v321, 0
      %v408 = vsel %vm358, %v322, 0
      %v411 = vsel %vm358, %v323, 0
      %v414 = vsel %vm358, %v324, 0
      %v417 = vsel %vm358, %v325, 0
      %v420 = vsel %vm358, %v326, 0
      %v423 = vsel %vm358, %v327, 0
      %v426 = vsel %vm358, %v328, 0
      %v429 = vsel %vm358, %v329, 0
      %v432 = vsel %vm358, %v330, 0
      %v435 = vsel %vm358, %v331, 0
      %v438 = vsel %vm358, %v332, 0
      %v441 = vsel %vm358, %v333, 0
      %v444 = vsel %vm358, %v334, 0
      %v447 = vsel %vm358, %v335, 0
      %v450 = vsel %vm358, %v336, 0
      %v453 = vsel %vm358, %v337, 0
      %v456 = vsel %vm358, %v338, 0
      %v459 = vsel %vm358, %v339, 0
      %v462 = vsel %vm358, %v340, 0
      %v465 = vsel %vm358, %v341, 0
      %v468 = vsel %vm358, %v342, 0
      %v471 = vsel %vm358, %v343, 0
      %v474 = vsel %vm358, %v344, 0
      %v477 = vsel %vm358, %v345, 0
      %v480 = vsel %vm358, %v346, 0
      %v483 = vsel %vm358, %v347, 0
      %v486 = vsel %vm358, %v348, 0
      %488 = vmatprep.subr.mxu0 0.0
      %489 = vmatpush1.msra.mxu0 %v349
      %490 = vmatprep.subr.mxu0 0.0
      %491 = vmatpush1.msra.mxu0 %v350
      %492 = vmatprep.subr.mxu0 0.0
      %493 = vmatpush1.msra.mxu0 0.0
      %494 = vmatprep.subr.mxu0 0.0
      %495 = vmatpush1.msra.mxu0 0.0
      %496 = vmatprep.subr.mxu0 0.0
      %497 = vmatpush1.msra.mxu0 0.0
      %498 = vmatprep.subr.mxu0 0.0
      %499 = vmatpush1.msra.mxu0 0.0
      %500 = vmatprep.subr.mxu0 0.0
      %501 = vmatpush1.msra.mxu0 0.0
      %502 = vmatprep.subr.mxu0 0.0
      %503 = vmatpush1.msra.mxu0 0.0
      %504 = vmatprep.subr.mxu0 0.0
      %505 = vmatpush1.msra.mxu0 0.0
      %506 = vmatprep.subr.mxu0 0.0
      %507 = vmatpush1.msra.mxu0 0.0
      %508 = vmatprep.subr.mxu0 0.0
      %509 = vmatpush1.msra.mxu0 0.0
      %510 = vmatprep.subr.mxu0 0.0
      %511 = vmatpush1.msra.mxu0 0.0
      %512 = vmatprep.subr.mxu0 0.0
      %513 = vmatpush1.msra.mxu0 0.0
      %514 = vmatprep.subr.mxu0 0.0
      %515 = vmatpush1.msra.mxu0 0.0
      %516 = vmatprep.subr.mxu0 0.0
      %517 = vmatpush1.msra.mxu0 0.0
      %518 = vmatprep.subr.mxu0 0.0
      %519 = vmatpush1.msra.mxu0 0.0
      %520 = vmatprep.subr.mxu0 0.0
      %521 = vmatpush1.msra.mxu0 0.0
      %522 = vmatprep.subr.mxu0 0.0
      %523 = vmatpush1.msra.mxu0 0.0
      %524 = vmatprep.subr.mxu0 0.0
      %525 = vmatpush1.msra.mxu0 0.0
      %526 = vmatprep.subr.mxu0 0.0
      %527 = vmatpush1.msra.mxu0 0.0
      %528 = vmatprep.subr.mxu0 0.0
      %529 = vmatpush1.msra.mxu0 0.0
      %530 = vmatprep.subr.mxu0 0.0
      %531 = vmatpush1.msra.mxu0 0.0
      %532 = vmatprep.subr.mxu0 0.0
      %533 = vmatpush1.msra.mxu0 0.0
      %534 = vmatprep.subr.mxu0 0.0
      %535 = vmatpush1.msra.mxu0 0.0
      %536 = vmatprep.subr.mxu0 0.0
      %537 = vmatpush1.msra.mxu0 0.0
      %538 = vmatprep.subr.mxu0 0.0
      %539 = vmatpush1.msra.mxu0 0.0
      %540 = vmatprep.subr.mxu0 0.0
      %541 = vmatpush1.msra.mxu0 0.0
      %542 = vmatprep.subr.mxu0 0.0
      %543 = vmatpush1.msra.mxu0 0.0
      %544 = vmatprep.subr.mxu0 0.0
      %545 = vmatpush1.msra.mxu0 0.0
      %546 = vmatprep.subr.mxu0 0.0
      %547 = vmatpush1.msra.mxu0 0.0
      %548 = vmatprep.subr.mxu0 0.0
      %549 = vmatpush1.msra.mxu0 0.0
      %550 = vmatprep.subr.mxu0 0.0
      %551 = vmatpush1.msra.mxu0 0.0
      %552 = vmatprep.mubr.f32.mxu0 0.0
      %553 = vmatmul.mubr.f32.gmra.mrb[0].mxu0 %v360
      %v554 = vpop.f32.mrb[0].mxu0
      %v555 = vadd.f32 %v356, %v554
      %v556 = vpop.f32.mrb[0].mxu0
      %557 = vmatprep.mubr.f32.mxu0 0.0
      %558 = vmatmul.mubr.f32.gmra.mrb[0].mxu0 %v363
      %v559 = vpop.f32.mrb[0].mxu0
      %v560 = vadd.f32 %v356, %v559
      %v561 = vpop.f32.mrb[0].mxu0
      %562 = vmatprep.mubr.f32.mxu0 0.0
      %563 = vmatmul.mubr.f32.gmra.mrb[0].mxu0 %v366
      %v564 = vpop.f32.mrb[0].mxu0
      %v565 = vadd.f32 %v356, %v564
      %v566 = vpop.f32.mrb[0].mxu0
      %567 = vmatprep.mubr.f32.mxu0 0.0
      %568 = vmatmul.mubr.f32.gmra.mrb[0].mxu0 %v369
      %v569 = vpop.f32.mrb[0].mxu0
      %v570 = vadd.f32 %v356, %v569
      %v571 = vpop.f32.mrb[0].mxu0
      %572 = vmatprep.mubr.f32.mxu0 0.0
      %573 = vmatmul.mubr.f32.gmra.mrb[0].mxu0 %v372
      %v574 = vpop.f32.mrb[0].mxu0
      %v575 = vadd.f32 %v356, %v574
      %v576 = vpop.f32.mrb[0].mxu0
      %577 = vmatprep.mubr.f32.mxu0 0.0
      %578 = vmatmul.mubr.f32.gmra.mrb[0].mxu0 %v375
      %v579 = vpop.f32.mrb[0].mxu0
      %v580 = vadd.f32 %v356, %v579
      %v581 = vpop.f32.mrb[0].mxu0
      %582 = vmatprep.mubr.f32.mxu0 0.0
      %583 = vmatmul.mubr.f32.gmra.mrb[0].mxu0 %v378
      %v584 = vpop.f32.mrb[0].mxu0
      %v585 = vadd.f32 %v356, %v584
      %v586 = vpop.f32.mrb[0].mxu0
      %587 = vmatprep.mubr.f32.mxu0 0.0
      %588 = vmatmul.mubr.f32.gmra.mrb[0].mxu0 %v381
      %v589 = vpop.f32.mrb[0].mxu0
      %v590 = vadd.f32 %v356, %v589
      %v591 = vpop.f32.mrb[0].mxu0
      %592 = vmatprep.mubr.f32.mxu0 0.0
      %593 = vmatmul.mubr.f32.gmra.mrb[0].mxu0 %v384
      %v594 = vpop.f32.mrb[0].mxu0
      %v595 = vadd.f32 %v356, %v594
      %v596 = vpop.f32.mrb[0].mxu0
      %597 = vmatprep.mubr.f32.mxu0 0.0
      %598 = vmatmul.mubr.f32.gmra.mrb[0].mxu0 %v387
      %v599 = vpop.f32.mrb[0].mxu0
      %v600 = vadd.f32 %v356, %v599
      %v601 = vpop.f32.mrb[0].mxu0
      %602 = vmatprep.mubr.f32.mxu0 0.0
      %603 = vmatmul.mubr.f32.gmra.mrb[0].mxu0 %v390
      %v604 = vpop.f32.mrb[0].mxu0
      %v605 = vadd.f32 %v356, %v604
      %v606 = vpop.f32.mrb[0].mxu0
      %607 = vmatprep.mubr.f32.mxu0 0.0
      %608 = vmatmul.mubr.f32.gmra.mrb[0].mxu0 %v393
      %v609 = vpop.f32.mrb[0].mxu0
      %v610 = vadd.f32 %v356, %v609
      %v611 = vpop.f32.mrb[0].mxu0
      %612 = vmatprep.mubr.f32.mxu0 0.0
      %613 = vmatmul.mubr.f32.gmra.mrb[0].mxu0 %v396
      %v614 = vpop.f32.mrb[0].mxu0
      %v615 = vadd.f32 %v356, %v614
      %v616 = vpop.f32.mrb[0].mxu0
      %617 = vmatprep.mubr.f32.mxu0 0.0
      %618 = vmatmul.mubr.f32.gmra.mrb[0].mxu0 %v399
      %v619 = vpop.f32.mrb[0].mxu0
      %v620 = vadd.f32 %v356, %v619
      %v621 = vpop.f32.mrb[0].mxu0
      %622 = vmatprep.mubr.f32.mxu0 0.0
      %623 = vmatmul.mubr.f32.gmra.mrb[0].mxu0 %v402
      %v624 = vpop.f32.mrb[0].mxu0
      %v625 = vadd.f32 %v356, %v624
      %v626 = vpop.f32.mrb[0].mxu0
      %627 = vmatprep.mubr.f32.mxu0 0.0
      %628 = vmatmul.mubr.f32.gmra.mrb[0].mxu0 %v405
      %v629 = vpop.f32.mrb[0].mxu0
      %v630 = vadd.f32 %v356, %v629
      %v631 = vpop.f32.mrb[0].mxu0
      %632 = vmatprep.mubr.f32.mxu0 0.0
      %633 = vmatmul.mubr.f32.gmra.mrb[0].mxu0 %v408
      %v634 = vpop.f32.mrb[0].mxu0
      %v635 = vadd.f32 %v356, %v634
      %v636 = vpop.f32.mrb[0].mxu0
      %637 = vmatprep.mubr.f32.mxu0 0.0
      %638 = vmatmul.mubr.f32.gmra.mrb[0].mxu0 %v411
      %v639 = vpop.f32.mrb[0].mxu0
      %v640 = vadd.f32 %v356, %v639
      %v641 = vpop.f32.mrb[0].mxu0
      %642 = vmatprep.mubr.f32.mxu0 0.0
      %643 = vmatmul.mubr.f32.gmra.mrb[0].mxu0 %v414
      %v644 = vpop.f32.mrb[0].mxu0
      %v645 = vadd.f32 %v356, %v644
      %v646 = vpop.f32.mrb[0].mxu0
      %647 = vmatprep.mubr.f32.mxu0 0.0
      %648 = vmatmul.mubr.f32.gmra.mrb[0].mxu0 %v417
      %v649 = vpop.f32.mrb[0].mxu0
      %v650 = vadd.f32 %v356, %v649
      %v651 = vpop.f32.mrb[0].mxu0
      %652 = vmatprep.mubr.f32.mxu0 0.0
      %653 = vmatmul.mubr.f32.gmra.mrb[0].mxu0 %v420
      %v654 = vpop.f32.mrb[0].mxu0
      %v655 = vadd.f32 %v356, %v654
      %v656 = vpop.f32.mrb[0].mxu0
      %657 = vmatprep.mubr.f32.mxu0 0.0
      %658 = vmatmul.mubr.f32.gmra.mrb[0].mxu0 %v423
      %v659 = vpop.f32.mrb[0].mxu0
      %v660 = vadd.f32 %v356, %v659
      %v661 = vpop.f32.mrb[0].mxu0
      %662 = vmatprep.mubr.f32.mxu0 0.0
      %663 = vmatmul.mubr.f32.gmra.mrb[0].mxu0 %v426
      %v664 = vpop.f32.mrb[0].mxu0
      %v665 = vadd.f32 %v356, %v664
      %v666 = vpop.f32.mrb[0].mxu0
      %667 = vmatprep.mubr.f32.mxu0 0.0
      %668 = vmatmul.mubr.f32.gmra.mrb[0].mxu0 %v429
      %v669 = vpop.f32.mrb[0].mxu0
      %v670 = vadd.f32 %v356, %v669
      %v671 = vpop.f32.mrb[0].mxu0
      %672 = vmatprep.mubr.f32.mxu0 0.0
      %673 = vmatmul.mubr.f32.gmra.mrb[0].mxu0 %v432
      %v674 = vpop.f32.mrb[0].mxu0
      %v675 = vadd.f32 %v356, %v674
      %v676 = vpop.f32.mrb[0].mxu0
      %677 = vmatprep.mubr.f32.mxu0 0.0
      %678 = vmatmul.mubr.f32.gmra.mrb[0].mxu0 %v435
      %v679 = vpop.f32.mrb[0].mxu0
      %v680 = vadd.f32 %v356, %v679
      %v681 = vpop.f32.mrb[0].mxu0
      %682 = vmatprep.mubr.f32.mxu0 0.0
      %683 = vmatmul.mubr.f32.gmra.mrb[0].mxu0 %v438
      %v684 = vpop.f32.mrb[0].mxu0
      %v685 = vadd.f32 %v356, %v684
      %v686 = vpop.f32.mrb[0].mxu0
      %687 = vmatprep.mubr.f32.mxu0 0.0
      %688 = vmatmul.mubr.f32.gmra.mrb[0].mxu0 %v441
      %v689 = vpop.f32.mrb[0].mxu0
      %v690 = vadd.f32 %v356, %v689
      %v691 = vpop.f32.mrb[0].mxu0
      %692 = vmatprep.mubr.f32.mxu0 0.0
      %693 = vmatmul.mubr.f32.gmra.mrb[0].mxu0 %v444
      %v694 = vpop.f32.mrb[0].mxu0
      %v695 = vadd.f32 %v356, %v694
      %v696 = vpop.f32.mrb[0].mxu0
      %697 = vmatprep.mubr.f32.mxu0 0.0
      %698 = vmatmul.mubr.f32.gmra.mrb[0].mxu0 %v447
      %v699 = vpop.f32.mrb[0].mxu0
      %v700 = vadd.f32 %v356, %v699
      %v701 = vpop.f32.mrb[0].mxu0
      %702 = vmatprep.mubr.f32.mxu0 0.0
      %703 = vmatmul.mubr.f32.gmra.mrb[0].mxu0 %v450
      %v704 = vpop.f32.mrb[0].mxu0
      %v705 = vadd.f32 %v356, %v704
      %v706 = vpop.f32.mrb[0].mxu0
      %707 = vmatprep.mubr.f32.mxu0 0.0
      %708 = vmatmul.mubr.f32.gmra.mrb[0].mxu0 %v453
      %v709 = vpop.f32.mrb[0].mxu0
      %v710 = vadd.f32 %v356, %v709
      %v711 = vpop.f32.mrb[0].mxu0
      %712 = vmatprep.mubr.f32.mxu0 0.0
      %713 = vmatmul.mubr.f32.gmra.mrb[0].mxu0 %v456
      %v714 = vpop.f32.mrb[0].mxu0
      %v715 = vadd.f32 %v356, %v714
      %v716 = vpop.f32.mrb[0].mxu0
      %717 = vmatprep.mubr.f32.mxu0 0.0
      %718 = vmatmul.mubr.f32.gmra.mrb[0].mxu0 %v459
      %v719 = vpop.f32.mrb[0].mxu0
      %v720 = vadd.f32 %v356, %v719
      %v721 = vpop.f32.mrb[0].mxu0
      %722 = vmatprep.mubr.f32.mxu0 0.0
      %723 = vmatmul.mubr.f32.gmra.mrb[0].mxu0 %v462
      %v724 = vpop.f32.mrb[0].mxu0
      %v725 = vadd.f32 %v356, %v724
      %v726 = vpop.f32.mrb[0].mxu0
      %727 = vmatprep.mubr.f32.mxu0 0.0
      %728 = vmatmul.mubr.f32.gmra.mrb[0].mxu0 %v465
      %v729 = vpop.f32.mrb[0].mxu0
      %v730 = vadd.f32 %v356, %v729
      %v731 = vpop.f32.mrb[0].mxu0
      %732 = vmatprep.mubr.f32.mxu0 0.0
      %733 = vmatmul.mubr.f32.gmra.mrb[0].mxu0 %v468
      %v734 = vpop.f32.mrb[0].mxu0
      %v735 = vadd.f32 %v356, %v734
      %v736 = vpop.f32.mrb[0].mxu0
      %737 = vmatprep.mubr.f32.mxu0 0.0
      %738 = vmatmul.mubr.f32.gmra.mrb[0].mxu0 %v471
      %v739 = vpop.f32.mrb[0].mxu0
      %v740 = vadd.f32 %v356, %v739
      %v741 = vpop.f32.mrb[0].mxu0
      %742 = vmatprep.mubr.f32.mxu0 0.0
      %743 = vmatmul.mubr.f32.gmra.mrb[0].mxu0 %v474
      %v744 = vpop.f32.mrb[0].mxu0
      %v745 = vadd.f32 %v356, %v744
      %v746 = vpop.f32.mrb[0].mxu0
      %747 = vmatprep.mubr.f32.mxu0 0.0
      %748 = vmatmul.mubr.f32.gmra.mrb[0].mxu0 %v477
      %v749 = vpop.f32.mrb[0].mxu0
      %v750 = vadd.f32 %v356, %v749
      %v751 = vpop.f32.mrb[0].mxu0
      %752 = vmatprep.mubr.f32.mxu0 0.0
      %753 = vmatmul.mubr.f32.gmra.mrb[0].mxu0 %v480
      %v754 = vpop.f32.mrb[0].mxu0
      %v755 = vadd.f32 %v356, %v754
      %v756 = vpop.f32.mrb[0].mxu0
      %757 = vmatprep.mubr.f32.mxu0 0.0
      %758 = vmatmul.mubr.f32.gmra.mrb[0].mxu0 %v483
      %v759 = vpop.f32.mrb[0].mxu0
      %v760 = vadd.f32 %v356, %v759
      %v761 = vpop.f32.mrb[0].mxu0
      %762 = vmatprep.mubr.f32.mxu0 0.0
      %763 = vmatmul.mubr.f32.gmra.mrb[0].mxu0 %v486
      %v764 = vpop.f32.mrb[0].mxu0
      %v765 = vadd.f32 %v356, %v764
      %v766 = vpop.f32.mrb[0].mxu0
      %767 = vdwg.mxu0
      %v768 = vmax.f32 %v555, 0.0
      %v769 = vmax.f32 %v560, 0.0
      %v770 = vmax.f32 %v565, 0.0
      %v771 = vmax.f32 %v570, 0.0
      %v772 = vmax.f32 %v575, 0.0
      %v773 = vmax.f32 %v580, 0.0
      %v774 = vmax.f32 %v585, 0.0
      %v775 = vmax.f32 %v590, 0.0
      %v776 = vmax.f32 %v595, 0.0
      %v777 = vmax.f32 %v600, 0.0
      %v778 = vmax.f32 %v605, 0.0
      %v779 = vmax.f32 %v610, 0.0
      %v780 = vmax.f32 %v615, 0.0
      %v781 = vmax.f32 %v620, 0.0
      %v782 = vmax.f32 %v625, 0.0
      %v783 = vmax.f32 %v630, 0.0
      %v784 = vmax.f32 %v635, 0.0
      %v785 = vmax.f32 %v640, 0.0
      %v786 = vmax.f32 %v645, 0.0
      %v787 = vmax.f32 %v650, 0.0
      %v788 = vmax.f32 %v655, 0.0
      %v789 = vmax.f32 %v660, 0.0
      %v790 = vmax.f32 %v665, 0.0
      %v791 = vmax.f32 %v670, 0.0
      %v792 = vmax.f32 %v675, 0.0
      %v793 = vmax.f32 %v680, 0.0
      %v794 = vmax.f32 %v685, 0.0
      %v795 = vmax.f32 %v690, 0.0
      %v796 = vmax.f32 %v695, 0.0
      %v797 = vmax.f32 %v700, 0.0
      %v798 = vmax.f32 %v705, 0.0
      %v799 = vmax.f32 %v710, 0.0
      %v800 = vmax.f32 %v715, 0.0
      %v801 = vmax.f32 %v720, 0.0
      %v802 = vmax.f32 %v725, 0.0
      %v803 = vmax.f32 %v730, 0.0
      %v804 = vmax.f32 %v735, 0.0
      %v805 = vmax.f32 %v740, 0.0
      %v806 = vmax.f32 %v745, 0.0
      %v807 = vmax.f32 %v750, 0.0
      %v808 = vmax.f32 %v755, 0.0
      %v809 = vmax.f32 %v760, 0.0
      %v810 = vmax.f32 %v765, 0.0
      %v811 = vld [vmem:[%s1] sm:$0xff]
      %v812 = vld [vmem:[%s1 + $0x8] sm:$0xff]
      %v813 = vld [vmem:[%s1 + $0x10] sm:$0xff]
      %v814 = vld [vmem:[%s1 + $0x18] sm:$0xff]
      %v815 = vld [vmem:[%s1 + $0x20] sm:$0xff]
      %v816 = vld [vmem:[%s1 + $0x28] sm:$0xff]
      %v817 = vld [vmem:[%s1 + $0x30] sm:$0xff]
      %v818 = vld [vmem:[%s1 + $0x38] sm:$0xff]
      %v819 = vld [vmem:[%s1 + $0x40] sm:$0xff]
      %v820 = vld [vmem:[%s1 + $0x48] sm:$0xff]
      %v821 = vld [vmem:[%s1 + $0x50] sm:$0xff]
      %v822 = vld [vmem:[%s1 + $0x58] sm:$0xff]
      %v823 = vld [vmem:[%s1 + $0x60] sm:$0xff]
      %v824 = vld [vmem:[%s1 + $0x68] sm:$0xff]
      %v825 = vld [vmem:[%s1 + $0x70] sm:$0xff]
      %v826 = vld [vmem:[%s1 + $0x78] sm:$0xff]
      %v827 = vld [vmem:[%s1 + $0x80] sm:$0xff]
      %v828 = vld [vmem:[%s1 + $0x88] sm:$0xff]
      %v829 = vld [vmem:[%s1 + $0x90] sm:$0xff]
      %v830 = vld [vmem:[%s1 + $0x98] sm:$0xff]
      %v831 = vld [vmem:[%s1 + $0xa0] sm:$0xff]
      %v832 = vld [vmem:[%s1 + $0xa8] sm:$0xff]
      %v833 = vld [vmem:[%s1 + $0xb0] sm:$0xff]
      %v834 = vld [vmem:[%s1 + $0xb8] sm:$0xff]
      %v835 = vld [vmem:[%s1 + $0xc0] sm:$0xff]
      %v836 = vld [vmem:[%s1 + $0xc8] sm:$0xff]
      %v837 = vld [vmem:[%s1 + $0xd0] sm:$0xff]
      %v838 = vld [vmem:[%s1 + $0xd8] sm:$0xff]
      %v839 = vld [vmem:[%s1 + $0xe0] sm:$0xff]
      %v840 = vld [vmem:[%s1 + $0xe8] sm:$0xff]
      %v841 = vld [vmem:[%s1 + $0xf0] sm:$0xff]
      %v842 = vld [vmem:[%s1 + $0xf8] sm:$0xff]
      %v843 = vld [vmem:[%s1 + $0x100] sm:$0xff]
      %v844 = vld [vmem:[%s1 + $0x108] sm:$0xff]
      %v845 = vld [vmem:[%s1 + $0x110] sm:$0xff]
      %v846 = vld [vmem:[%s1 + $0x118] sm:$0xff]
      %v847 = vld [vmem:[%s1 + $0x120] sm:$0xff]
      %v848 = vld [vmem:[%s1 + $0x128] sm:$0xff]
      %v849 = vld [vmem:[%s1 + $0x130] sm:$0xff]
      %v850 = vld [vmem:[%s1 + $0x138] sm:$0xff]
      %v851 = vld [vmem:[%s1 + $0x140] sm:$0xff]
      %v852 = vld [vmem:[%s1 + $0x148] sm:$0xff]
      %v853 = vld [vmem:[%s1 + $0x150] sm:$0x3f]
      %855 = vset.pattern.permute.xlu0 0
      %856 = vperm.xlu0 %855, %v811
      %v857 = vpop.permute.xlu0 %856
      %860 = vset.pattern.permute.xlu0 0
      %861 = vperm.xlu0 %860, %v812
      %v862 = vpop.permute.xlu0 %861
      %865 = vset.pattern.permute.xlu0 0
      %866 = vperm.xlu0 %865, %v813
      %v867 = vpop.permute.xlu0 %866
      %870 = vset.pattern.permute.xlu0 0
      %871 = vperm.xlu0 %870, %v814
      %v872 = vpop.permute.xlu0 %871
      %875 = vset.pattern.permute.xlu0 0
      %876 = vperm.xlu0 %875, %v815
      %v877 = vpop.permute.xlu0 %876
      %880 = vset.pattern.permute.xlu0 0
      %881 = vperm.xlu0 %880, %v816
      %v882 = vpop.permute.xlu0 %881
      %885 = vset.pattern.permute.xlu0 0
      %886 = vperm.xlu0 %885, %v817
      %v887 = vpop.permute.xlu0 %886
      %890 = vset.pattern.permute.xlu0 0
      %891 = vperm.xlu0 %890, %v818
      %v892 = vpop.permute.xlu0 %891
      %895 = vset.pattern.permute.xlu0 0
      %896 = vperm.xlu0 %895, %v819
      %v897 = vpop.permute.xlu0 %896
      %900 = vset.pattern.permute.xlu0 0
      %901 = vperm.xlu0 %900, %v820
      %v902 = vpop.permute.xlu0 %901
      %905 = vset.pattern.permute.xlu0 0
      %906 = vperm.xlu0 %905, %v821
      %v907 = vpop.permute.xlu0 %906
      %910 = vset.pattern.permute.xlu0 0
      %911 = vperm.xlu0 %910, %v822
      %v912 = vpop.permute.xlu0 %911
      %915 = vset.pattern.permute.xlu0 0
      %916 = vperm.xlu0 %915, %v823
      %v917 = vpop.permute.xlu0 %916
      %920 = vset.pattern.permute.xlu0 0
      %921 = vperm.xlu0 %920, %v824
      %v922 = vpop.permute.xlu0 %921
      %925 = vset.pattern.permute.xlu0 0
      %926 = vperm.xlu0 %925, %v825
      %v927 = vpop.permute.xlu0 %926
      %930 = vset.pattern.permute.xlu0 0
      %931 = vperm.xlu0 %930, %v826
      %v932 = vpop.permute.xlu0 %931
      %935 = vset.pattern.permute.xlu0 0
      %936 = vperm.xlu0 %935, %v827
      %v937 = vpop.permute.xlu0 %936
      %940 = vset.pattern.permute.xlu0 0
      %941 = vperm.xlu0 %940, %v828
      %v942 = vpop.permute.xlu0 %941
      %945 = vset.pattern.permute.xlu0 0
      %946 = vperm.xlu0 %945, %v829
      %v947 = vpop.permute.xlu0 %946
      %950 = vset.pattern.permute.xlu0 0
      %951 = vperm.xlu0 %950, %v830
      %v952 = vpop.permute.xlu0 %951
      %955 = vset.pattern.permute.xlu0 0
      %956 = vperm.xlu0 %955, %v831
      %v957 = vpop.permute.xlu0 %956
      %960 = vset.pattern.permute.xlu0 0
      %961 = vperm.xlu0 %960, %v832
      %v962 = vpop.permute.xlu0 %961
      %965 = vset.pattern.permute.xlu0 0
      %966 = vperm.xlu0 %965, %v833
      %v967 = vpop.permute.xlu0 %966
      %970 = vset.pattern.permute.xlu0 0
      %971 = vperm.xlu0 %970, %v834
      %v972 = vpop.permute.xlu0 %971
      %975 = vset.pattern.permute.xlu0 0
      %976 = vperm.xlu0 %975, %v835
      %v977 = vpop.permute.xlu0 %976
      %980 = vset.pattern.permute.xlu0 0
      %981 = vperm.xlu0 %980, %v836
      %v982 = vpop.permute.xlu0 %981
      %985 = vset.pattern.permute.xlu0 0
      %986 = vperm.xlu0 %985, %v837
      %v987 = vpop.permute.xlu0 %986
      %990 = vset.pattern.permute.xlu0 0
      %991 = vperm.xlu0 %990, %v838
      %v992 = vpop.permute.xlu0 %991
      %995 = vset.pattern.permute.xlu0 0
      %996 = vperm.xlu0 %995, %v839
      %v997 = vpop.permute.xlu0 %996
      %1000 = vset.pattern.permute.xlu0 0
      %1001 = vperm.xlu0 %1000, %v840
      %v1002 = vpop.permute.xlu0 %1001
      %1005 = vset.pattern.permute.xlu0 0
      %1006 = vperm.xlu0 %1005, %v841
      %v1007 = vpop.permute.xlu0 %1006
      %1010 = vset.pattern.permute.xlu0 0
      %1011 = vperm.xlu0 %1010, %v842
      %v1012 = vpop.permute.xlu0 %1011
      %1015 = vset.pattern.permute.xlu0 0
      %1016 = vperm.xlu0 %1015, %v843
      %v1017 = vpop.permute.xlu0 %1016
      %1020 = vset.pattern.permute.xlu0 0
      %1021 = vperm.xlu0 %1020, %v844
      %v1022 = vpop.permute.xlu0 %1021
      %1025 = vset.pattern.permute.xlu0 0
      %1026 = vperm.xlu0 %1025, %v845
      %v1027 = vpop.permute.xlu0 %1026
      %1030 = vset.pattern.permute.xlu0 0
      %1031 = vperm.xlu0 %1030, %v846
      %v1032 = vpop.permute.xlu0 %1031
      %1035 = vset.pattern.permute.xlu0 0
      %1036 = vperm.xlu0 %1035, %v847
      %v1037 = vpop.permute.xlu0 %1036
      %1040 = vset.pattern.permute.xlu0 0
      %1041 = vperm.xlu0 %1040, %v848
      %v1042 = vpop.permute.xlu0 %1041
      %1045 = vset.pattern.permute.xlu0 0
      %1046 = vperm.xlu0 %1045, %v849
      %v1047 = vpop.permute.xlu0 %1046
      %1050 = vset.pattern.permute.xlu0 0
      %1051 = vperm.xlu0 %1050, %v850
      %v1052 = vpop.permute.xlu0 %1051
      %1055 = vset.pattern.permute.xlu0 0
      %1056 = vperm.xlu0 %1055, %v851
      %v1057 = vpop.permute.xlu0 %1056
      %1060 = vset.pattern.permute.xlu0 0
      %1061 = vperm.xlu0 %1060, %v852
      %v1062 = vpop.permute.xlu0 %1061
      %1065 = vset.pattern.permute.xlu0 0
      %1066 = vperm.xlu0 %1065, %v853
      %v1067 = vpop.permute.xlu0 %1066
      %v1069 = vmul.f32 %v768, %v857
      %v1070 = vmul.f32 %v769, %v862
      %v1071 = vmul.f32 %v770, %v867
      %v1072 = vmul.f32 %v771, %v872
      %v1073 = vmul.f32 %v772, %v877
      %v1074 = vmul.f32 %v773, %v882
      %v1075 = vmul.f32 %v774, %v887
      %v1076 = vmul.f32 %v775, %v892
      %v1077 = vmul.f32 %v776, %v897
      %v1078 = vmul.f32 %v777, %v902
      %v1079 = vmul.f32 %v778, %v907
      %v1080 = vmul.f32 %v779, %v912
      %v1081 = vmul.f32 %v780, %v917
      %v1082 = vmul.f32 %v781, %v922
      %v1083 = vmul.f32 %v782, %v927
      %v1084 = vmul.f32 %v783, %v932
      %v1085 = vmul.f32 %v784, %v937
      %v1086 = vmul.f32 %v785, %v942
      %v1087 = vmul.f32 %v786, %v947
      %v1088 = vmul.f32 %v787, %v952
      %v1089 = vmul.f32 %v788, %v957
      %v1090 = vmul.f32 %v789, %v962
      %v1091 = vmul.f32 %v790, %v967
      %v1092 = vmul.f32 %v791, %v972
      %v1093 = vmul.f32 %v792, %v977
      %v1094 = vmul.f32 %v793, %v982
      %v1095 = vmul.f32 %v794, %v987
      %v1096 = vmul.f32 %v795, %v992
      %v1097 = vmul.f32 %v796, %v997
      %v1098 = vmul.f32 %v797, %v1002
      %v1099 = vmul.f32 %v798, %v1007
      %v1100 = vmul.f32 %v799, %v1012
      %v1101 = vmul.f32 %v800, %v1017
      %v1102 = vmul.f32 %v801, %v1022
      %v1103 = vmul.f32 %v802, %v1027
      %v1104 = vmul.f32 %v803, %v1032
      %v1105 = vmul.f32 %v804, %v1037
      %v1106 = vmul.f32 %v805, %v1042
      %v1107 = vmul.f32 %v806, %v1047
      %v1108 = vmul.f32 %v807, %v1052
      %v1109 = vmul.f32 %v808, %v1057
      %v1110 = vmul.f32 %v809, %v1062
      %v1111 = vmul.f32 %v810, %v1067
      %vm1112 = vcmask 31744
      %1113 = vst.msk [vmem:[#allocation2] sm:$0xff] %vm1112, %v1069
      %1114 = vst.msk [vmem:[#allocation2 + $0x8] sm:$0xff] %vm1112, %v1070
      %1115 = vst.msk [vmem:[#allocation2 + $0x10] sm:$0xff] %vm1112, %v1071
      %1116 = vst.msk [vmem:[#allocation2 + $0x18] sm:$0xff] %vm1112, %v1072
      %1117 = vst.msk [vmem:[#allocation2 + $0x20] sm:$0xff] %vm1112, %v1073
      %1118 = vst.msk [vmem:[#allocation2 + $0x28] sm:$0xff] %vm1112, %v1074
      %1119 = vst.msk [vmem:[#allocation2 + $0x30] sm:$0xff] %vm1112, %v1075
      %1120 = vst.msk [vmem:[#allocation2 + $0x38] sm:$0xff] %vm1112, %v1076
      %1121 = vst.msk [vmem:[#allocation2 + $0x40] sm:$0xff] %vm1112, %v1077
      %1122 = vst.msk [vmem:[#allocation2 + $0x48] sm:$0xff] %vm1112, %v1078
      %1123 = vst.msk [vmem:[#allocation2 + $0x50] sm:$0xff] %vm1112, %v1079
      %1124 = vst.msk [vmem:[#allocation2 + $0x58] sm:$0xff] %vm1112, %v1080
      %1125 = vst.msk [vmem:[#allocation2 + $0x60] sm:$0xff] %vm1112, %v1081
      %1126 = vst.msk [vmem:[#allocation2 + $0x68] sm:$0xff] %vm1112, %v1082
      %1127 = vst.msk [vmem:[#allocation2 + $0x70] sm:$0xff] %vm1112, %v1083
      %1128 = vst.msk [vmem:[#allocation2 + $0x78] sm:$0xff] %vm1112, %v1084
      %1129 = vst.msk [vmem:[#allocation2 + $0x80] sm:$0xff] %vm1112, %v1085
      %1130 = vst.msk [vmem:[#allocation2 + $0x88] sm:$0xff] %vm1112, %v1086
      %1131 = vst.msk [vmem:[#allocation2 + $0x90] sm:$0xff] %vm1112, %v1087
      %1132 = vst.msk [vmem:[#allocation2 + $0x98] sm:$0xff] %vm1112, %v1088
      %1133 = vst.msk [vmem:[#allocation2 + $0xa0] sm:$0xff] %vm1112, %v1089
      %1134 = vst.msk [vmem:[#allocation2 + $0xa8] sm:$0xff] %vm1112, %v1090
      %1135 = vst.msk [vmem:[#allocation2 + $0xb0] sm:$0xff] %vm1112, %v1091
      %1136 = vst.msk [vmem:[#allocation2 + $0xb8] sm:$0xff] %vm1112, %v1092
      %1137 = vst.msk [vmem:[#allocation2 + $0xc0] sm:$0xff] %vm1112, %v1093
      %1138 = vst.msk [vmem:[#allocation2 + $0xc8] sm:$0xff] %vm1112, %v1094
      %1139 = vst.msk [vmem:[#allocation2 + $0xd0] sm:$0xff] %vm1112, %v1095
      %1140 = vst.msk [vmem:[#allocation2 + $0xd8] sm:$0xff] %vm1112, %v1096
      %1141 = vst.msk [vmem:[#allocation2 + $0xe0] sm:$0xff] %vm1112, %v1097
      %1142 = vst.msk [vmem:[#allocation2 + $0xe8] sm:$0xff] %vm1112, %v1098
      %1143 = vst.msk [vmem:[#allocation2 + $0xf0] sm:$0xff] %vm1112, %v1099
      %1144 = vst.msk [vmem:[#allocation2 + $0xf8] sm:$0xff] %vm1112, %v1100
      %1145 = vst.msk [vmem:[#allocation2 + $0x100] sm:$0xff] %vm1112, %v1101
      %1146 = vst.msk [vmem:[#allocation2 + $0x108] sm:$0xff] %vm1112, %v1102
      %1147 = vst.msk [vmem:[#allocation2 + $0x110] sm:$0xff] %vm1112, %v1103
      %1148 = vst.msk [vmem:[#allocation2 + $0x118] sm:$0xff] %vm1112, %v1104
      %1149 = vst.msk [vmem:[#allocation2 + $0x120] sm:$0xff] %vm1112, %v1105
      %1150 = vst.msk [vmem:[#allocation2 + $0x128] sm:$0xff] %vm1112, %v1106
      %1151 = vst.msk [vmem:[#allocation2 + $0x130] sm:$0xff] %vm1112, %v1107
      %1152 = vst.msk [vmem:[#allocation2 + $0x138] sm:$0xff] %vm1112, %v1108
      %1153 = vst.msk [vmem:[#allocation2 + $0x140] sm:$0xff] %vm1112, %v1109
      %1154 = vst.msk [vmem:[#allocation2 + $0x148] sm:$0xff] %vm1112, %v1110
      %vm1155 = vcmask 29696
      %1156 = vst.msk [vmem:[#allocation2 + $0x150] sm:$0x3f] %vm1155, %v1111
      %v1157 = vld [vmem:[#allocation2] sm:$0xff]
      %v1158 = vld [vmem:[#allocation2 + $0x8] sm:$0xff]
      %v1159 = vld [vmem:[#allocation2 + $0x10] sm:$0xff]
      %v1160 = vld [vmem:[#allocation2 + $0x18] sm:$0xff]
      %v1161 = vld [vmem:[#allocation2 + $0x20] sm:$0xff]
      %v1162 = vld [vmem:[#allocation2 + $0x28] sm:$0xff]
      %v1163 = vld [vmem:[#allocation2 + $0x30] sm:$0xff]
      %v1164 = vld [vmem:[#allocation2 + $0x38] sm:$0xff]
      %v1165 = vld [vmem:[#allocation2 + $0x40] sm:$0xff]
      %v1166 = vld [vmem:[#allocation2 + $0x48] sm:$0xff]
      %v1167 = vld [vmem:[#allocation2 + $0x50] sm:$0xff]
      %v1168 = vld [vmem:[#allocation2 + $0x58] sm:$0xff]
      %v1169 = vld [vmem:[#allocation2 + $0x60] sm:$0xff]
      %v1170 = vld [vmem:[#allocation2 + $0x68] sm:$0xff]
      %v1171 = vld [vmem:[#allocation2 + $0x70] sm:$0xff]
      %v1172 = vld [vmem:[#allocation2 + $0x78] sm:$0xff]
      %v1173 = vld [vmem:[#allocation2 + $0x80] sm:$0xff]
      %v1174 = vld [vmem:[#allocation2 + $0x88] sm:$0xff]
      %v1175 = vld [vmem:[#allocation2 + $0x90] sm:$0xff]
      %v1176 = vld [vmem:[#allocation2 + $0x98] sm:$0xff]
      %v1177 = vld [vmem:[#allocation2 + $0xa0] sm:$0xff]
      %v1178 = vld [vmem:[#allocation2 + $0xa8] sm:$0xff]
      %v1179 = vld [vmem:[#allocation2 + $0xb0] sm:$0xff]
      %v1180 = vld [vmem:[#allocation2 + $0xb8] sm:$0xff]
      %v1181 = vld [vmem:[#allocation2 + $0xc0] sm:$0xff]
      %v1182 = vld [vmem:[#allocation2 + $0xc8] sm:$0xff]
      %v1183 = vld [vmem:[#allocation2 + $0xd0] sm:$0xff]
      %v1184 = vld [vmem:[#allocation2 + $0xd8] sm:$0xff]
      %v1185 = vld [vmem:[#allocation2 + $0xe0] sm:$0xff]
      %v1186 = vld [vmem:[#allocation2 + $0xe8] sm:$0xff]
      %v1187 = vld [vmem:[#allocation2 + $0xf0] sm:$0xff]
      %v1188 = vld [vmem:[#allocation2 + $0xf8] sm:$0xff]
      %v1189 = vld [vmem:[#allocation2 + $0x100] sm:$0xff]
      %v1190 = vld [vmem:[#allocation2 + $0x108] sm:$0xff]
      %v1191 = vld [vmem:[#allocation2 + $0x110] sm:$0xff]
      %v1192 = vld [vmem:[#allocation2 + $0x118] sm:$0xff]
      %v1193 = vld [vmem:[%s4] sm:$0xf]
      %v1194 = vld [vmem:[#allocation2 + $0x1] sm:$0xff]
      %v1195 = vld [vmem:[#allocation2 + $0x9] sm:$0xff]
      %v1196 = vld [vmem:[#allocation2 + $0x11] sm:$0xff]
      %v1197 = vld [vmem:[#allocation2 + $0x19] sm:$0xff]
      %v1198 = vld [vmem:[#allocation2 + $0x21] sm:$0xff]
      %v1199 = vld [vmem:[#allocation2 + $0x29] sm:$0xff]
      %v1200 = vld [vmem:[#allocation2 + $0x31] sm:$0xff]
      %v1201 = vld [vmem:[#allocation2 + $0x39] sm:$0xff]
      %v1202 = vld [vmem:[#allocation2 + $0x41] sm:$0xff]
      %v1203 = vld [vmem:[#allocation2 + $0x49] sm:$0xff]
      %v1204 = vld [vmem:[#allocation2 + $0x51] sm:$0xff]
      %v1205 = vld [vmem:[#allocation2 + $0x59] sm:$0xff]
      %v1206 = vld [vmem:[#allocation2 + $0x61] sm:$0xff]
      %v1207 = vld [vmem:[#allocation2 + $0x69] sm:$0xff]
      %v1208 = vld [vmem:[#allocation2 + $0x71] sm:$0xff]
      %v1209 = vld [vmem:[#allocation2 + $0x79] sm:$0xff]
      %v1210 = vld [vmem:[#allocation2 + $0x81] sm:$0xff]
      %v1211 = vld [vmem:[#allocation2 + $0x89] sm:$0xff]
      %v1212 = vld [vmem:[#allocation2 + $0x91] sm:$0xff]
      %v1213 = vld [vmem:[#allocation2 + $0x99] sm:$0xff]
      %v1214 = vld [vmem:[#allocation2 + $0xa1] sm:$0xff]
      %v1215 = vld [vmem:[#allocation2 + $0xa9] sm:$0xff]
      %v1216 = vld [vmem:[#allocation2 + $0xb1] sm:$0xff]
      %v1217 = vld [vmem:[#allocation2 + $0xb9] sm:$0xff]
      %v1218 = vld [vmem:[#allocation2 + $0xc1] sm:$0xff]
      %v1219 = vld [vmem:[#allocation2 + $0xc9] sm:$0xff]
      %v1220 = vld [vmem:[#allocation2 + $0xd1] sm:$0xff]
      %v1221 = vld [vmem:[#allocation2 + $0xd9] sm:$0xff]
      %v1222 = vld [vmem:[#allocation2 + $0xe1] sm:$0xff]
      %v1223 = vld [vmem:[#allocation2 + $0xe9] sm:$0xff]
      %v1224 = vld [vmem:[#allocation2 + $0xf1] sm:$0xff]
      %v1225 = vld [vmem:[#allocation2 + $0xf9] sm:$0xff]
      %v1226 = vld [vmem:[#allocation2 + $0x101] sm:$0xff]
      %v1227 = vld [vmem:[#allocation2 + $0x109] sm:$0xff]
      %v1228 = vld [vmem:[#allocation2 + $0x111] sm:$0xff]
      %v1229 = vld [vmem:[#allocation2 + $0x119] sm:$0xff]
      %s1230 = scalar_lea.vmem %s4, 4
      %v1231 = vld [vmem:[%s1230] sm:$0xf]
      %v1233 = vsel %vm1112, %v1194, 0
      %v1236 = vsel %vm1112, %v1195, 0
      %v1239 = vsel %vm1112, %v1196, 0
      %v1242 = vsel %vm1112, %v1197, 0
      %v1245 = vsel %vm1112, %v1198, 0
      %v1248 = vsel %vm1112, %v1199, 0
      %v1251 = vsel %vm1112, %v1200, 0
      %v1254 = vsel %vm1112, %v1201, 0
      %v1257 = vsel %vm1112, %v1202, 0
      %v1260 = vsel %vm1112, %v1203, 0
      %v1263 = vsel %vm1112, %v1204, 0
      %v1266 = vsel %vm1112, %v1205, 0
      %v1269 = vsel %vm1112, %v1206, 0
      %v1272 = vsel %vm1112, %v1207, 0
      %v1275 = vsel %vm1112, %v1208, 0
      %v1278 = vsel %vm1112, %v1209, 0
      %v1281 = vsel %vm1112, %v1210, 0
      %v1284 = vsel %vm1112, %v1211, 0
      %v1287 = vsel %vm1112, %v1212, 0
      %v1290 = vsel %vm1112, %v1213, 0
      %v1293 = vsel %vm1112, %v1214, 0
      %v1296 = vsel %vm1112, %v1215, 0
      %v1299 = vsel %vm1112, %v1216, 0
      %v1302 = vsel %vm1112, %v1217, 0
      %v1305 = vsel %vm1112, %v1218, 0
      %v1308 = vsel %vm1112, %v1219, 0
      %v1311 = vsel %vm1112, %v1220, 0
      %v1314 = vsel %vm1112, %v1221, 0
      %v1317 = vsel %vm1112, %v1222, 0
      %v1320 = vsel %vm1112, %v1223, 0
      %v1323 = vsel %vm1112, %v1224, 0
      %v1326 = vsel %vm1112, %v1225, 0
      %v1329 = vsel %vm1112, %v1226, 0
      %v1332 = vsel %vm1112, %v1227, 0
      %v1335 = vsel %vm1112, %v1228, 0
      %v1338 = vsel %vm1112, %v1229, 0
      %vm1340 = vcmask 1043456
      %v1342 = vsel %vm1340, %v1231, 0
      %1344 = vmatprep.subr.mxu0 0.0
      %1345 = vmatpush1.msra.mxu0 %v1342
      %1346 = vmatprep.subr.mxu0 0.0
      %1347 = vmatpush1.msra.mxu0 0.0
      %1348 = vmatprep.subr.mxu0 0.0
      %1349 = vmatpush1.msra.mxu0 0.0
      %1350 = vmatprep.subr.mxu0 0.0
      %1351 = vmatpush1.msra.mxu0 0.0
      %1352 = vmatprep.subr.mxu0 0.0
      %1353 = vmatpush1.msra.mxu0 0.0
      %1354 = vmatprep.subr.mxu0 0.0
      %1355 = vmatpush1.msra.mxu0 0.0
      %1356 = vmatprep.subr.mxu0 0.0
      %1357 = vmatpush1.msra.mxu0 0.0
      %1358 = vmatprep.subr.mxu0 0.0
      %1359 = vmatpush1.msra.mxu0 0.0
      %1360 = vmatprep.subr.mxu0 0.0
      %1361 = vmatpush1.msra.mxu0 0.0
      %1362 = vmatprep.subr.mxu0 0.0
      %1363 = vmatpush1.msra.mxu0 0.0
      %1364 = vmatprep.subr.mxu0 0.0
      %1365 = vmatpush1.msra.mxu0 0.0
      %1366 = vmatprep.subr.mxu0 0.0
      %1367 = vmatpush1.msra.mxu0 0.0
      %1368 = vmatprep.subr.mxu0 0.0
      %1369 = vmatpush1.msra.mxu0 0.0
      %1370 = vmatprep.subr.mxu0 0.0
      %1371 = vmatpush1.msra.mxu0 0.0
      %1372 = vmatprep.subr.mxu0 0.0
      %1373 = vmatpush1.msra.mxu0 0.0
      %1374 = vmatprep.subr.mxu0 0.0
      %1375 = vmatpush1.msra.mxu0 0.0
      %1376 = vmatprep.subr.mxu0 0.0
      %1377 = vmatpush1.msra.mxu0 0.0
      %1378 = vmatprep.subr.mxu0 0.0
      %1379 = vmatpush1.msra.mxu0 0.0
      %1380 = vmatprep.subr.mxu0 0.0
      %1381 = vmatpush1.msra.mxu0 0.0
      %1382 = vmatprep.subr.mxu0 0.0
      %1383 = vmatpush1.msra.mxu0 0.0
      %1384 = vmatprep.subr.mxu0 0.0
      %1385 = vmatpush1.msra.mxu0 0.0
      %1386 = vmatprep.subr.mxu0 0.0
      %1387 = vmatpush1.msra.mxu0 0.0
      %1388 = vmatprep.subr.mxu0 0.0
      %1389 = vmatpush1.msra.mxu0 0.0
      %1390 = vmatprep.subr.mxu0 0.0
      %1391 = vmatpush1.msra.mxu0 0.0
      %1392 = vmatprep.subr.mxu0 0.0
      %1393 = vmatpush1.msra.mxu0 0.0
      %1394 = vmatprep.subr.mxu0 0.0
      %1395 = vmatpush1.msra.mxu0 0.0
      %1396 = vmatprep.subr.mxu0 0.0
      %1397 = vmatpush1.msra.mxu0 0.0
      %1398 = vmatprep.subr.mxu0 0.0
      %1399 = vmatpush1.msra.mxu0 0.0
      %1400 = vmatprep.subr.mxu0 0.0
      %1401 = vmatpush1.msra.mxu0 0.0
      %1402 = vmatprep.subr.mxu0 0.0
      %1403 = vmatpush1.msra.mxu0 0.0
      %1404 = vmatprep.subr.mxu0 0.0
      %1405 = vmatpush1.msra.mxu0 0.0
      %1406 = vmatprep.subr.mxu0 0.0
      %1407 = vmatpush1.msra.mxu0 0.0
      %1408 = vmatprep.mubr.f32.mxu0 0.0
      %1409 = vmatmul.mubr.f32.gmra.mrb[0].mxu0 %v1233
      %v1410 = vpop.f32.mrb[0].mxu0
      %v1411 = vadd.f32 0.0, %v1410
      %v1412 = vpop.f32.mrb[0].mxu0
      %1413 = vmatprep.mubr.f32.mxu0 0.0
      %1414 = vmatmul.mubr.f32.gmra.mrb[0].mxu0 %v1236
      %v1415 = vpop.f32.mrb[0].mxu0
      %v1416 = vadd.f32 0.0, %v1415
      %v1417 = vpop.f32.mrb[0].mxu0
      %1418 = vmatprep.mubr.f32.mxu0 0.0
      %1419 = vmatmul.mubr.f32.gmra.mrb[0].mxu0 %v1239
      %v1420 = vpop.f32.mrb[0].mxu0
      %v1421 = vadd.f32 0.0, %v1420
      %v1422 = vpop.f32.mrb[0].mxu0
      %1423 = vmatprep.mubr.f32.mxu0 0.0
      %1424 = vmatmul.mubr.f32.gmra.mrb[0].mxu0 %v1242
      %v1425 = vpop.f32.mrb[0].mxu0
      %v1426 = vadd.f32 0.0, %v1425
      %v1427 = vpop.f32.mrb[0].mxu0
      %1428 = vmatprep.mubr.f32.mxu0 0.0
      %1429 = vmatmul.mubr.f32.gmra.mrb[0].mxu0 %v1245
      %v1430 = vpop.f32.mrb[0].mxu0
      %v1431 = vadd.f32 0.0, %v1430
      %v1432 = vpop.f32.mrb[0].mxu0
      %1433 = vmatprep.mubr.f32.mxu0 0.0
      %1434 = vmatmul.mubr.f32.gmra.mrb[0].mxu0 %v1248
      %v1435 = vpop.f32.mrb[0].mxu0
      %v1436 = vadd.f32 0.0, %v1435
      %v1437 = vpop.f32.mrb[0].mxu0
      %1438 = vmatprep.mubr.f32.mxu0 0.0
      %1439 = vmatmul.mubr.f32.gmra.mrb[0].mxu0 %v1251
      %v1440 = vpop.f32.mrb[0].mxu0
      %v1441 = vadd.f32 0.0, %v1440
      %v1442 = vpop.f32.mrb[0].mxu0
      %1443 = vmatprep.mubr.f32.mxu0 0.0
      %1444 = vmatmul.mubr.f32.gmra.mrb[0].mxu0 %v1254
      %v1445 = vpop.f32.mrb[0].mxu0
      %v1446 = vadd.f32 0.0, %v1445
      %v1447 = vpop.f32.mrb[0].mxu0
      %1448 = vmatprep.mubr.f32.mxu0 0.0
      %1449 = vmatmul.mubr.f32.gmra.mrb[0].mxu0 %v1257
      %v1450 = vpop.f32.mrb[0].mxu0
      %v1451 = vadd.f32 0.0, %v1450
      %v1452 = vpop.f32.mrb[0].mxu0
      %1453 = vmatprep.mubr.f32.mxu0 0.0
      %1454 = vmatmul.mubr.f32.gmra.mrb[0].mxu0 %v1260
      %v1455 = vpop.f32.mrb[0].mxu0
      %v1456 = vadd.f32 0.0, %v1455
      %v1457 = vpop.f32.mrb[0].mxu0
      %1458 = vmatprep.mubr.f32.mxu0 0.0
      %1459 = vmatmul.mubr.f32.gmra.mrb[0].mxu0 %v1263
      %v1460 = vpop.f32.mrb[0].mxu0
      %v1461 = vadd.f32 0.0, %v1460
      %v1462 = vpop.f32.mrb[0].mxu0
      %1463 = vmatprep.mubr.f32.mxu0 0.0
      %1464 = vmatmul.mubr.f32.gmra.mrb[0].mxu0 %v1266
      %v1465 = vpop.f32.mrb[0].mxu0
      %v1466 = vadd.f32 0.0, %v1465
      %v1467 = vpop.f32.mrb[0].mxu0
      %1468 = vmatprep.mubr.f32.mxu0 0.0
      %1469 = vmatmul.mubr.f32.gmra.mrb[0].mxu0 %v1269
      %v1470 = vpop.f32.mrb[0].mxu0
      %v1471 = vadd.f32 0.0, %v1470
      %v1472 = vpop.f32.mrb[0].mxu0
      %1473 = vmatprep.mubr.f32.mxu0 0.0
      %1474 = vmatmul.mubr.f32.gmra.mrb[0].mxu0 %v1272
      %v1475 = vpop.f32.mrb[0].mxu0
      %v1476 = vadd.f32 0.0, %v1475
      %v1477 = vpop.f32.mrb[0].mxu0
      %1478 = vmatprep.mubr.f32.mxu0 0.0
      %1479 = vmatmul.mubr.f32.gmra.mrb[0].mxu0 %v1275
      %v1480 = vpop.f32.mrb[0].mxu0
      %v1481 = vadd.f32 0.0, %v1480
      %v1482 = vpop.f32.mrb[0].mxu0
      %1483 = vmatprep.mubr.f32.mxu0 0.0
      %1484 = vmatmul.mubr.f32.gmra.mrb[0].mxu0 %v1278
      %v1485 = vpop.f32.mrb[0].mxu0
      %v1486 = vadd.f32 0.0, %v1485
      %v1487 = vpop.f32.mrb[0].mxu0
      %1488 = vmatprep.mubr.f32.mxu0 0.0
      %1489 = vmatmul.mubr.f32.gmra.mrb[0].mxu0 %v1281
      %v1490 = vpop.f32.mrb[0].mxu0
      %v1491 = vadd.f32 0.0, %v1490
      %v1492 = vpop.f32.mrb[0].mxu0
      %1493 = vmatprep.mubr.f32.mxu0 0.0
      %1494 = vmatmul.mubr.f32.gmra.mrb[0].mxu0 %v1284
      %v1495 = vpop.f32.mrb[0].mxu0
      %v1496 = vadd.f32 0.0, %v1495
      %v1497 = vpop.f32.mrb[0].mxu0
      %1498 = vmatprep.mubr.f32.mxu0 0.0
      %1499 = vmatmul.mubr.f32.gmra.mrb[0].mxu0 %v1287
      %v1500 = vpop.f32.mrb[0].mxu0
      %v1501 = vadd.f32 0.0, %v1500
      %v1502 = vpop.f32.mrb[0].mxu0
      %1503 = vmatprep.mubr.f32.mxu0 0.0
      %1504 = vmatmul.mubr.f32.gmra.mrb[0].mxu0 %v1290
      %v1505 = vpop.f32.mrb[0].mxu0
      %v1506 = vadd.f32 0.0, %v1505
      %v1507 = vpop.f32.mrb[0].mxu0
      %1508 = vmatprep.mubr.f32.mxu0 0.0
      %1509 = vmatmul.mubr.f32.gmra.mrb[0].mxu0 %v1293
      %v1510 = vpop.f32.mrb[0].mxu0
      %v1511 = vadd.f32 0.0, %v1510
      %v1512 = vpop.f32.mrb[0].mxu0
      %1513 = vmatprep.mubr.f32.mxu0 0.0
      %1514 = vmatmul.mubr.f32.gmra.mrb[0].mxu0 %v1296
      %v1515 = vpop.f32.mrb[0].mxu0
      %v1516 = vadd.f32 0.0, %v1515
      %v1517 = vpop.f32.mrb[0].mxu0
      %1518 = vmatprep.mubr.f32.mxu0 0.0
      %1519 = vmatmul.mubr.f32.gmra.mrb[0].mxu0 %v1299
      %v1520 = vpop.f32.mrb[0].mxu0
      %v1521 = vadd.f32 0.0, %v1520
      %v1522 = vpop.f32.mrb[0].mxu0
      %1523 = vmatprep.mubr.f32.mxu0 0.0
      %1524 = vmatmul.mubr.f32.gmra.mrb[0].mxu0 %v1302
      %v1525 = vpop.f32.mrb[0].mxu0
      %v1526 = vadd.f32 0.0, %v1525
      %v1527 = vpop.f32.mrb[0].mxu0
      %1528 = vmatprep.mubr.f32.mxu0 0.0
      %1529 = vmatmul.mubr.f32.gmra.mrb[0].mxu0 %v1305
      %v1530 = vpop.f32.mrb[0].mxu0
      %v1531 = vadd.f32 0.0, %v1530
      %v1532 = vpop.f32.mrb[0].mxu0
      %1533 = vmatprep.mubr.f32.mxu0 0.0
      %1534 = vmatmul.mubr.f32.gmra.mrb[0].mxu0 %v1308
      %v1535 = vpop.f32.mrb[0].mxu0
      %v1536 = vadd.f32 0.0, %v1535
      %v1537 = vpop.f32.mrb[0].mxu0
      %1538 = vmatprep.mubr.f32.mxu0 0.0
      %1539 = vmatmul.mubr.f32.gmra.mrb[0].mxu0 %v1311
      %v1540 = vpop.f32.mrb[0].mxu0
      %v1541 = vadd.f32 0.0, %v1540
      %v1542 = vpop.f32.mrb[0].mxu0
      %1543 = vmatprep.mubr.f32.mxu0 0.0
      %1544 = vmatmul.mubr.f32.gmra.mrb[0].mxu0 %v1314
      %v1545 = vpop.f32.mrb[0].mxu0
      %v1546 = vadd.f32 0.0, %v1545
      %v1547 = vpop.f32.mrb[0].mxu0
      %1548 = vmatprep.mubr.f32.mxu0 0.0
      %1549 = vmatmul.mubr.f32.gmra.mrb[0].mxu0 %v1317
      %v1550 = vpop.f32.mrb[0].mxu0
      %v1551 = vadd.f32 0.0, %v1550
      %v1552 = vpop.f32.mrb[0].mxu0
      %1553 = vmatprep.mubr.f32.mxu0 0.0
      %1554 = vmatmul.mubr.f32.gmra.mrb[0].mxu0 %v1320
      %v1555 = vpop.f32.mrb[0].mxu0
      %v1556 = vadd.f32 0.0, %v1555
      %v1557 = vpop.f32.mrb[0].mxu0
      %1558 = vmatprep.mubr.f32.mxu0 0.0
      %1559 = vmatmul.mubr.f32.gmra.mrb[0].mxu0 %v1323
      %v1560 = vpop.f32.mrb[0].mxu0
      %v1561 = vadd.f32 0.0, %v1560
      %v1562 = vpop.f32.mrb[0].mxu0
      %1563 = vmatprep.mubr.f32.mxu0 0.0
      %1564 = vmatmul.mubr.f32.gmra.mrb[0].mxu0 %v1326
      %v1565 = vpop.f32.mrb[0].mxu0
      %v1566 = vadd.f32 0.0, %v1565
      %v1567 = vpop.f32.mrb[0].mxu0
      %1568 = vmatprep.mubr.f32.mxu0 0.0
      %1569 = vmatmul.mubr.f32.gmra.mrb[0].mxu0 %v1329
      %v1570 = vpop.f32.mrb[0].mxu0
      %v1571 = vadd.f32 0.0, %v1570
      %v1572 = vpop.f32.mrb[0].mxu0
      %1573 = vmatprep.mubr.f32.mxu0 0.0
      %1574 = vmatmul.mubr.f32.gmra.mrb[0].mxu0 %v1332
      %v1575 = vpop.f32.mrb[0].mxu0
      %v1576 = vadd.f32 0.0, %v1575
      %v1577 = vpop.f32.mrb[0].mxu0
      %1578 = vmatprep.mubr.f32.mxu0 0.0
      %1579 = vmatmul.mubr.f32.gmra.mrb[0].mxu0 %v1335
      %v1580 = vpop.f32.mrb[0].mxu0
      %v1581 = vadd.f32 0.0, %v1580
      %v1582 = vpop.f32.mrb[0].mxu0
      %1583 = vmatprep.mubr.f32.mxu0 0.0
      %1584 = vmatmul.mubr.f32.gmra.mrb[0].mxu0 %v1338
      %v1585 = vpop.f32.mrb[0].mxu0
      %v1586 = vadd.f32 0.0, %v1585
      %v1587 = vpop.f32.mrb[0].mxu0
      %1588 = vdwg.mxu0
      %v1590 = vsel %vm1112, %v1157, 0
      %v1593 = vsel %vm1112, %v1158, 0
      %v1596 = vsel %vm1112, %v1159, 0
      %v1599 = vsel %vm1112, %v1160, 0
      %v1602 = vsel %vm1112, %v1161, 0
      %v1605 = vsel %vm1112, %v1162, 0
      %v1608 = vsel %vm1112, %v1163, 0
      %v1611 = vsel %vm1112, %v1164, 0
      %v1614 = vsel %vm1112, %v1165, 0
      %v1617 = vsel %vm1112, %v1166, 0
      %v1620 = vsel %vm1112, %v1167, 0
      %v1623 = vsel %vm1112, %v1168, 0
      %v1626 = vsel %vm1112, %v1169, 0
      %v1629 = vsel %vm1112, %v1170, 0
      %v1632 = vsel %vm1112, %v1171, 0
      %v1635 = vsel %vm1112, %v1172, 0
      %v1638 = vsel %vm1112, %v1173, 0
      %v1641 = vsel %vm1112, %v1174, 0
      %v1644 = vsel %vm1112, %v1175, 0
      %v1647 = vsel %vm1112, %v1176, 0
      %v1650 = vsel %vm1112, %v1177, 0
      %v1653 = vsel %vm1112, %v1178, 0
      %v1656 = vsel %vm1112, %v1179, 0
      %v1659 = vsel %vm1112, %v1180, 0
      %v1662 = vsel %vm1112, %v1181, 0
      %v1665 = vsel %vm1112, %v1182, 0
      %v1668 = vsel %vm1112, %v1183, 0
      %v1671 = vsel %vm1112, %v1184, 0
      %v1674 = vsel %vm1112, %v1185, 0
      %v1677 = vsel %vm1112, %v1186, 0
      %v1680 = vsel %vm1112, %v1187, 0
      %v1683 = vsel %vm1112, %v1188, 0
      %v1686 = vsel %vm1112, %v1189, 0
      %v1689 = vsel %vm1112, %v1190, 0
      %v1692 = vsel %vm1112, %v1191, 0
      %v1695 = vsel %vm1112, %v1192, 0
      %v1698 = vsel %vm1340, %v1193, 0
      %1700 = vmatprep.subr.mxu0 0.0
      %1701 = vmatpush1.msra.mxu0 %v1698
      %1702 = vmatprep.subr.mxu0 0.0
      %1703 = vmatpush1.msra.mxu0 0.0
      %1704 = vmatprep.subr.mxu0 0.0
      %1705 = vmatpush1.msra.mxu0 0.0
      %1706 = vmatprep.subr.mxu0 0.0
      %1707 = vmatpush1.msra.mxu0 0.0
      %1708 = vmatprep.subr.mxu0 0.0
      %1709 = vmatpush1.msra.mxu0 0.0
      %1710 = vmatprep.subr.mxu0 0.0
      %1711 = vmatpush1.msra.mxu0 0.0
      %1712 = vmatprep.subr.mxu0 0.0
      %1713 = vmatpush1.msra.mxu0 0.0
      %1714 = vmatprep.subr.mxu0 0.0
      %1715 = vmatpush1.msra.mxu0 0.0
      %1716 = vmatprep.subr.mxu0 0.0
      %1717 = vmatpush1.msra.mxu0 0.0
      %1718 = vmatprep.subr.mxu0 0.0
      %1719 = vmatpush1.msra.mxu0 0.0
      %1720 = vmatprep.subr.mxu0 0.0
      %1721 = vmatpush1.msra.mxu0 0.0
      %1722 = vmatprep.subr.mxu0 0.0
      %1723 = vmatpush1.msra.mxu0 0.0
      %1724 = vmatprep.subr.mxu0 0.0
      %1725 = vmatpush1.msra.mxu0 0.0
      %1726 = vmatprep.subr.mxu0 0.0
      %1727 = vmatpush1.msra.mxu0 0.0
      %1728 = vmatprep.subr.mxu0 0.0
      %1729 = vmatpush1.msra.mxu0 0.0
      %1730 = vmatprep.subr.mxu0 0.0
      %1731 = vmatpush1.msra.mxu0 0.0
      %1732 = vmatprep.subr.mxu0 0.0
      %1733 = vmatpush1.msra.mxu0 0.0
      %1734 = vmatprep.subr.mxu0 0.0
      %1735 = vmatpush1.msra.mxu0 0.0
      %1736 = vmatprep.subr.mxu0 0.0
      %1737 = vmatpush1.msra.mxu0 0.0
      %1738 = vmatprep.subr.mxu0 0.0
      %1739 = vmatpush1.msra.mxu0 0.0
      %1740 = vmatprep.subr.mxu0 0.0
      %1741 = vmatpush1.msra.mxu0 0.0
      %1742 = vmatprep.subr.mxu0 0.0
      %1743 = vmatpush1.msra.mxu0 0.0
      %1744 = vmatprep.subr.mxu0 0.0
      %1745 = vmatpush1.msra.mxu0 0.0
      %1746 = vmatprep.subr.mxu0 0.0
      %1747 = vmatpush1.msra.mxu0 0.0
      %1748 = vmatprep.subr.mxu0 0.0
      %1749 = vmatpush1.msra.mxu0 0.0
      %1750 = vmatprep.subr.mxu0 0.0
      %1751 = vmatpush1.msra.mxu0 0.0
      %1752 = vmatprep.subr.mxu0 0.0
      %1753 = vmatpush1.msra.mxu0 0.0
      %1754 = vmatprep.subr.mxu0 0.0
      %1755 = vmatpush1.msra.mxu0 0.0
      %1756 = vmatprep.subr.mxu0 0.0
      %1757 = vmatpush1.msra.mxu0 0.0
      %1758 = vmatprep.subr.mxu0 0.0
      %1759 = vmatpush1.msra.mxu0 0.0
      %1760 = vmatprep.subr.mxu0 0.0
      %1761 = vmatpush1.msra.mxu0 0.0
      %1762 = vmatprep.subr.mxu0 0.0
      %1763 = vmatpush1.msra.mxu0 0.0
      %1764 = vmatprep.mubr.f32.mxu0 0.0
      %1765 = vmatmul.mubr.f32.gmra.mrb[0].mxu0 %v1590
      %v1766 = vpop.f32.mrb[0].mxu0
      %v1767 = vadd.f32 %v1411, %v1766
      %v1768 = vpop.f32.mrb[0].mxu0
      %1769 = vmatprep.mubr.f32.mxu0 0.0
      %1770 = vmatmul.mubr.f32.gmra.mrb[0].mxu0 %v1593
      %v1771 = vpop.f32.mrb[0].mxu0
      %v1772 = vadd.f32 %v1416, %v1771
      %v1773 = vpop.f32.mrb[0].mxu0
      %1774 = vmatprep.mubr.f32.mxu0 0.0
      %1775 = vmatmul.mubr.f32.gmra.mrb[0].mxu0 %v1596
      %v1776 = vpop.f32.mrb[0].mxu0
      %v1777 = vadd.f32 %v1421, %v1776
      %v1778 = vpop.f32.mrb[0].mxu0
      %1779 = vmatprep.mubr.f32.mxu0 0.0
      %1780 = vmatmul.mubr.f32.gmra.mrb[0].mxu0 %v1599
      %v1781 = vpop.f32.mrb[0].mxu0
      %v1782 = vadd.f32 %v1426, %v1781
      %v1783 = vpop.f32.mrb[0].mxu0
      %1784 = vmatprep.mubr.f32.mxu0 0.0
      %1785 = vmatmul.mubr.f32.gmra.mrb[0].mxu0 %v1602
      %v1786 = vpop.f32.mrb[0].mxu0
      %v1787 = vadd.f32 %v1431, %v1786
      %v1788 = vpop.f32.mrb[0].mxu0
      %1789 = vmatprep.mubr.f32.mxu0 0.0
      %1790 = vmatmul.mubr.f32.gmra.mrb[0].mxu0 %v1605
      %v1791 = vpop.f32.mrb[0].mxu0
      %v1792 = vadd.f32 %v1436, %v1791
      %v1793 = vpop.f32.mrb[0].mxu0
      %1794 = vmatprep.mubr.f32.mxu0 0.0
      %1795 = vmatmul.mubr.f32.gmra.mrb[0].mxu0 %v1608
      %v1796 = vpop.f32.mrb[0].mxu0
      %v1797 = vadd.f32 %v1441, %v1796
      %v1798 = vpop.f32.mrb[0].mxu0
      %1799 = vmatprep.mubr.f32.mxu0 0.0
      %1800 = vmatmul.mubr.f32.gmra.mrb[0].mxu0 %v1611
      %v1801 = vpop.f32.mrb[0].mxu0
      %v1802 = vadd.f32 %v1446, %v1801
      %v1803 = vpop.f32.mrb[0].mxu0
      %1804 = vmatprep.mubr.f32.mxu0 0.0
      %1805 = vmatmul.mubr.f32.gmra.mrb[0].mxu0 %v1614
      %v1806 = vpop.f32.mrb[0].mxu0
      %v1807 = vadd.f32 %v1451, %v1806
      %v1808 = vpop.f32.mrb[0].mxu0
      %1809 = vmatprep.mubr.f32.mxu0 0.0
      %1810 = vmatmul.mubr.f32.gmra.mrb[0].mxu0 %v1617
      %v1811 = vpop.f32.mrb[0].mxu0
      %v1812 = vadd.f32 %v1456, %v1811
      %v1813 = vpop.f32.mrb[0].mxu0
      %1814 = vmatprep.mubr.f32.mxu0 0.0
      %1815 = vmatmul.mubr.f32.gmra.mrb[0].mxu0 %v1620
      %v1816 = vpop.f32.mrb[0].mxu0
      %v1817 = vadd.f32 %v1461, %v1816
      %v1818 = vpop.f32.mrb[0].mxu0
      %1819 = vmatprep.mubr.f32.mxu0 0.0
      %1820 = vmatmul.mubr.f32.gmra.mrb[0].mxu0 %v1623
      %v1821 = vpop.f32.mrb[0].mxu0
      %v1822 = vadd.f32 %v1466, %v1821
      %v1823 = vpop.f32.mrb[0].mxu0
      %1824 = vmatprep.mubr.f32.mxu0 0.0
      %1825 = vmatmul.mubr.f32.gmra.mrb[0].mxu0 %v1626
      %v1826 = vpop.f32.mrb[0].mxu0
      %v1827 = vadd.f32 %v1471, %v1826
      %v1828 = vpop.f32.mrb[0].mxu0
      %1829 = vmatprep.mubr.f32.mxu0 0.0
      %1830 = vmatmul.mubr.f32.gmra.mrb[0].mxu0 %v1629
      %v1831 = vpop.f32.mrb[0].mxu0
      %v1832 = vadd.f32 %v1476, %v1831
      %v1833 = vpop.f32.mrb[0].mxu0
      %1834 = vmatprep.mubr.f32.mxu0 0.0
      %1835 = vmatmul.mubr.f32.gmra.mrb[0].mxu0 %v1632
      %v1836 = vpop.f32.mrb[0].mxu0
      %v1837 = vadd.f32 %v1481, %v1836
      %v1838 = vpop.f32.mrb[0].mxu0
      %1839 = vmatprep.mubr.f32.mxu0 0.0
      %1840 = vmatmul.mubr.f32.gmra.mrb[0].mxu0 %v1635
      %v1841 = vpop.f32.mrb[0].mxu0
      %v1842 = vadd.f32 %v1486, %v1841
      %v1843 = vpop.f32.mrb[0].mxu0
      %1844 = vmatprep.mubr.f32.mxu0 0.0
      %1845 = vmatmul.mubr.f32.gmra.mrb[0].mxu0 %v1638
      %v1846 = vpop.f32.mrb[0].mxu0
      %v1847 = vadd.f32 %v1491, %v1846
      %v1848 = vpop.f32.mrb[0].mxu0
      %1849 = vmatprep.mubr.f32.mxu0 0.0
      %1850 = vmatmul.mubr.f32.gmra.mrb[0].mxu0 %v1641
      %v1851 = vpop.f32.mrb[0].mxu0
      %v1852 = vadd.f32 %v1496, %v1851
      %v1853 = vpop.f32.mrb[0].mxu0
      %1854 = vmatprep.mubr.f32.mxu0 0.0
      %1855 = vmatmul.mubr.f32.gmra.mrb[0].mxu0 %v1644
      %v1856 = vpop.f32.mrb[0].mxu0
      %v1857 = vadd.f32 %v1501, %v1856
      %v1858 = vpop.f32.mrb[0].mxu0
      %1859 = vmatprep.mubr.f32.mxu0 0.0
      %1860 = vmatmul.mubr.f32.gmra.mrb[0].mxu0 %v1647
      %v1861 = vpop.f32.mrb[0].mxu0
      %v1862 = vadd.f32 %v1506, %v1861
      %v1863 = vpop.f32.mrb[0].mxu0
      %1864 = vmatprep.mubr.f32.mxu0 0.0
      %1865 = vmatmul.mubr.f32.gmra.mrb[0].mxu0 %v1650
      %v1866 = vpop.f32.mrb[0].mxu0
      %v1867 = vadd.f32 %v1511, %v1866
      %v1868 = vpop.f32.mrb[0].mxu0
      %1869 = vmatprep.mubr.f32.mxu0 0.0
      %1870 = vmatmul.mubr.f32.gmra.mrb[0].mxu0 %v1653
      %v1871 = vpop.f32.mrb[0].mxu0
      %v1872 = vadd.f32 %v1516, %v1871
      %v1873 = vpop.f32.mrb[0].mxu0
      %1874 = vmatprep.mubr.f32.mxu0 0.0
      %1875 = vmatmul.mubr.f32.gmra.mrb[0].mxu0 %v1656
      %v1876 = vpop.f32.mrb[0].mxu0
      %v1877 = vadd.f32 %v1521, %v1876
      %v1878 = vpop.f32.mrb[0].mxu0
      %1879 = vmatprep.mubr.f32.mxu0 0.0
      %1880 = vmatmul.mubr.f32.gmra.mrb[0].mxu0 %v1659
      %v1881 = vpop.f32.mrb[0].mxu0
      %v1882 = vadd.f32 %v1526, %v1881
      %v1883 = vpop.f32.mrb[0].mxu0
      %1884 = vmatprep.mubr.f32.mxu0 0.0
      %1885 = vmatmul.mubr.f32.gmra.mrb[0].mxu0 %v1662
      %v1886 = vpop.f32.mrb[0].mxu0
      %v1887 = vadd.f32 %v1531, %v1886
      %v1888 = vpop.f32.mrb[0].mxu0
      %1889 = vmatprep.mubr.f32.mxu0 0.0
      %1890 = vmatmul.mubr.f32.gmra.mrb[0].mxu0 %v1665
      %v1891 = vpop.f32.mrb[0].mxu0
      %v1892 = vadd.f32 %v1536, %v1891
      %v1893 = vpop.f32.mrb[0].mxu0
      %1894 = vmatprep.mubr.f32.mxu0 0.0
      %1895 = vmatmul.mubr.f32.gmra.mrb[0].mxu0 %v1668
      %v1896 = vpop.f32.mrb[0].mxu0
      %v1897 = vadd.f32 %v1541, %v1896
      %v1898 = vpop.f32.mrb[0].mxu0
      %1899 = vmatprep.mubr.f32.mxu0 0.0
      %1900 = vmatmul.mubr.f32.gmra.mrb[0].mxu0 %v1671
      %v1901 = vpop.f32.mrb[0].mxu0
      %v1902 = vadd.f32 %v1546, %v1901
      %v1903 = vpop.f32.mrb[0].mxu0
      %1904 = vmatprep.mubr.f32.mxu0 0.0
      %1905 = vmatmul.mubr.f32.gmra.mrb[0].mxu0 %v1674
      %v1906 = vpop.f32.mrb[0].mxu0
      %v1907 = vadd.f32 %v1551, %v1906
      %v1908 = vpop.f32.mrb[0].mxu0
      %1909 = vmatprep.mubr.f32.mxu0 0.0
      %1910 = vmatmul.mubr.f32.gmra.mrb[0].mxu0 %v1677
      %v1911 = vpop.f32.mrb[0].mxu0
      %v1912 = vadd.f32 %v1556, %v1911
      %v1913 = vpop.f32.mrb[0].mxu0
      %1914 = vmatprep.mubr.f32.mxu0 0.0
      %1915 = vmatmul.mubr.f32.gmra.mrb[0].mxu0 %v1680
      %v1916 = vpop.f32.mrb[0].mxu0
      %v1917 = vadd.f32 %v1561, %v1916
      %v1918 = vpop.f32.mrb[0].mxu0
      %1919 = vmatprep.mubr.f32.mxu0 0.0
      %1920 = vmatmul.mubr.f32.gmra.mrb[0].mxu0 %v1683
      %v1921 = vpop.f32.mrb[0].mxu0
      %v1922 = vadd.f32 %v1566, %v1921
      %v1923 = vpop.f32.mrb[0].mxu0
      %1924 = vmatprep.mubr.f32.mxu0 0.0
      %1925 = vmatmul.mubr.f32.gmra.mrb[0].mxu0 %v1686
      %v1926 = vpop.f32.mrb[0].mxu0
      %v1927 = vadd.f32 %v1571, %v1926
      %v1928 = vpop.f32.mrb[0].mxu0
      %1929 = vmatprep.mubr.f32.mxu0 0.0
      %1930 = vmatmul.mubr.f32.gmra.mrb[0].mxu0 %v1689
      %v1931 = vpop.f32.mrb[0].mxu0
      %v1932 = vadd.f32 %v1576, %v1931
      %v1933 = vpop.f32.mrb[0].mxu0
      %1934 = vmatprep.mubr.f32.mxu0 0.0
      %1935 = vmatmul.mubr.f32.gmra.mrb[0].mxu0 %v1692
      %v1936 = vpop.f32.mrb[0].mxu0
      %v1937 = vadd.f32 %v1581, %v1936
      %v1938 = vpop.f32.mrb[0].mxu0
      %1939 = vmatprep.mubr.f32.mxu0 0.0
      %1940 = vmatmul.mubr.f32.gmra.mrb[0].mxu0 %v1695
      %v1941 = vpop.f32.mrb[0].mxu0
      %v1942 = vadd.f32 %v1586, %v1941
      %v1943 = vpop.f32.mrb[0].mxu0
      %1944 = vdwg.mxu0
      %v1945 = vld [vmem:[#allocation2 + $0x2] sm:$0xff]
      %v1946 = vld [vmem:[#allocation2 + $0xa] sm:$0xff]
      %v1947 = vld [vmem:[#allocation2 + $0x12] sm:$0xff]
      %v1948 = vld [vmem:[#allocation2 + $0x1a] sm:$0xff]
      %v1949 = vld [vmem:[#allocation2 + $0x22] sm:$0xff]
      %v1950 = vld [vmem:[#allocation2 + $0x2a] sm:$0xff]
      %v1951 = vld [vmem:[#allocation2 + $0x32] sm:$0xff]
      %v1952 = vld [vmem:[#allocation2 + $0x3a] sm:$0xff]
      %v1953 = vld [vmem:[#allocation2 + $0x42] sm:$0xff]
      %v1954 = vld [vmem:[#allocation2 + $0x4a] sm:$0xff]
      %v1955 = vld [vmem:[#allocation2 + $0x52] sm:$0xff]
      %v1956 = vld [vmem:[#allocation2 + $0x5a] sm:$0xff]
      %v1957 = vld [vmem:[#allocation2 + $0x62] sm:$0xff]
      %v1958 = vld [vmem:[#allocation2 + $0x6a] sm:$0xff]
      %v1959 = vld [vmem:[#allocation2 + $0x72] sm:$0xff]
      %v1960 = vld [vmem:[#allocation2 + $0x7a] sm:$0xff]
      %v1961 = vld [vmem:[#allocation2 + $0x82] sm:$0xff]
      %v1962 = vld [vmem:[#allocation2 + $0x8a] sm:$0xff]
      %v1963 = vld [vmem:[#allocation2 + $0x92] sm:$0xff]
      %v1964 = vld [vmem:[#allocation2 + $0x9a] sm:$0xff]
      %v1965 = vld [vmem:[#allocation2 + $0xa2] sm:$0xff]
      %v1966 = vld [vmem:[#allocation2 + $0xaa] sm:$0xff]
      %v1967 = vld [vmem:[#allocation2 + $0xb2] sm:$0xff]
      %v1968 = vld [vmem:[#allocation2 + $0xba] sm:$0xff]
      %v1969 = vld [vmem:[#allocation2 + $0xc2] sm:$0xff]
      %v1970 = vld [vmem:[#allocation2 + $0xca] sm:$0xff]
      %v1971 = vld [vmem:[#allocation2 + $0xd2] sm:$0xff]
      %v1972 = vld [vmem:[#allocation2 + $0xda] sm:$0xff]
      %v1973 = vld [vmem:[#allocation2 + $0xe2] sm:$0xff]
      %v1974 = vld [vmem:[#allocation2 + $0xea] sm:$0xff]
      %v1975 = vld [vmem:[#allocation2 + $0xf2] sm:$0xff]
      %v1976 = vld [vmem:[#allocation2 + $0xfa] sm:$0xff]
      %v1977 = vld [vmem:[#allocation2 + $0x102] sm:$0xff]
      %v1978 = vld [vmem:[#allocation2 + $0x10a] sm:$0xff]
      %v1979 = vld [vmem:[#allocation2 + $0x112] sm:$0xff]
      %v1980 = vld [vmem:[#allocation2 + $0x11a] sm:$0xff]
      %s1981 = scalar_lea.vmem %s4, 8
      %v1982 = vld [vmem:[%s1981] sm:$0xf]
      %v1984 = vsel %vm1112, %v1945, 0
      %v1987 = vsel %vm1112, %v1946, 0
      %v1990 = vsel %vm1112, %v1947, 0
      %v1993 = vsel %vm1112, %v1948, 0
      %v1996 = vsel %vm1112, %v1949, 0
      %v1999 = vsel %vm1112, %v1950, 0
      %v2002 = vsel %vm1112, %v1951, 0
      %v2005 = vsel %vm1112, %v1952, 0
      %v2008 = vsel %vm1112, %v1953, 0
      %v2011 = vsel %vm1112, %v1954, 0
      %v2014 = vsel %vm1112, %v1955, 0
      %v2017 = vsel %vm1112, %v1956, 0
      %v2020 = vsel %vm1112, %v1957, 0
      %v2023 = vsel %vm1112, %v1958, 0
      %v2026 = vsel %vm1112, %v1959, 0
      %v2029 = vsel %vm1112, %v1960, 0
      %v2032 = vsel %vm1112, %v1961, 0
      %v2035 = vsel %vm1112, %v1962, 0
      %v2038 = vsel %vm1112, %v1963, 0
      %v2041 = vsel %vm1112, %v1964, 0
      %v2044 = vsel %vm1112, %v1965, 0
      %v2047 = vsel %vm1112, %v1966, 0
      %v2050 = vsel %vm1112, %v1967, 0
      %v2053 = vsel %vm1112, %v1968, 0
      %v2056 = vsel %vm1112, %v1969, 0
      %v2059 = vsel %vm1112, %v1970, 0
      %v2062 = vsel %vm1112, %v1971, 0
      %v2065 = vsel %vm1112, %v1972, 0
      %v2068 = vsel %vm1112, %v1973, 0
      %v2071 = vsel %vm1112, %v1974, 0
      %v2074 = vsel %vm1112, %v1975, 0
      %v2077 = vsel %vm1112, %v1976, 0
      %v2080 = vsel %vm1112, %v1977, 0
      %v2083 = vsel %vm1112, %v1978, 0
      %v2086 = vsel %vm1112, %v1979, 0
      %v2089 = vsel %vm1112, %v1980, 0
      %v2092 = vsel %vm1340, %v1982, 0
      %2094 = vmatprep.subr.mxu0 0.0
      %2095 = vmatpush1.msra.mxu0 %v2092
      %2096 = vmatprep.subr.mxu0 0.0
      %2097 = vmatpush1.msra.mxu0 0.0
      %2098 = vmatprep.subr.mxu0 0.0
      %2099 = vmatpush1.msra.mxu0 0.0
      %2100 = vmatprep.subr.mxu0 0.0
      %2101 = vmatpush1.msra.mxu0 0.0
      %2102 = vmatprep.subr.mxu0 0.0
      %2103 = vmatpush1.msra.mxu0 0.0
      %2104 = vmatprep.subr.mxu0 0.0
      %2105 = vmatpush1.msra.mxu0 0.0
      %2106 = vmatprep.subr.mxu0 0.0
      %2107 = vmatpush1.msra.mxu0 0.0
      %2108 = vmatprep.subr.mxu0 0.0
      %2109 = vmatpush1.msra.mxu0 0.0
      %2110 = vmatprep.subr.mxu0 0.0
      %2111 = vmatpush1.msra.mxu0 0.0
      %2112 = vmatprep.subr.mxu0 0.0
      %2113 = vmatpush1.msra.mxu0 0.0
      %2114 = vmatprep.subr.mxu0 0.0
      %2115 = vmatpush1.msra.mxu0 0.0
      %2116 = vmatprep.subr.mxu0 0.0
      %2117 = vmatpush1.msra.mxu0 0.0
      %2118 = vmatprep.subr.mxu0 0.0
      %2119 = vmatpush1.msra.mxu0 0.0
      %2120 = vmatprep.subr.mxu0 0.0
      %2121 = vmatpush1.msra.mxu0 0.0
      %2122 = vmatprep.subr.mxu0 0.0
      %2123 = vmatpush1.msra.mxu0 0.0
      %2124 = vmatprep.subr.mxu0 0.0
      %2125 = vmatpush1.msra.mxu0 0.0
      %2126 = vmatprep.subr.mxu0 0.0
      %2127 = vmatpush1.msra.mxu0 0.0
      %2128 = vmatprep.subr.mxu0 0.0
      %2129 = vmatpush1.msra.mxu0 0.0
      %2130 = vmatprep.subr.mxu0 0.0
      %2131 = vmatpush1.msra.mxu0 0.0
      %2132 = vmatprep.subr.mxu0 0.0
      %2133 = vmatpush1.msra.mxu0 0.0
      %2134 = vmatprep.subr.mxu0 0.0
      %2135 = vmatpush1.msra.mxu0 0.0
      %2136 = vmatprep.subr.mxu0 0.0
      %2137 = vmatpush1.msra.mxu0 0.0
      %2138 = vmatprep.subr.mxu0 0.0
      %2139 = vmatpush1.msra.mxu0 0.0
      %2140 = vmatprep.subr.mxu0 0.0
      %2141 = vmatpush1.msra.mxu0 0.0
      %2142 = vmatprep.subr.mxu0 0.0
      %2143 = vmatpush1.msra.mxu0 0.0
      %2144 = vmatprep.subr.mxu0 0.0
      %2145 = vmatpush1.msra.mxu0 0.0
      %2146 = vmatprep.subr.mxu0 0.0
      %2147 = vmatpush1.msra.mxu0 0.0
      %2148 = vmatprep.subr.mxu0 0.0
      %2149 = vmatpush1.msra.mxu0 0.0
      %2150 = vmatprep.subr.mxu0 0.0
      %2151 = vmatpush1.msra.mxu0 0.0
      %2152 = vmatprep.subr.mxu0 0.0
      %2153 = vmatpush1.msra.mxu0 0.0
      %2154 = vmatprep.subr.mxu0 0.0
      %2155 = vmatpush1.msra.mxu0 0.0
      %2156 = vmatprep.subr.mxu0 0.0
      %2157 = vmatpush1.msra.mxu0 0.0
      %2158 = vmatprep.mubr.f32.mxu0 0.0
      %2159 = vmatmul.mubr.f32.gmra.mrb[0].mxu0 %v1984
      %v2160 = vpop.f32.mrb[0].mxu0
      %v2161 = vadd.f32 0.0, %v2160
      %v2162 = vpop.f32.mrb[0].mxu0
      %2163 = vmatprep.mubr.f32.mxu0 0.0
      %2164 = vmatmul.mubr.f32.gmra.mrb[0].mxu0 %v1987
      %v2165 = vpop.f32.mrb[0].mxu0
      %v2166 = vadd.f32 0.0, %v2165
      %v2167 = vpop.f32.mrb[0].mxu0
      %2168 = vmatprep.mubr.f32.mxu0 0.0
      %2169 = vmatmul.mubr.f32.gmra.mrb[0].mxu0 %v1990
      %v2170 = vpop.f32.mrb[0].mxu0
      %v2171 = vadd.f32 0.0, %v2170
      %v2172 = vpop.f32.mrb[0].mxu0
      %2173 = vmatprep.mubr.f32.mxu0 0.0
      %2174 = vmatmul.mubr.f32.gmra.mrb[0].mxu0 %v1993
      %v2175 = vpop.f32.mrb[0].mxu0
      %v2176 = vadd.f32 0.0, %v2175
      %v2177 = vpop.f32.mrb[0].mxu0
      %2178 = vmatprep.mubr.f32.mxu0 0.0
      %2179 = vmatmul.mubr.f32.gmra.mrb[0].mxu0 %v1996
      %v2180 = vpop.f32.mrb[0].mxu0
      %v2181 = vadd.f32 0.0, %v2180
      %v2182 = vpop.f32.mrb[0].mxu0
      %2183 = vmatprep.mubr.f32.mxu0 0.0
      %2184 = vmatmul.mubr.f32.gmra.mrb[0].mxu0 %v1999
      %v2185 = vpop.f32.mrb[0].mxu0
      %v2186 = vadd.f32 0.0, %v2185
      %v2187 = vpop.f32.mrb[0].mxu0
      %2188 = vmatprep.mubr.f32.mxu0 0.0
      %2189 = vmatmul.mubr.f32.gmra.mrb[0].mxu0 %v2002
      %v2190 = vpop.f32.mrb[0].mxu0
      %v2191 = vadd.f32 0.0, %v2190
      %v2192 = vpop.f32.mrb[0].mxu0
      %2193 = vmatprep.mubr.f32.mxu0 0.0
      %2194 = vmatmul.mubr.f32.gmra.mrb[0].mxu0 %v2005
      %v2195 = vpop.f32.mrb[0].mxu0
      %v2196 = vadd.f32 0.0, %v2195
      %v2197 = vpop.f32.mrb[0].mxu0
      %2198 = vmatprep.mubr.f32.mxu0 0.0
      %2199 = vmatmul.mubr.f32.gmra.mrb[0].mxu0 %v2008
      %v2200 = vpop.f32.mrb[0].mxu0
      %v2201 = vadd.f32 0.0, %v2200
      %v2202 = vpop.f32.mrb[0].mxu0
      %2203 = vmatprep.mubr.f32.mxu0 0.0
      %2204 = vmatmul.mubr.f32.gmra.mrb[0].mxu0 %v2011
      %v2205 = vpop.f32.mrb[0].mxu0
      %v2206 = vadd.f32 0.0, %v2205
      %v2207 = vpop.f32.mrb[0].mxu0
      %2208 = vmatprep.mubr.f32.mxu0 0.0
      %2209 = vmatmul.mubr.f32.gmra.mrb[0].mxu0 %v2014
      %v2210 = vpop.f32.mrb[0].mxu0
      %v2211 = vadd.f32 0.0, %v2210
      %v2212 = vpop.f32.mrb[0].mxu0
      %2213 = vmatprep.mubr.f32.mxu0 0.0
      %2214 = vmatmul.mubr.f32.gmra.mrb[0].mxu0 %v2017
      %v2215 = vpop.f32.mrb[0].mxu0
      %v2216 = vadd.f32 0.0, %v2215
      %v2217 = vpop.f32.mrb[0].mxu0
      %2218 = vmatprep.mubr.f32.mxu0 0.0
      %2219 = vmatmul.mubr.f32.gmra.mrb[0].mxu0 %v2020
      %v2220 = vpop.f32.mrb[0].mxu0
      %v2221 = vadd.f32 0.0, %v2220
      %v2222 = vpop.f32.mrb[0].mxu0
      %2223 = vmatprep.mubr.f32.mxu0 0.0
      %2224 = vmatmul.mubr.f32.gmra.mrb[0].mxu0 %v2023
      %v2225 = vpop.f32.mrb[0].mxu0
      %v2226 = vadd.f32 0.0, %v2225
      %v2227 = vpop.f32.mrb[0].mxu0
      %2228 = vmatprep.mubr.f32.mxu0 0.0
      %2229 = vmatmul.mubr.f32.gmra.mrb[0].mxu0 %v2026
      %v2230 = vpop.f32.mrb[0].mxu0
      %v2231 = vadd.f32 0.0, %v2230
      %v2232 = vpop.f32.mrb[0].mxu0
      %2233 = vmatprep.mubr.f32.mxu0 0.0
      %2234 = vmatmul.mubr.f32.gmra.mrb[0].mxu0 %v2029
      %v2235 = vpop.f32.mrb[0].mxu0
      %v2236 = vadd.f32 0.0, %v2235
      %v2237 = vpop.f32.mrb[0].mxu0
      %2238 = vmatprep.mubr.f32.mxu0 0.0
      %2239 = vmatmul.mubr.f32.gmra.mrb[0].mxu0 %v2032
      %v2240 = vpop.f32.mrb[0].mxu0
      %v2241 = vadd.f32 0.0, %v2240
      %v2242 = vpop.f32.mrb[0].mxu0
      %2243 = vmatprep.mubr.f32.mxu0 0.0
      %2244 = vmatmul.mubr.f32.gmra.mrb[0].mxu0 %v2035
      %v2245 = vpop.f32.mrb[0].mxu0
      %v2246 = vadd.f32 0.0, %v2245
      %v2247 = vpop.f32.mrb[0].mxu0
      %2248 = vmatprep.mubr.f32.mxu0 0.0
      %2249 = vmatmul.mubr.f32.gmra.mrb[0].mxu0 %v2038
      %v2250 = vpop.f32.mrb[0].mxu0
      %v2251 = vadd.f32 0.0, %v2250
      %v2252 = vpop.f32.mrb[0].mxu0
      %2253 = vmatprep.mubr.f32.mxu0 0.0
      %2254 = vmatmul.mubr.f32.gmra.mrb[0].mxu0 %v2041
      %v2255 = vpop.f32.mrb[0].mxu0
      %v2256 = vadd.f32 0.0, %v2255
      %v2257 = vpop.f32.mrb[0].mxu0
      %2258 = vmatprep.mubr.f32.mxu0 0.0
      %2259 = vmatmul.mubr.f32.gmra.mrb[0].mxu0 %v2044
      %v2260 = vpop.f32.mrb[0].mxu0
      %v2261 = vadd.f32 0.0, %v2260
      %v2262 = vpop.f32.mrb[0].mxu0
      %2263 = vmatprep.mubr.f32.mxu0 0.0
      %2264 = vmatmul.mubr.f32.gmra.mrb[0].mxu0 %v2047
      %v2265 = vpop.f32.mrb[0].mxu0
      %v2266 = vadd.f32 0.0, %v2265
      %v2267 = vpop.f32.mrb[0].mxu0
      %2268 = vmatprep.mubr.f32.mxu0 0.0
      %2269 = vmatmul.mubr.f32.gmra.mrb[0].mxu0 %v2050
      %v2270 = vpop.f32.mrb[0].mxu0
      %v2271 = vadd.f32 0.0, %v2270
      %v2272 = vpop.f32.mrb[0].mxu0
      %2273 = vmatprep.mubr.f32.mxu0 0.0
      %2274 = vmatmul.mubr.f32.gmra.mrb[0].mxu0 %v2053
      %v2275 = vpop.f32.mrb[0].mxu0
      %v2276 = vadd.f32 0.0, %v2275
      %v2277 = vpop.f32.mrb[0].mxu0
      %2278 = vmatprep.mubr.f32.mxu0 0.0
      %2279 = vmatmul.mubr.f32.gmra.mrb[0].mxu0 %v2056
      %v2280 = vpop.f32.mrb[0].mxu0
      %v2281 = vadd.f32 0.0, %v2280
      %v2282 = vpop.f32.mrb[0].mxu0
      %2283 = vmatprep.mubr.f32.mxu0 0.0
      %2284 = vmatmul.mubr.f32.gmra.mrb[0].mxu0 %v2059
      %v2285 = vpop.f32.mrb[0].mxu0
      %v2286 = vadd.f32 0.0, %v2285
      %v2287 = vpop.f32.mrb[0].mxu0
      %2288 = vmatprep.mubr.f32.mxu0 0.0
      %2289 = vmatmul.mubr.f32.gmra.mrb[0].mxu0 %v2062
      %v2290 = vpop.f32.mrb[0].mxu0
      %v2291 = vadd.f32 0.0, %v2290
      %v2292 = vpop.f32.mrb[0].mxu0
      %2293 = vmatprep.mubr.f32.mxu0 0.0
      %2294 = vmatmul.mubr.f32.gmra.mrb[0].mxu0 %v2065
      %v2295 = vpop.f32.mrb[0].mxu0
      %v2296 = vadd.f32 0.0, %v2295
      %v2297 = vpop.f32.mrb[0].mxu0
      %2298 = vmatprep.mubr.f32.mxu0 0.0
      %2299 = vmatmul.mubr.f32.gmra.mrb[0].mxu0 %v2068
      %v2300 = vpop.f32.mrb[0].mxu0
      %v2301 = vadd.f32 0.0, %v2300
      %v2302 = vpop.f32.mrb[0].mxu0
      %2303 = vmatprep.mubr.f32.mxu0 0.0
      %2304 = vmatmul.mubr.f32.gmra.mrb[0].mxu0 %v2071
      %v2305 = vpop.f32.mrb[0].mxu0
      %v2306 = vadd.f32 0.0, %v2305
      %v2307 = vpop.f32.mrb[0].mxu0
      %2308 = vmatprep.mubr.f32.mxu0 0.0
      %2309 = vmatmul.mubr.f32.gmra.mrb[0].mxu0 %v2074
      %v2310 = vpop.f32.mrb[0].mxu0
      %v2311 = vadd.f32 0.0, %v2310
      %v2312 = vpop.f32.mrb[0].mxu0
      %2313 = vmatprep.mubr.f32.mxu0 0.0
      %2314 = vmatmul.mubr.f32.gmra.mrb[0].mxu0 %v2077
      %v2315 = vpop.f32.mrb[0].mxu0
      %v2316 = vadd.f32 0.0, %v2315
      %v2317 = vpop.f32.mrb[0].mxu0
      %2318 = vmatprep.mubr.f32.mxu0 0.0
      %2319 = vmatmul.mubr.f32.gmra.mrb[0].mxu0 %v2080
      %v2320 = vpop.f32.mrb[0].mxu0
      %v2321 = vadd.f32 0.0, %v2320
      %v2322 = vpop.f32.mrb[0].mxu0
      %2323 = vmatprep.mubr.f32.mxu0 0.0
      %2324 = vmatmul.mubr.f32.gmra.mrb[0].mxu0 %v2083
      %v2325 = vpop.f32.mrb[0].mxu0
      %v2326 = vadd.f32 0.0, %v2325
      %v2327 = vpop.f32.mrb[0].mxu0
      %2328 = vmatprep.mubr.f32.mxu0 0.0
      %2329 = vmatmul.mubr.f32.gmra.mrb[0].mxu0 %v2086
      %v2330 = vpop.f32.mrb[0].mxu0
      %v2331 = vadd.f32 0.0, %v2330
      %v2332 = vpop.f32.mrb[0].mxu0
      %2333 = vmatprep.mubr.f32.mxu0 0.0
      %2334 = vmatmul.mubr.f32.gmra.mrb[0].mxu0 %v2089
      %v2335 = vpop.f32.mrb[0].mxu0
      %v2336 = vadd.f32 0.0, %v2335
      %v2337 = vpop.f32.mrb[0].mxu0
      %2338 = vdwg.mxu0
      %v2339 = vadd.f32 %v1767, %v2161
      %v2340 = vadd.f32 %v1772, %v2166
      %v2341 = vadd.f32 %v1777, %v2171
      %v2342 = vadd.f32 %v1782, %v2176
      %v2343 = vadd.f32 %v1787, %v2181
      %v2344 = vadd.f32 %v1792, %v2186
      %v2345 = vadd.f32 %v1797, %v2191
      %v2346 = vadd.f32 %v1802, %v2196
      %v2347 = vadd.f32 %v1807, %v2201
      %v2348 = vadd.f32 %v1812, %v2206
      %v2349 = vadd.f32 %v1817, %v2211
      %v2350 = vadd.f32 %v1822, %v2216
      %v2351 = vadd.f32 %v1827, %v2221
      %v2352 = vadd.f32 %v1832, %v2226
      %v2353 = vadd.f32 %v1837, %v2231
      %v2354 = vadd.f32 %v1842, %v2236
      %v2355 = vadd.f32 %v1847, %v2241
      %v2356 = vadd.f32 %v1852, %v2246
      %v2357 = vadd.f32 %v1857, %v2251
      %v2358 = vadd.f32 %v1862, %v2256
      %v2359 = vadd.f32 %v1867, %v2261
      %v2360 = vadd.f32 %v1872, %v2266
      %v2361 = vadd.f32 %v1877, %v2271
      %v2362 = vadd.f32 %v1882, %v2276
      %v2363 = vadd.f32 %v1887, %v2281
      %v2364 = vadd.f32 %v1892, %v2286
      %v2365 = vadd.f32 %v1897, %v2291
      %v2366 = vadd.f32 %v1902, %v2296
      %v2367 = vadd.f32 %v1907, %v2301
      %v2368 = vadd.f32 %v1912, %v2306
      %v2369 = vadd.f32 %v1917, %v2311
      %v2370 = vadd.f32 %v1922, %v2316
      %v2371 = vadd.f32 %v1927, %v2321
      %v2372 = vadd.f32 %v1932, %v2326
      %v2373 = vadd.f32 %v1937, %v2331
      %v2374 = vadd.f32 %v1942, %v2336
      %v2375 = vld [vmem:[#allocation2 + $0x12] sm:$0xff]
      %v2376 = vld [vmem:[#allocation2 + $0x1a] sm:$0xff]
      %v2377 = vld [vmem:[#allocation2 + $0x22] sm:$0xff]
      %v2378 = vld [vmem:[#allocation2 + $0x2a] sm:$0xff]
      %v2379 = vld [vmem:[#allocation2 + $0x32] sm:$0xff]
      %v2380 = vld [vmem:[#allocation2 + $0x3a] sm:$0xff]
      %v2381 = vld [vmem:[#allocation2 + $0x42] sm:$0xff]
      %v2382 = vld [vmem:[#allocation2 + $0x4a] sm:$0xff]
      %v2383 = vld [vmem:[#allocation2 + $0x52] sm:$0xff]
      %v2384 = vld [vmem:[#allocation2 + $0x5a] sm:$0xff]
      %v2385 = vld [vmem:[#allocation2 + $0x62] sm:$0xff]
      %v2386 = vld [vmem:[#allocation2 + $0x6a] sm:$0xff]
      %v2387 = vld [vmem:[#allocation2 + $0x72] sm:$0xff]
      %v2388 = vld [vmem:[#allocation2 + $0x7a] sm:$0xff]
      %v2389 = vld [vmem:[#allocation2 + $0x82] sm:$0xff]
      %v2390 = vld [vmem:[#allocation2 + $0x8a] sm:$0xff]
      %v2391 = vld [vmem:[#allocation2 + $0x92] sm:$0xff]
      %v2392 = vld [vmem:[#allocation2 + $0x9a] sm:$0xff]
      %v2393 = vld [vmem:[#allocation2 + $0xa2] sm:$0xff]
      %v2394 = vld [vmem:[#allocation2 + $0xaa] sm:$0xff]
      %v2395 = vld [vmem:[#allocation2 + $0xb2] sm:$0xff]
      %v2396 = vld [vmem:[#allocation2 + $0xba] sm:$0xff]
      %v2397 = vld [vmem:[#allocation2 + $0xc2] sm:$0xff]
      %v2398 = vld [vmem:[#allocation2 + $0xca] sm:$0xff]
      %v2399 = vld [vmem:[#allocation2 + $0xd2] sm:$0xff]
      %v2400 = vld [vmem:[#allocation2 + $0xda] sm:$0xff]
      %v2401 = vld [vmem:[#allocation2 + $0xe2] sm:$0xff]
      %v2402 = vld [vmem:[#allocation2 + $0xea] sm:$0xff]
      %v2403 = vld [vmem:[#allocation2 + $0xf2] sm:$0xff]
      %v2404 = vld [vmem:[#allocation2 + $0xfa] sm:$0xff]
      %v2405 = vld [vmem:[#allocation2 + $0x102] sm:$0xff]
      %v2406 = vld [vmem:[#allocation2 + $0x10a] sm:$0xff]
      %v2407 = vld [vmem:[#allocation2 + $0x112] sm:$0xff]
      %v2408 = vld [vmem:[#allocation2 + $0x11a] sm:$0xff]
      %v2409 = vld [vmem:[#allocation2 + $0x122] sm:$0xff]
      %v2410 = vld [vmem:[#allocation2 + $0x12a] sm:$0xff]
      %s2411 = scalar_lea.vmem %s4, 12
      %v2412 = vld [vmem:[%s2411] sm:$0xf]
      %v2414 = vsel %vm1112, %v2375, 0
      %v2417 = vsel %vm1112, %v2376, 0
      %v2420 = vsel %vm1112, %v2377, 0
      %v2423 = vsel %vm1112, %v2378, 0
      %v2426 = vsel %vm1112, %v2379, 0
      %v2429 = vsel %vm1112, %v2380, 0
      %v2432 = vsel %vm1112, %v2381, 0
      %v2435 = vsel %vm1112, %v2382, 0
      %v2438 = vsel %vm1112, %v2383, 0
      %v2441 = vsel %vm1112, %v2384, 0
      %v2444 = vsel %vm1112, %v2385, 0
      %v2447 = vsel %vm1112, %v2386, 0
      %v2450 = vsel %vm1112, %v2387, 0
      %v2453 = vsel %vm1112, %v2388, 0
      %v2456 = vsel %vm1112, %v2389, 0
      %v2459 = vsel %vm1112, %v2390, 0
      %v2462 = vsel %vm1112, %v2391, 0
      %v2465 = vsel %vm1112, %v2392, 0
      %v2468 = vsel %vm1112, %v2393, 0
      %v2471 = vsel %vm1112, %v2394, 0
      %v2474 = vsel %vm1112, %v2395, 0
      %v2477 = vsel %vm1112, %v2396, 0
      %v2480 = vsel %vm1112, %v2397, 0
      %v2483 = vsel %vm1112, %v2398, 0
      %v2486 = vsel %vm1112, %v2399, 0
      %v2489 = vsel %vm1112, %v2400, 0
      %v2492 = vsel %vm1112, %v2401, 0
      %v2495 = vsel %vm1112, %v2402, 0
      %v2498 = vsel %vm1112, %v2403, 0
      %v2501 = vsel %vm1112, %v2404, 0
      %v2504 = vsel %vm1112, %v2405, 0
      %v2507 = vsel %vm1112, %v2406, 0
      %v2510 = vsel %vm1112, %v2407, 0
      %v2513 = vsel %vm1112, %v2408, 0
      %v2516 = vsel %vm1112, %v2409, 0
      %v2519 = vsel %vm1112, %v2410, 0
      %v2522 = vsel %vm1340, %v2412, 0
      %2524 = vmatprep.subr.mxu0 0.0
      %2525 = vmatpush1.msra.mxu0 %v2522
      %2526 = vmatprep.subr.mxu0 0.0
      %2527 = vmatpush1.msra.mxu0 0.0
      %2528 = vmatprep.subr.mxu0 0.0
      %2529 = vmatpush1.msra.mxu0 0.0
      %2530 = vmatprep.subr.mxu0 0.0
      %2531 = vmatpush1.msra.mxu0 0.0
      %2532 = vmatprep.subr.mxu0 0.0
      %2533 = vmatpush1.msra.mxu0 0.0
      %2534 = vmatprep.subr.mxu0 0.0
      %2535 = vmatpush1.msra.mxu0 0.0
      %2536 = vmatprep.subr.mxu0 0.0
      %2537 = vmatpush1.msra.mxu0 0.0
      %2538 = vmatprep.subr.mxu0 0.0
      %2539 = vmatpush1.msra.mxu0 0.0
      %2540 = vmatprep.subr.mxu0 0.0
      %2541 = vmatpush1.msra.mxu0 0.0
      %2542 = vmatprep.subr.mxu0 0.0
      %2543 = vmatpush1.msra.mxu0 0.0
      %2544 = vmatprep.subr.mxu0 0.0
      %2545 = vmatpush1.msra.mxu0 0.0
      %2546 = vmatprep.subr.mxu0 0.0
      %2547 = vmatpush1.msra.mxu0 0.0
      %2548 = vmatprep.subr.mxu0 0.0
      %2549 = vmatpush1.msra.mxu0 0.0
      %2550 = vmatprep.subr.mxu0 0.0
      %2551 = vmatpush1.msra.mxu0 0.0
      %2552 = vmatprep.subr.mxu0 0.0
      %2553 = vmatpush1.msra.mxu0 0.0
      %2554 = vmatprep.subr.mxu0 0.0
      %2555 = vmatpush1.msra.mxu0 0.0
      %2556 = vmatprep.subr.mxu0 0.0
      %2557 = vmatpush1.msra.mxu0 0.0
      %2558 = vmatprep.subr.mxu0 0.0
      %2559 = vmatpush1.msra.mxu0 0.0
      %2560 = vmatprep.subr.mxu0 0.0
      %2561 = vmatpush1.msra.mxu0 0.0
      %2562 = vmatprep.subr.mxu0 0.0
      %2563 = vmatpush1.msra.mxu0 0.0
      %2564 = vmatprep.subr.mxu0 0.0
      %2565 = vmatpush1.msra.mxu0 0.0
      %2566 = vmatprep.subr.mxu0 0.0
      %2567 = vmatpush1.msra.mxu0 0.0
      %2568 = vmatprep.subr.mxu0 0.0
      %2569 = vmatpush1.msra.mxu0 0.0
      %2570 = vmatprep.subr.mxu0 0.0
      %2571 = vmatpush1.msra.mxu0 0.0
      %2572 = vmatprep.subr.mxu0 0.0
      %2573 = vmatpush1.msra.mxu0 0.0
      %2574 = vmatprep.subr.mxu0 0.0
      %2575 = vmatpush1.msra.mxu0 0.0
      %2576 = vmatprep.subr.mxu0 0.0
      %2577 = vmatpush1.msra.mxu0 0.0
      %2578 = vmatprep.subr.mxu0 0.0
      %2579 = vmatpush1.msra.mxu0 0.0
      %2580 = vmatprep.subr.mxu0 0.0
      %2581 = vmatpush1.msra.mxu0 0.0
      %2582 = vmatprep.subr.mxu0 0.0
      %2583 = vmatpush1.msra.mxu0 0.0
      %2584 = vmatprep.subr.mxu0 0.0
      %2585 = vmatpush1.msra.mxu0 0.0
      %2586 = vmatprep.subr.mxu0 0.0
      %2587 = vmatpush1.msra.mxu0 0.0
      %2588 = vmatprep.mubr.f32.mxu0 0.0
      %2589 = vmatmul.mubr.f32.gmra.mrb[0].mxu0 %v2414
      %v2590 = vpop.f32.mrb[0].mxu0
      %v2591 = vadd.f32 0.0, %v2590
      %v2592 = vpop.f32.mrb[0].mxu0
      %2593 = vmatprep.mubr.f32.mxu0 0.0
      %2594 = vmatmul.mubr.f32.gmra.mrb[0].mxu0 %v2417
      %v2595 = vpop.f32.mrb[0].mxu0
      %v2596 = vadd.f32 0.0, %v2595
      %v2597 = vpop.f32.mrb[0].mxu0
      %2598 = vmatprep.mubr.f32.mxu0 0.0
      %2599 = vmatmul.mubr.f32.gmra.mrb[0].mxu0 %v2420
      %v2600 = vpop.f32.mrb[0].mxu0
      %v2601 = vadd.f32 0.0, %v2600
      %v2602 = vpop.f32.mrb[0].mxu0
      %2603 = vmatprep.mubr.f32.mxu0 0.0
      %2604 = vmatmul.mubr.f32.gmra.mrb[0].mxu0 %v2423
      %v2605 = vpop.f32.mrb[0].mxu0
      %v2606 = vadd.f32 0.0, %v2605
      %v2607 = vpop.f32.mrb[0].mxu0
      %2608 = vmatprep.mubr.f32.mxu0 0.0
      %2609 = vmatmul.mubr.f32.gmra.mrb[0].mxu0 %v2426
      %v2610 = vpop.f32.mrb[0].mxu0
      %v2611 = vadd.f32 0.0, %v2610
      %v2612 = vpop.f32.mrb[0].mxu0
      %2613 = vmatprep.mubr.f32.mxu0 0.0
      %2614 = vmatmul.mubr.f32.gmra.mrb[0].mxu0 %v2429
      %v2615 = vpop.f32.mrb[0].mxu0
      %v2616 = vadd.f32 0.0, %v2615
      %v2617 = vpop.f32.mrb[0].mxu0
      %2618 = vmatprep.mubr.f32.mxu0 0.0
      %2619 = vmatmul.mubr.f32.gmra.mrb[0].mxu0 %v2432
      %v2620 = vpop.f32.mrb[0].mxu0
      %v2621 = vadd.f32 0.0, %v2620
      %v2622 = vpop.f32.mrb[0].mxu0
      %2623 = vmatprep.mubr.f32.mxu0 0.0
      %2624 = vmatmul.mubr.f32.gmra.mrb[0].mxu0 %v2435
      %v2625 = vpop.f32.mrb[0].mxu0
      %v2626 = vadd.f32 0.0, %v2625
      %v2627 = vpop.f32.mrb[0].mxu0
      %2628 = vmatprep.mubr.f32.mxu0 0.0
      %2629 = vmatmul.mubr.f32.gmra.mrb[0].mxu0 %v2438
      %v2630 = vpop.f32.mrb[0].mxu0
      %v2631 = vadd.f32 0.0, %v2630
      %v2632 = vpop.f32.mrb[0].mxu0
      %2633 = vmatprep.mubr.f32.mxu0 0.0
      %2634 = vmatmul.mubr.f32.gmra.mrb[0].mxu0 %v2441
      %v2635 = vpop.f32.mrb[0].mxu0
      %v2636 = vadd.f32 0.0, %v2635
      %v2637 = vpop.f32.mrb[0].mxu0
      %2638 = vmatprep.mubr.f32.mxu0 0.0
      %2639 = vmatmul.mubr.f32.gmra.mrb[0].mxu0 %v2444
      %v2640 = vpop.f32.mrb[0].mxu0
      %v2641 = vadd.f32 0.0, %v2640
      %v2642 = vpop.f32.mrb[0].mxu0
      %2643 = vmatprep.mubr.f32.mxu0 0.0
      %2644 = vmatmul.mubr.f32.gmra.mrb[0].mxu0 %v2447
      %v2645 = vpop.f32.mrb[0].mxu0
      %v2646 = vadd.f32 0.0, %v2645
      %v2647 = vpop.f32.mrb[0].mxu0
      %2648 = vmatprep.mubr.f32.mxu0 0.0
      %2649 = vmatmul.mubr.f32.gmra.mrb[0].mxu0 %v2450
      %v2650 = vpop.f32.mrb[0].mxu0
      %v2651 = vadd.f32 0.0, %v2650
      %v2652 = vpop.f32.mrb[0].mxu0
      %2653 = vmatprep.mubr.f32.mxu0 0.0
      %2654 = vmatmul.mubr.f32.gmra.mrb[0].mxu0 %v2453
      %v2655 = vpop.f32.mrb[0].mxu0
      %v2656 = vadd.f32 0.0, %v2655
      %v2657 = vpop.f32.mrb[0].mxu0
      %2658 = vmatprep.mubr.f32.mxu0 0.0
      %2659 = vmatmul.mubr.f32.gmra.mrb[0].mxu0 %v2456
      %v2660 = vpop.f32.mrb[0].mxu0
      %v2661 = vadd.f32 0.0, %v2660
      %v2662 = vpop.f32.mrb[0].mxu0
      %2663 = vmatprep.mubr.f32.mxu0 0.0
      %2664 = vmatmul.mubr.f32.gmra.mrb[0].mxu0 %v2459
      %v2665 = vpop.f32.mrb[0].mxu0
      %v2666 = vadd.f32 0.0, %v2665
      %v2667 = vpop.f32.mrb[0].mxu0
      %2668 = vmatprep.mubr.f32.mxu0 0.0
      %2669 = vmatmul.mubr.f32.gmra.mrb[0].mxu0 %v2462
      %v2670 = vpop.f32.mrb[0].mxu0
      %v2671 = vadd.f32 0.0, %v2670
      %v2672 = vpop.f32.mrb[0].mxu0
      %2673 = vmatprep.mubr.f32.mxu0 0.0
      %2674 = vmatmul.mubr.f32.gmra.mrb[0].mxu0 %v2465
      %v2675 = vpop.f32.mrb[0].mxu0
      %v2676 = vadd.f32 0.0, %v2675
      %v2677 = vpop.f32.mrb[0].mxu0
      %2678 = vmatprep.mubr.f32.mxu0 0.0
      %2679 = vmatmul.mubr.f32.gmra.mrb[0].mxu0 %v2468
      %v2680 = vpop.f32.mrb[0].mxu0
      %v2681 = vadd.f32 0.0, %v2680
      %v2682 = vpop.f32.mrb[0].mxu0
      %2683 = vmatprep.mubr.f32.mxu0 0.0
      %2684 = vmatmul.mubr.f32.gmra.mrb[0].mxu0 %v2471
      %v2685 = vpop.f32.mrb[0].mxu0
      %v2686 = vadd.f32 0.0, %v2685
      %v2687 = vpop.f32.mrb[0].mxu0
      %2688 = vmatprep.mubr.f32.mxu0 0.0
      %2689 = vmatmul.mubr.f32.gmra.mrb[0].mxu0 %v2474
      %v2690 = vpop.f32.mrb[0].mxu0
      %v2691 = vadd.f32 0.0, %v2690
      %v2692 = vpop.f32.mrb[0].mxu0
      %2693 = vmatprep.mubr.f32.mxu0 0.0
      %2694 = vmatmul.mubr.f32.gmra.mrb[0].mxu0 %v2477
      %v2695 = vpop.f32.mrb[0].mxu0
      %v2696 = vadd.f32 0.0, %v2695
      %v2697 = vpop.f32.mrb[0].mxu0
      %2698 = vmatprep.mubr.f32.mxu0 0.0
      %2699 = vmatmul.mubr.f32.gmra.mrb[0].mxu0 %v2480
      %v2700 = vpop.f32.mrb[0].mxu0
      %v2701 = vadd.f32 0.0, %v2700
      %v2702 = vpop.f32.mrb[0].mxu0
      %2703 = vmatprep.mubr.f32.mxu0 0.0
      %2704 = vmatmul.mubr.f32.gmra.mrb[0].mxu0 %v2483
      %v2705 = vpop.f32.mrb[0].mxu0
      %v2706 = vadd.f32 0.0, %v2705
      %v2707 = vpop.f32.mrb[0].mxu0
      %2708 = vmatprep.mubr.f32.mxu0 0.0
      %2709 = vmatmul.mubr.f32.gmra.mrb[0].mxu0 %v2486
      %v2710 = vpop.f32.mrb[0].mxu0
      %v2711 = vadd.f32 0.0, %v2710
      %v2712 = vpop.f32.mrb[0].mxu0
      %2713 = vmatprep.mubr.f32.mxu0 0.0
      %2714 = vmatmul.mubr.f32.gmra.mrb[0].mxu0 %v2489
      %v2715 = vpop.f32.mrb[0].mxu0
      %v2716 = vadd.f32 0.0, %v2715
      %v2717 = vpop.f32.mrb[0].mxu0
      %2718 = vmatprep.mubr.f32.mxu0 0.0
      %2719 = vmatmul.mubr.f32.gmra.mrb[0].mxu0 %v2492
      %v2720 = vpop.f32.mrb[0].mxu0
      %v2721 = vadd.f32 0.0, %v2720
      %v2722 = vpop.f32.mrb[0].mxu0
      %2723 = vmatprep.mubr.f32.mxu0 0.0
      %2724 = vmatmul.mubr.f32.gmra.mrb[0].mxu0 %v2495
      %v2725 = vpop.f32.mrb[0].mxu0
      %v2726 = vadd.f32 0.0, %v2725
      %v2727 = vpop.f32.mrb[0].mxu0
      %2728 = vmatprep.mubr.f32.mxu0 0.0
      %2729 = vmatmul.mubr.f32.gmra.mrb[0].mxu0 %v2498
      %v2730 = vpop.f32.mrb[0].mxu0
      %v2731 = vadd.f32 0.0, %v2730
      %v2732 = vpop.f32.mrb[0].mxu0
      %2733 = vmatprep.mubr.f32.mxu0 0.0
      %2734 = vmatmul.mubr.f32.gmra.mrb[0].mxu0 %v2501
      %v2735 = vpop.f32.mrb[0].mxu0
      %v2736 = vadd.f32 0.0, %v2735
      %v2737 = vpop.f32.mrb[0].mxu0
      %2738 = vmatprep.mubr.f32.mxu0 0.0
      %2739 = vmatmul.mubr.f32.gmra.mrb[0].mxu0 %v2504
      %v2740 = vpop.f32.mrb[0].mxu0
      %v2741 = vadd.f32 0.0, %v2740
      %v2742 = vpop.f32.mrb[0].mxu0
      %2743 = vmatprep.mubr.f32.mxu0 0.0
      %2744 = vmatmul.mubr.f32.gmra.mrb[0].mxu0 %v2507
      %v2745 = vpop.f32.mrb[0].mxu0
      %v2746 = vadd.f32 0.0, %v2745
      %v2747 = vpop.f32.mrb[0].mxu0
      %2748 = vmatprep.mubr.f32.mxu0 0.0
      %2749 = vmatmul.mubr.f32.gmra.mrb[0].mxu0 %v2510
      %v2750 = vpop.f32.mrb[0].mxu0
      %v2751 = vadd.f32 0.0, %v2750
      %v2752 = vpop.f32.mrb[0].mxu0
      %2753 = vmatprep.mubr.f32.mxu0 0.0
      %2754 = vmatmul.mubr.f32.gmra.mrb[0].mxu0 %v2513
      %v2755 = vpop.f32.mrb[0].mxu0
      %v2756 = vadd.f32 0.0, %v2755
      %v2757 = vpop.f32.mrb[0].mxu0
      %2758 = vmatprep.mubr.f32.mxu0 0.0
      %2759 = vmatmul.mubr.f32.gmra.mrb[0].mxu0 %v2516
      %v2760 = vpop.f32.mrb[0].mxu0
      %v2761 = vadd.f32 0.0, %v2760
      %v2762 = vpop.f32.mrb[0].mxu0
      %2763 = vmatprep.mubr.f32.mxu0 0.0
      %2764 = vmatmul.mubr.f32.gmra.mrb[0].mxu0 %v2519
      %v2765 = vpop.f32.mrb[0].mxu0
      %v2766 = vadd.f32 0.0, %v2765
      %v2767 = vpop.f32.mrb[0].mxu0
      %2768 = vdwg.mxu0
      %v2769 = vadd.f32 %v2339, %v2591
      %v2770 = vadd.f32 %v2340, %v2596
      %v2771 = vadd.f32 %v2341, %v2601
      %v2772 = vadd.f32 %v2342, %v2606
      %v2773 = vadd.f32 %v2343, %v2611
      %v2774 = vadd.f32 %v2344, %v2616
      %v2775 = vadd.f32 %v2345, %v2621
      %v2776 = vadd.f32 %v2346, %v2626
      %v2777 = vadd.f32 %v2347, %v2631
      %v2778 = vadd.f32 %v2348, %v2636
      %v2779 = vadd.f32 %v2349, %v2641
      %v2780 = vadd.f32 %v2350, %v2646
      %v2781 = vadd.f32 %v2351, %v2651
      %v2782 = vadd.f32 %v2352, %v2656
      %v2783 = vadd.f32 %v2353, %v2661
      %v2784 = vadd.f32 %v2354, %v2666
      %v2785 = vadd.f32 %v2355, %v2671
      %v2786 = vadd.f32 %v2356, %v2676
      %v2787 = vadd.f32 %v2357, %v2681
      %v2788 = vadd.f32 %v2358, %v2686
      %v2789 = vadd.f32 %v2359, %v2691
      %v2790 = vadd.f32 %v2360, %v2696
      %v2791 = vadd.f32 %v2361, %v2701
      %v2792 = vadd.f32 %v2362, %v2706
      %v2793 = vadd.f32 %v2363, %v2711
      %v2794 = vadd.f32 %v2364, %v2716
      %v2795 = vadd.f32 %v2365, %v2721
      %v2796 = vadd.f32 %v2366, %v2726
      %v2797 = vadd.f32 %v2367, %v2731
      %v2798 = vadd.f32 %v2368, %v2736
      %v2799 = vadd.f32 %v2369, %v2741
      %v2800 = vadd.f32 %v2370, %v2746
      %v2801 = vadd.f32 %v2371, %v2751
      %v2802 = vadd.f32 %v2372, %v2756
      %v2803 = vadd.f32 %v2373, %v2761
      %v2804 = vadd.f32 %v2374, %v2766
      %v2805 = vld [vmem:[#allocation2 + $0x13] sm:$0xff]
      %v2806 = vld [vmem:[#allocation2 + $0x1b] sm:$0xff]
      %v2807 = vld [vmem:[#allocation2 + $0x23] sm:$0xff]
      %v2808 = vld [vmem:[#allocation2 + $0x2b] sm:$0xff]
      %v2809 = vld [vmem:[#allocation2 + $0x33] sm:$0xff]
      %v2810 = vld [vmem:[#allocation2 + $0x3b] sm:$0xff]
      %v2811 = vld [vmem:[#allocation2 + $0x43] sm:$0xff]
      %v2812 = vld [vmem:[#allocation2 + $0x4b] sm:$0xff]
      %v2813 = vld [vmem:[#allocation2 + $0x53] sm:$0xff]
      %v2814 = vld [vmem:[#allocation2 + $0x5b] sm:$0xff]
      %v2815 = vld [vmem:[#allocation2 + $0x63] sm:$0xff]
      %v2816 = vld [vmem:[#allocation2 + $0x6b] sm:$0xff]
      %v2817 = vld [vmem:[#allocation2 + $0x73] sm:$0xff]
      %v2818 = vld [vmem:[#allocation2 + $0x7b] sm:$0xff]
      %v2819 = vld [vmem:[#allocation2 + $0x83] sm:$0xff]
      %v2820 = vld [vmem:[#allocation2 + $0x8b] sm:$0xff]
      %v2821 = vld [vmem:[#allocation2 + $0x93] sm:$0xff]
      %v2822 = vld [vmem:[#allocation2 + $0x9b] sm:$0xff]
      %v2823 = vld [vmem:[#allocation2 + $0xa3] sm:$0xff]
      %v2824 = vld [vmem:[#allocation2 + $0xab] sm:$0xff]
      %v2825 = vld [vmem:[#allocation2 + $0xb3] sm:$0xff]
      %v2826 = vld [vmem:[#allocation2 + $0xbb] sm:$0xff]
      %v2827 = vld [vmem:[#allocation2 + $0xc3] sm:$0xff]
      %v2828 = vld [vmem:[#allocation2 + $0xcb] sm:$0xff]
      %v2829 = vld [vmem:[#allocation2 + $0xd3] sm:$0xff]
      %v2830 = vld [vmem:[#allocation2 + $0xdb] sm:$0xff]
      %v2831 = vld [vmem:[#allocation2 + $0xe3] sm:$0xff]
      %v2832 = vld [vmem:[#allocation2 + $0xeb] sm:$0xff]
      %v2833 = vld [vmem:[#allocation2 + $0xf3] sm:$0xff]
      %v2834 = vld [vmem:[#allocation2 + $0xfb] sm:$0xff]
      %v2835 = vld [vmem:[#allocation2 + $0x103] sm:$0xff]
      %v2836 = vld [vmem:[#allocation2 + $0x10b] sm:$0xff]
      %v2837 = vld [vmem:[#allocation2 + $0x113] sm:$0xff]
      %v2838 = vld [vmem:[#allocation2 + $0x11b] sm:$0xff]
      %v2839 = vld [vmem:[#allocation2 + $0x123] sm:$0xff]
      %v2840 = vld [vmem:[#allocation2 + $0x12b] sm:$0xff]
      %s2841 = scalar_lea.vmem %s4, 16
      %v2842 = vld [vmem:[%s2841] sm:$0xf]
      %v2844 = vsel %vm1112, %v2805, 0
      %v2847 = vsel %vm1112, %v2806, 0
      %v2850 = vsel %vm1112, %v2807, 0
      %v2853 = vsel %vm1112, %v2808, 0
      %v2856 = vsel %vm1112, %v2809, 0
      %v2859 = vsel %vm1112, %v2810, 0
      %v2862 = vsel %vm1112, %v2811, 0
      %v2865 = vsel %vm1112, %v2812, 0
      %v2868 = vsel %vm1112, %v2813, 0
      %v2871 = vsel %vm1112, %v2814, 0
      %v2874 = vsel %vm1112, %v2815, 0
      %v2877 = vsel %vm1112, %v2816, 0
      %v2880 = vsel %vm1112, %v2817, 0
      %v2883 = vsel %vm1112, %v2818, 0
      %v2886 = vsel %vm1112, %v2819, 0
      %v2889 = vsel %vm1112, %v2820, 0
      %v2892 = vsel %vm1112, %v2821, 0
      %v2895 = vsel %vm1112, %v2822, 0
      %v2898 = vsel %vm1112, %v2823, 0
      %v2901 = vsel %vm1112, %v2824, 0
      %v2904 = vsel %vm1112, %v2825, 0
      %v2907 = vsel %vm1112, %v2826, 0
      %v2910 = vsel %vm1112, %v2827, 0
      %v2913 = vsel %vm1112, %v2828, 0
      %v2916 = vsel %vm1112, %v2829, 0
      %v2919 = vsel %vm1112, %v2830, 0
      %v2922 = vsel %vm1112, %v2831, 0
      %v2925 = vsel %vm1112, %v2832, 0
      %v2928 = vsel %vm1112, %v2833, 0
      %v2931 = vsel %vm1112, %v2834, 0
      %v2934 = vsel %vm1112, %v2835, 0
      %v2937 = vsel %vm1112, %v2836, 0
      %v2940 = vsel %vm1112, %v2837, 0
      %v2943 = vsel %vm1112, %v2838, 0
      %v2946 = vsel %vm1112, %v2839, 0
      %v2949 = vsel %vm1112, %v2840, 0
      %v2952 = vsel %vm1340, %v2842, 0
      %2954 = vmatprep.subr.mxu0 0.0
      %2955 = vmatpush1.msra.mxu0 %v2952
      %2956 = vmatprep.subr.mxu0 0.0
      %2957 = vmatpush1.msra.mxu0 0.0
      %2958 = vmatprep.subr.mxu0 0.0
      %2959 = vmatpush1.msra.mxu0 0.0
      %2960 = vmatprep.subr.mxu0 0.0
      %2961 = vmatpush1.msra.mxu0 0.0
      %2962 = vmatprep.subr.mxu0 0.0
      %2963 = vmatpush1.msra.mxu0 0.0
      %2964 = vmatprep.subr.mxu0 0.0
      %2965 = vmatpush1.msra.mxu0 0.0
      %2966 = vmatprep.subr.mxu0 0.0
      %2967 = vmatpush1.msra.mxu0 0.0
      %2968 = vmatprep.subr.mxu0 0.0
      %2969 = vmatpush1.msra.mxu0 0.0
      %2970 = vmatprep.subr.mxu0 0.0
      %2971 = vmatpush1.msra.mxu0 0.0
      %2972 = vmatprep.subr.mxu0 0.0
      %2973 = vmatpush1.msra.mxu0 0.0
      %2974 = vmatprep.subr.mxu0 0.0
      %2975 = vmatpush1.msra.mxu0 0.0
      %2976 = vmatprep.subr.mxu0 0.0
      %2977 = vmatpush1.msra.mxu0 0.0
      %2978 = vmatprep.subr.mxu0 0.0
      %2979 = vmatpush1.msra.mxu0 0.0
      %2980 = vmatprep.subr.mxu0 0.0
      %2981 = vmatpush1.msra.mxu0 0.0
      %2982 = vmatprep.subr.mxu0 0.0
      %2983 = vmatpush1.msra.mxu0 0.0
      %2984 = vmatprep.subr.mxu0 0.0
      %2985 = vmatpush1.msra.mxu0 0.0
      %2986 = vmatprep.subr.mxu0 0.0
      %2987 = vmatpush1.msra.mxu0 0.0
      %2988 = vmatprep.subr.mxu0 0.0
      %2989 = vmatpush1.msra.mxu0 0.0
      %2990 = vmatprep.subr.mxu0 0.0
      %2991 = vmatpush1.msra.mxu0 0.0
      %2992 = vmatprep.subr.mxu0 0.0
      %2993 = vmatpush1.msra.mxu0 0.0
      %2994 = vmatprep.subr.mxu0 0.0
      %2995 = vmatpush1.msra.mxu0 0.0
      %2996 = vmatprep.subr.mxu0 0.0
      %2997 = vmatpush1.msra.mxu0 0.0
      %2998 = vmatprep.subr.mxu0 0.0
      %2999 = vmatpush1.msra.mxu0 0.0
      %3000 = vmatprep.subr.mxu0 0.0
      %3001 = vmatpush1.msra.mxu0 0.0
      %3002 = vmatprep.subr.mxu0 0.0
      %3003 = vmatpush1.msra.mxu0 0.0
      %3004 = vmatprep.subr.mxu0 0.0
      %3005 = vmatpush1.msra.mxu0 0.0
      %3006 = vmatprep.subr.mxu0 0.0
      %3007 = vmatpush1.msra.mxu0 0.0
      %3008 = vmatprep.subr.mxu0 0.0
      %3009 = vmatpush1.msra.mxu0 0.0
      %3010 = vmatprep.subr.mxu0 0.0
      %3011 = vmatpush1.msra.mxu0 0.0
      %3012 = vmatprep.subr.mxu0 0.0
      %3013 = vmatpush1.msra.mxu0 0.0
      %3014 = vmatprep.subr.mxu0 0.0
      %3015 = vmatpush1.msra.mxu0 0.0
      %3016 = vmatprep.subr.mxu0 0.0
      %3017 = vmatpush1.msra.mxu0 0.0
      %3018 = vmatprep.mubr.f32.mxu0 0.0
      %3019 = vmatmul.mubr.f32.gmra.mrb[0].mxu0 %v2844
      %v3020 = vpop.f32.mrb[0].mxu0
      %v3021 = vadd.f32 0.0, %v3020
      %v3022 = vpop.f32.mrb[0].mxu0
      %3023 = vmatprep.mubr.f32.mxu0 0.0
      %3024 = vmatmul.mubr.f32.gmra.mrb[0].mxu0 %v2847
      %v3025 = vpop.f32.mrb[0].mxu0
      %v3026 = vadd.f32 0.0, %v3025
      %v3027 = vpop.f32.mrb[0].mxu0
      %3028 = vmatprep.mubr.f32.mxu0 0.0
      %3029 = vmatmul.mubr.f32.gmra.mrb[0].mxu0 %v2850
      %v3030 = vpop.f32.mrb[0].mxu0
      %v3031 = vadd.f32 0.0, %v3030
      %v3032 = vpop.f32.mrb[0].mxu0
      %3033 = vmatprep.mubr.f32.mxu0 0.0
      %3034 = vmatmul.mubr.f32.gmra.mrb[0].mxu0 %v2853
      %v3035 = vpop.f32.mrb[0].mxu0
      %v3036 = vadd.f32 0.0, %v3035
      %v3037 = vpop.f32.mrb[0].mxu0
      %3038 = vmatprep.mubr.f32.mxu0 0.0
      %3039 = vmatmul.mubr.f32.gmra.mrb[0].mxu0 %v2856
      %v3040 = vpop.f32.mrb[0].mxu0
      %v3041 = vadd.f32 0.0, %v3040
      %v3042 = vpop.f32.mrb[0].mxu0
      %3043 = vmatprep.mubr.f32.mxu0 0.0
      %3044 = vmatmul.mubr.f32.gmra.mrb[0].mxu0 %v2859
      %v3045 = vpop.f32.mrb[0].mxu0
      %v3046 = vadd.f32 0.0, %v3045
      %v3047 = vpop.f32.mrb[0].mxu0
      %3048 = vmatprep.mubr.f32.mxu0 0.0
      %3049 = vmatmul.mubr.f32.gmra.mrb[0].mxu0 %v2862
      %v3050 = vpop.f32.mrb[0].mxu0
      %v3051 = vadd.f32 0.0, %v3050
      %v3052 = vpop.f32.mrb[0].mxu0
      %3053 = vmatprep.mubr.f32.mxu0 0.0
      %3054 = vmatmul.mubr.f32.gmra.mrb[0].mxu0 %v2865
      %v3055 = vpop.f32.mrb[0].mxu0
      %v3056 = vadd.f32 0.0, %v3055
      %v3057 = vpop.f32.mrb[0].mxu0
      %3058 = vmatprep.mubr.f32.mxu0 0.0
      %3059 = vmatmul.mubr.f32.gmra.mrb[0].mxu0 %v2868
      %v3060 = vpop.f32.mrb[0].mxu0
      %v3061 = vadd.f32 0.0, %v3060
      %v3062 = vpop.f32.mrb[0].mxu0
      %3063 = vmatprep.mubr.f32.mxu0 0.0
      %3064 = vmatmul.mubr.f32.gmra.mrb[0].mxu0 %v2871
      %v3065 = vpop.f32.mrb[0].mxu0
      %v3066 = vadd.f32 0.0, %v3065
      %v3067 = vpop.f32.mrb[0].mxu0
      %3068 = vmatprep.mubr.f32.mxu0 0.0
      %3069 = vmatmul.mubr.f32.gmra.mrb[0].mxu0 %v2874
      %v3070 = vpop.f32.mrb[0].mxu0
      %v3071 = vadd.f32 0.0, %v3070
      %v3072 = vpop.f32.mrb[0].mxu0
      %3073 = vmatprep.mubr.f32.mxu0 0.0
      %3074 = vmatmul.mubr.f32.gmra.mrb[0].mxu0 %v2877
      %v3075 = vpop.f32.mrb[0].mxu0
      %v3076 = vadd.f32 0.0, %v3075
      %v3077 = vpop.f32.mrb[0].mxu0
      %3078 = vmatprep.mubr.f32.mxu0 0.0
      %3079 = vmatmul.mubr.f32.gmra.mrb[0].mxu0 %v2880
      %v3080 = vpop.f32.mrb[0].mxu0
      %v3081 = vadd.f32 0.0, %v3080
      %v3082 = vpop.f32.mrb[0].mxu0
      %3083 = vmatprep.mubr.f32.mxu0 0.0
      %3084 = vmatmul.mubr.f32.gmra.mrb[0].mxu0 %v2883
      %v3085 = vpop.f32.mrb[0].mxu0
      %v3086 = vadd.f32 0.0, %v3085
      %v3087 = vpop.f32.mrb[0].mxu0
      %3088 = vmatprep.mubr.f32.mxu0 0.0
      %3089 = vmatmul.mubr.f32.gmra.mrb[0].mxu0 %v2886
      %v3090 = vpop.f32.mrb[0].mxu0
      %v3091 = vadd.f32 0.0, %v3090
      %v3092 = vpop.f32.mrb[0].mxu0
      %3093 = vmatprep.mubr.f32.mxu0 0.0
      %3094 = vmatmul.mubr.f32.gmra.mrb[0].mxu0 %v2889
      %v3095 = vpop.f32.mrb[0].mxu0
      %v3096 = vadd.f32 0.0, %v3095
      %v3097 = vpop.f32.mrb[0].mxu0
      %3098 = vmatprep.mubr.f32.mxu0 0.0
      %3099 = vmatmul.mubr.f32.gmra.mrb[0].mxu0 %v2892
      %v3100 = vpop.f32.mrb[0].mxu0
      %v3101 = vadd.f32 0.0, %v3100
      %v3102 = vpop.f32.mrb[0].mxu0
      %3103 = vmatprep.mubr.f32.mxu0 0.0
      %3104 = vmatmul.mubr.f32.gmra.mrb[0].mxu0 %v2895
      %v3105 = vpop.f32.mrb[0].mxu0
      %v3106 = vadd.f32 0.0, %v3105
      %v3107 = vpop.f32.mrb[0].mxu0
      %3108 = vmatprep.mubr.f32.mxu0 0.0
      %3109 = vmatmul.mubr.f32.gmra.mrb[0].mxu0 %v2898
      %v3110 = vpop.f32.mrb[0].mxu0
      %v3111 = vadd.f32 0.0, %v3110
      %v3112 = vpop.f32.mrb[0].mxu0
      %3113 = vmatprep.mubr.f32.mxu0 0.0
      %3114 = vmatmul.mubr.f32.gmra.mrb[0].mxu0 %v2901
      %v3115 = vpop.f32.mrb[0].mxu0
      %v3116 = vadd.f32 0.0, %v3115
      %v3117 = vpop.f32.mrb[0].mxu0
      %3118 = vmatprep.mubr.f32.mxu0 0.0
      %3119 = vmatmul.mubr.f32.gmra.mrb[0].mxu0 %v2904
      %v3120 = vpop.f32.mrb[0].mxu0
      %v3121 = vadd.f32 0.0, %v3120
      %v3122 = vpop.f32.mrb[0].mxu0
      %3123 = vmatprep.mubr.f32.mxu0 0.0
      %3124 = vmatmul.mubr.f32.gmra.mrb[0].mxu0 %v2907
      %v3125 = vpop.f32.mrb[0].mxu0
      %v3126 = vadd.f32 0.0, %v3125
      %v3127 = vpop.f32.mrb[0].mxu0
      %3128 = vmatprep.mubr.f32.mxu0 0.0
      %3129 = vmatmul.mubr.f32.gmra.mrb[0].mxu0 %v2910
      %v3130 = vpop.f32.mrb[0].mxu0
      %v3131 = vadd.f32 0.0, %v3130
      %v3132 = vpop.f32.mrb[0].mxu0
      %3133 = vmatprep.mubr.f32.mxu0 0.0
      %3134 = vmatmul.mubr.f32.gmra.mrb[0].mxu0 %v2913
      %v3135 = vpop.f32.mrb[0].mxu0
      %v3136 = vadd.f32 0.0, %v3135
      %v3137 = vpop.f32.mrb[0].mxu0
      %3138 = vmatprep.mubr.f32.mxu0 0.0
      %3139 = vmatmul.mubr.f32.gmra.mrb[0].mxu0 %v2916
      %v3140 = vpop.f32.mrb[0].mxu0
      %v3141 = vadd.f32 0.0, %v3140
      %v3142 = vpop.f32.mrb[0].mxu0
      %3143 = vmatprep.mubr.f32.mxu0 0.0
      %3144 = vmatmul.mubr.f32.gmra.mrb[0].mxu0 %v2919
      %v3145 = vpop.f32.mrb[0].mxu0
      %v3146 = vadd.f32 0.0, %v3145
      %v3147 = vpop.f32.mrb[0].mxu0
      %3148 = vmatprep.mubr.f32.mxu0 0.0
      %3149 = vmatmul.mubr.f32.gmra.mrb[0].mxu0 %v2922
      %v3150 = vpop.f32.mrb[0].mxu0
      %v3151 = vadd.f32 0.0, %v3150
      %v3152 = vpop.f32.mrb[0].mxu0
      %3153 = vmatprep.mubr.f32.mxu0 0.0
      %3154 = vmatmul.mubr.f32.gmra.mrb[0].mxu0 %v2925
      %v3155 = vpop.f32.mrb[0].mxu0
      %v3156 = vadd.f32 0.0, %v3155
      %v3157 = vpop.f32.mrb[0].mxu0
      %3158 = vmatprep.mubr.f32.mxu0 0.0
      %3159 = vmatmul.mubr.f32.gmra.mrb[0].mxu0 %v2928
      %v3160 = vpop.f32.mrb[0].mxu0
      %v3161 = vadd.f32 0.0, %v3160
      %v3162 = vpop.f32.mrb[0].mxu0
      %3163 = vmatprep.mubr.f32.mxu0 0.0
      %3164 = vmatmul.mubr.f32.gmra.mrb[0].mxu0 %v2931
      %v3165 = vpop.f32.mrb[0].mxu0
      %v3166 = vadd.f32 0.0, %v3165
      %v3167 = vpop.f32.mrb[0].mxu0
      %3168 = vmatprep.mubr.f32.mxu0 0.0
      %3169 = vmatmul.mubr.f32.gmra.mrb[0].mxu0 %v2934
      %v3170 = vpop.f32.mrb[0].mxu0
      %v3171 = vadd.f32 0.0, %v3170
      %v3172 = vpop.f32.mrb[0].mxu0
      %3173 = vmatprep.mubr.f32.mxu0 0.0
      %3174 = vmatmul.mubr.f32.gmra.mrb[0].mxu0 %v2937
      %v3175 = vpop.f32.mrb[0].mxu0
      %v3176 = vadd.f32 0.0, %v3175
      %v3177 = vpop.f32.mrb[0].mxu0
      %3178 = vmatprep.mubr.f32.mxu0 0.0
      %3179 = vmatmul.mubr.f32.gmra.mrb[0].mxu0 %v2940
      %v3180 = vpop.f32.mrb[0].mxu0
      %v3181 = vadd.f32 0.0, %v3180
      %v3182 = vpop.f32.mrb[0].mxu0
      %3183 = vmatprep.mubr.f32.mxu0 0.0
      %3184 = vmatmul.mubr.f32.gmra.mrb[0].mxu0 %v2943
      %v3185 = vpop.f32.mrb[0].mxu0
      %v3186 = vadd.f32 0.0, %v3185
      %v3187 = vpop.f32.mrb[0].mxu0
      %3188 = vmatprep.mubr.f32.mxu0 0.0
      %3189 = vmatmul.mubr.f32.gmra.mrb[0].mxu0 %v2946
      %v3190 = vpop.f32.mrb[0].mxu0
      %v3191 = vadd.f32 0.0, %v3190
      %v3192 = vpop.f32.mrb[0].mxu0
      %3193 = vmatprep.mubr.f32.mxu0 0.0
      %3194 = vmatmul.mubr.f32.gmra.mrb[0].mxu0 %v2949
      %v3195 = vpop.f32.mrb[0].mxu0
      %v3196 = vadd.f32 0.0, %v3195
      %v3197 = vpop.f32.mrb[0].mxu0
      %3198 = vdwg.mxu0
      %v3199 = vadd.f32 %v2769, %v3021
      %v3200 = vadd.f32 %v2770, %v3026
      %v3201 = vadd.f32 %v2771, %v3031
      %v3202 = vadd.f32 %v2772, %v3036
      %v3203 = vadd.f32 %v2773, %v3041
      %v3204 = vadd.f32 %v2774, %v3046
      %v3205 = vadd.f32 %v2775, %v3051
      %v3206 = vadd.f32 %v2776, %v3056
      %v3207 = vadd.f32 %v2777, %v3061
      %v3208 = vadd.f32 %v2778, %v3066
      %v3209 = vadd.f32 %v2779, %v3071
      %v3210 = vadd.f32 %v2780, %v3076
      %v3211 = vadd.f32 %v2781, %v3081
      %v3212 = vadd.f32 %v2782, %v3086
      %v3213 = vadd.f32 %v2783, %v3091
      %v3214 = vadd.f32 %v2784, %v3096
      %v3215 = vadd.f32 %v2785, %v3101
      %v3216 = vadd.f32 %v2786, %v3106
      %v3217 = vadd.f32 %v2787, %v3111
      %v3218 = vadd.f32 %v2788, %v3116
      %v3219 = vadd.f32 %v2789, %v3121
      %v3220 = vadd.f32 %v2790, %v3126
      %v3221 = vadd.f32 %v2791, %v3131
      %v3222 = vadd.f32 %v2792, %v3136
      %v3223 = vadd.f32 %v2793, %v3141
      %v3224 = vadd.f32 %v2794, %v3146
      %v3225 = vadd.f32 %v2795, %v3151
      %v3226 = vadd.f32 %v2796, %v3156
      %v3227 = vadd.f32 %v2797, %v3161
      %v3228 = vadd.f32 %v2798, %v3166
      %v3229 = vadd.f32 %v2799, %v3171
      %v3230 = vadd.f32 %v2800, %v3176
      %v3231 = vadd.f32 %v2801, %v3181
      %v3232 = vadd.f32 %v2802, %v3186
      %v3233 = vadd.f32 %v2803, %v3191
      %v3234 = vadd.f32 %v2804, %v3196
      %v3235 = vld [vmem:[#allocation2 + $0x14] sm:$0xff]
      %v3236 = vld [vmem:[#allocation2 + $0x1c] sm:$0xff]
      %v3237 = vld [vmem:[#allocation2 + $0x24] sm:$0xff]
      %v3238 = vld [vmem:[#allocation2 + $0x2c] sm:$0xff]
      %v3239 = vld [vmem:[#allocation2 + $0x34] sm:$0xff]
      %v3240 = vld [vmem:[#allocation2 + $0x3c] sm:$0xff]
      %v3241 = vld [vmem:[#allocation2 + $0x44] sm:$0xff]
      %v3242 = vld [vmem:[#allocation2 + $0x4c] sm:$0xff]
      %v3243 = vld [vmem:[#allocation2 + $0x54] sm:$0xff]
      %v3244 = vld [vmem:[#allocation2 + $0x5c] sm:$0xff]
      %v3245 = vld [vmem:[#allocation2 + $0x64] sm:$0xff]
      %v3246 = vld [vmem:[#allocation2 + $0x6c] sm:$0xff]
      %v3247 = vld [vmem:[#allocation2 + $0x74] sm:$0xff]
      %v3248 = vld [vmem:[#allocation2 + $0x7c] sm:$0xff]
      %v3249 = vld [vmem:[#allocation2 + $0x84] sm:$0xff]
      %v3250 = vld [vmem:[#allocation2 + $0x8c] sm:$0xff]
      %v3251 = vld [vmem:[#allocation2 + $0x94] sm:$0xff]
      %v3252 = vld [vmem:[#allocation2 + $0x9c] sm:$0xff]
      %v3253 = vld [vmem:[#allocation2 + $0xa4] sm:$0xff]
      %v3254 = vld [vmem:[#allocation2 + $0xac] sm:$0xff]
      %v3255 = vld [vmem:[#allocation2 + $0xb4] sm:$0xff]
      %v3256 = vld [vmem:[#allocation2 + $0xbc] sm:$0xff]
      %v3257 = vld [vmem:[#allocation2 + $0xc4] sm:$0xff]
      %v3258 = vld [vmem:[#allocation2 + $0xcc] sm:$0xff]
      %v3259 = vld [vmem:[#allocation2 + $0xd4] sm:$0xff]
      %v3260 = vld [vmem:[#allocation2 + $0xdc] sm:$0xff]
      %v3261 = vld [vmem:[#allocation2 + $0xe4] sm:$0xff]
      %v3262 = vld [vmem:[#allocation2 + $0xec] sm:$0xff]
      %v3263 = vld [vmem:[#allocation2 + $0xf4] sm:$0xff]
      %v3264 = vld [vmem:[#allocation2 + $0xfc] sm:$0xff]
      %v3265 = vld [vmem:[#allocation2 + $0x104] sm:$0xff]
      %v3266 = vld [vmem:[#allocation2 + $0x10c] sm:$0xff]
      %v3267 = vld [vmem:[#allocation2 + $0x114] sm:$0xff]
      %v3268 = vld [vmem:[#allocation2 + $0x11c] sm:$0xff]
      %v3269 = vld [vmem:[#allocation2 + $0x124] sm:$0xff]
      %v3270 = vld [vmem:[#allocation2 + $0x12c] sm:$0xff]
      %s3271 = scalar_lea.vmem %s4, 20
      %v3272 = vld [vmem:[%s3271] sm:$0xf]
      %v3274 = vsel %vm1112, %v3235, 0
      %v3277 = vsel %vm1112, %v3236, 0
      %v3280 = vsel %vm1112, %v3237, 0
      %v3283 = vsel %vm1112, %v3238, 0
      %v3286 = vsel %vm1112, %v3239, 0
      %v3289 = vsel %vm1112, %v3240, 0
      %v3292 = vsel %vm1112, %v3241, 0
      %v3295 = vsel %vm1112, %v3242, 0
      %v3298 = vsel %vm1112, %v3243, 0
      %v3301 = vsel %vm1112, %v3244, 0
      %v3304 = vsel %vm1112, %v3245, 0
      %v3307 = vsel %vm1112, %v3246, 0
      %v3310 = vsel %vm1112, %v3247, 0
      %v3313 = vsel %vm1112, %v3248, 0
      %v3316 = vsel %vm1112, %v3249, 0
      %v3319 = vsel %vm1112, %v3250, 0
      %v3322 = vsel %vm1112, %v3251, 0
      %v3325 = vsel %vm1112, %v3252, 0
      %v3328 = vsel %vm1112, %v3253, 0
      %v3331 = vsel %vm1112, %v3254, 0
      %v3334 = vsel %vm1112, %v3255, 0
      %v3337 = vsel %vm1112, %v3256, 0
      %v3340 = vsel %vm1112, %v3257, 0
      %v3343 = vsel %vm1112, %v3258, 0
      %v3346 = vsel %vm1112, %v3259, 0
      %v3349 = vsel %vm1112, %v3260, 0
      %v3352 = vsel %vm1112, %v3261, 0
      %v3355 = vsel %vm1112, %v3262, 0
      %v3358 = vsel %vm1112, %v3263, 0
      %v3361 = vsel %vm1112, %v3264, 0
      %v3364 = vsel %vm1112, %v3265, 0
      %v3367 = vsel %vm1112, %v3266, 0
      %v3370 = vsel %vm1112, %v3267, 0
      %v3373 = vsel %vm1112, %v3268, 0
      %v3376 = vsel %vm1112, %v3269, 0
      %v3379 = vsel %vm1112, %v3270, 0
      %v3382 = vsel %vm1340, %v3272, 0
      %3384 = vmatprep.subr.mxu0 0.0
      %3385 = vmatpush1.msra.mxu0 %v3382
      %3386 = vmatprep.subr.mxu0 0.0
      %3387 = vmatpush1.msra.mxu0 0.0
      %3388 = vmatprep.subr.mxu0 0.0
      %3389 = vmatpush1.msra.mxu0 0.0
      %3390 = vmatprep.subr.mxu0 0.0
      %3391 = vmatpush1.msra.mxu0 0.0
      %3392 = vmatprep.subr.mxu0 0.0
      %3393 = vmatpush1.msra.mxu0 0.0
      %3394 = vmatprep.subr.mxu0 0.0
      %3395 = vmatpush1.msra.mxu0 0.0
      %3396 = vmatprep.subr.mxu0 0.0
      %3397 = vmatpush1.msra.mxu0 0.0
      %3398 = vmatprep.subr.mxu0 0.0
      %3399 = vmatpush1.msra.mxu0 0.0
      %3400 = vmatprep.subr.mxu0 0.0
      %3401 = vmatpush1.msra.mxu0 0.0
      %3402 = vmatprep.subr.mxu0 0.0
      %3403 = vmatpush1.msra.mxu0 0.0
      %3404 = vmatprep.subr.mxu0 0.0
      %3405 = vmatpush1.msra.mxu0 0.0
      %3406 = vmatprep.subr.mxu0 0.0
      %3407 = vmatpush1.msra.mxu0 0.0
      %3408 = vmatprep.subr.mxu0 0.0
      %3409 = vmatpush1.msra.mxu0 0.0
      %3410 = vmatprep.subr.mxu0 0.0
      %3411 = vmatpush1.msra.mxu0 0.0
      %3412 = vmatprep.subr.mxu0 0.0
      %3413 = vmatpush1.msra.mxu0 0.0
      %3414 = vmatprep.subr.mxu0 0.0
      %3415 = vmatpush1.msra.mxu0 0.0
      %3416 = vmatprep.subr.mxu0 0.0
      %3417 = vmatpush1.msra.mxu0 0.0
      %3418 = vmatprep.subr.mxu0 0.0
      %3419 = vmatpush1.msra.mxu0 0.0
      %3420 = vmatprep.subr.mxu0 0.0
      %3421 = vmatpush1.msra.mxu0 0.0
      %3422 = vmatprep.subr.mxu0 0.0
      %3423 = vmatpush1.msra.mxu0 0.0
      %3424 = vmatprep.subr.mxu0 0.0
      %3425 = vmatpush1.msra.mxu0 0.0
      %3426 = vmatprep.subr.mxu0 0.0
      %3427 = vmatpush1.msra.mxu0 0.0
      %3428 = vmatprep.subr.mxu0 0.0
      %3429 = vmatpush1.msra.mxu0 0.0
      %3430 = vmatprep.subr.mxu0 0.0
      %3431 = vmatpush1.msra.mxu0 0.0
      %3432 = vmatprep.subr.mxu0 0.0
      %3433 = vmatpush1.msra.mxu0 0.0
      %3434 = vmatprep.subr.mxu0 0.0
      %3435 = vmatpush1.msra.mxu0 0.0
      %3436 = vmatprep.subr.mxu0 0.0
      %3437 = vmatpush1.msra.mxu0 0.0
      %3438 = vmatprep.subr.mxu0 0.0
      %3439 = vmatpush1.msra.mxu0 0.0
      %3440 = vmatprep.subr.mxu0 0.0
      %3441 = vmatpush1.msra.mxu0 0.0
      %3442 = vmatprep.subr.mxu0 0.0
      %3443 = vmatpush1.msra.mxu0 0.0
      %3444 = vmatprep.subr.mxu0 0.0
      %3445 = vmatpush1.msra.mxu0 0.0
      %3446 = vmatprep.subr.mxu0 0.0
      %3447 = vmatpush1.msra.mxu0 0.0
      %3448 = vmatprep.mubr.f32.mxu0 0.0
      %3449 = vmatmul.mubr.f32.gmra.mrb[0].mxu0 %v3274
      %v3450 = vpop.f32.mrb[0].mxu0
      %v3451 = vadd.f32 0.0, %v3450
      %v3452 = vpop.f32.mrb[0].mxu0
      %3453 = vmatprep.mubr.f32.mxu0 0.0
      %3454 = vmatmul.mubr.f32.gmra.mrb[0].mxu0 %v3277
      %v3455 = vpop.f32.mrb[0].mxu0
      %v3456 = vadd.f32 0.0, %v3455
      %v3457 = vpop.f32.mrb[0].mxu0
      %3458 = vmatprep.mubr.f32.mxu0 0.0
      %3459 = vmatmul.mubr.f32.gmra.mrb[0].mxu0 %v3280
      %v3460 = vpop.f32.mrb[0].mxu0
      %v3461 = vadd.f32 0.0, %v3460
      %v3462 = vpop.f32.mrb[0].mxu0
      %3463 = vmatprep.mubr.f32.mxu0 0.0
      %3464 = vmatmul.mubr.f32.gmra.mrb[0].mxu0 %v3283
      %v3465 = vpop.f32.mrb[0].mxu0
      %v3466 = vadd.f32 0.0, %v3465
      %v3467 = vpop.f32.mrb[0].mxu0
      %3468 = vmatprep.mubr.f32.mxu0 0.0
      %3469 = vmatmul.mubr.f32.gmra.mrb[0].mxu0 %v3286
      %v3470 = vpop.f32.mrb[0].mxu0
      %v3471 = vadd.f32 0.0, %v3470
      %v3472 = vpop.f32.mrb[0].mxu0
      %3473 = vmatprep.mubr.f32.mxu0 0.0
      %3474 = vmatmul.mubr.f32.gmra.mrb[0].mxu0 %v3289
      %v3475 = vpop.f32.mrb[0].mxu0
      %v3476 = vadd.f32 0.0, %v3475
      %v3477 = vpop.f32.mrb[0].mxu0
      %3478 = vmatprep.mubr.f32.mxu0 0.0
      %3479 = vmatmul.mubr.f32.gmra.mrb[0].mxu0 %v3292
      %v3480 = vpop.f32.mrb[0].mxu0
      %v3481 = vadd.f32 0.0, %v3480
      %v3482 = vpop.f32.mrb[0].mxu0
      %3483 = vmatprep.mubr.f32.mxu0 0.0
      %3484 = vmatmul.mubr.f32.gmra.mrb[0].mxu0 %v3295
      %v3485 = vpop.f32.mrb[0].mxu0
      %v3486 = vadd.f32 0.0, %v3485
      %v3487 = vpop.f32.mrb[0].mxu0
      %3488 = vmatprep.mubr.f32.mxu0 0.0
      %3489 = vmatmul.mubr.f32.gmra.mrb[0].mxu0 %v3298
      %v3490 = vpop.f32.mrb[0].mxu0
      %v3491 = vadd.f32 0.0, %v3490
      %v3492 = vpop.f32.mrb[0].mxu0
      %3493 = vmatprep.mubr.f32.mxu0 0.0
      %3494 = vmatmul.mubr.f32.gmra.mrb[0].mxu0 %v3301
      %v3495 = vpop.f32.mrb[0].mxu0
      %v3496 = vadd.f32 0.0, %v3495
      %v3497 = vpop.f32.mrb[0].mxu0
      %3498 = vmatprep.mubr.f32.mxu0 0.0
      %3499 = vmatmul.mubr.f32.gmra.mrb[0].mxu0 %v3304
      %v3500 = vpop.f32.mrb[0].mxu0
      %v3501 = vadd.f32 0.0, %v3500
      %v3502 = vpop.f32.mrb[0].mxu0
      %3503 = vmatprep.mubr.f32.mxu0 0.0
      %3504 = vmatmul.mubr.f32.gmra.mrb[0].mxu0 %v3307
      %v3505 = vpop.f32.mrb[0].mxu0
      %v3506 = vadd.f32 0.0, %v3505
      %v3507 = vpop.f32.mrb[0].mxu0
      %3508 = vmatprep.mubr.f32.mxu0 0.0
      %3509 = vmatmul.mubr.f32.gmra.mrb[0].mxu0 %v3310
      %v3510 = vpop.f32.mrb[0].mxu0
      %v3511 = vadd.f32 0.0, %v3510
      %v3512 = vpop.f32.mrb[0].mxu0
      %3513 = vmatprep.mubr.f32.mxu0 0.0
      %3514 = vmatmul.mubr.f32.gmra.mrb[0].mxu0 %v3313
      %v3515 = vpop.f32.mrb[0].mxu0
      %v3516 = vadd.f32 0.0, %v3515
      %v3517 = vpop.f32.mrb[0].mxu0
      %3518 = vmatprep.mubr.f32.mxu0 0.0
      %3519 = vmatmul.mubr.f32.gmra.mrb[0].mxu0 %v3316
      %v3520 = vpop.f32.mrb[0].mxu0
      %v3521 = vadd.f32 0.0, %v3520
      %v3522 = vpop.f32.mrb[0].mxu0
      %3523 = vmatprep.mubr.f32.mxu0 0.0
      %3524 = vmatmul.mubr.f32.gmra.mrb[0].mxu0 %v3319
      %v3525 = vpop.f32.mrb[0].mxu0
      %v3526 = vadd.f32 0.0, %v3525
      %v3527 = vpop.f32.mrb[0].mxu0
      %3528 = vmatprep.mubr.f32.mxu0 0.0
      %3529 = vmatmul.mubr.f32.gmra.mrb[0].mxu0 %v3322
      %v3530 = vpop.f32.mrb[0].mxu0
      %v3531 = vadd.f32 0.0, %v3530
      %v3532 = vpop.f32.mrb[0].mxu0
      %3533 = vmatprep.mubr.f32.mxu0 0.0
      %3534 = vmatmul.mubr.f32.gmra.mrb[0].mxu0 %v3325
      %v3535 = vpop.f32.mrb[0].mxu0
      %v3536 = vadd.f32 0.0, %v3535
      %v3537 = vpop.f32.mrb[0].mxu0
      %3538 = vmatprep.mubr.f32.mxu0 0.0
      %3539 = vmatmul.mubr.f32.gmra.mrb[0].mxu0 %v3328
      %v3540 = vpop.f32.mrb[0].mxu0
      %v3541 = vadd.f32 0.0, %v3540
      %v3542 = vpop.f32.mrb[0].mxu0
      %3543 = vmatprep.mubr.f32.mxu0 0.0
      %3544 = vmatmul.mubr.f32.gmra.mrb[0].mxu0 %v3331
      %v3545 = vpop.f32.mrb[0].mxu0
      %v3546 = vadd.f32 0.0, %v3545
      %v3547 = vpop.f32.mrb[0].mxu0
      %3548 = vmatprep.mubr.f32.mxu0 0.0
      %3549 = vmatmul.mubr.f32.gmra.mrb[0].mxu0 %v3334
      %v3550 = vpop.f32.mrb[0].mxu0
      %v3551 = vadd.f32 0.0, %v3550
      %v3552 = vpop.f32.mrb[0].mxu0
      %3553 = vmatprep.mubr.f32.mxu0 0.0
      %3554 = vmatmul.mubr.f32.gmra.mrb[0].mxu0 %v3337
      %v3555 = vpop.f32.mrb[0].mxu0
      %v3556 = vadd.f32 0.0, %v3555
      %v3557 = vpop.f32.mrb[0].mxu0
      %3558 = vmatprep.mubr.f32.mxu0 0.0
      %3559 = vmatmul.mubr.f32.gmra.mrb[0].mxu0 %v3340
      %v3560 = vpop.f32.mrb[0].mxu0
      %v3561 = vadd.f32 0.0, %v3560
      %v3562 = vpop.f32.mrb[0].mxu0
      %3563 = vmatprep.mubr.f32.mxu0 0.0
      %3564 = vmatmul.mubr.f32.gmra.mrb[0].mxu0 %v3343
      %v3565 = vpop.f32.mrb[0].mxu0
      %v3566 = vadd.f32 0.0, %v3565
      %v3567 = vpop.f32.mrb[0].mxu0
      %3568 = vmatprep.mubr.f32.mxu0 0.0
      %3569 = vmatmul.mubr.f32.gmra.mrb[0].mxu0 %v3346
      %v3570 = vpop.f32.mrb[0].mxu0
      %v3571 = vadd.f32 0.0, %v3570
      %v3572 = vpop.f32.mrb[0].mxu0
      %3573 = vmatprep.mubr.f32.mxu0 0.0
      %3574 = vmatmul.mubr.f32.gmra.mrb[0].mxu0 %v3349
      %v3575 = vpop.f32.mrb[0].mxu0
      %v3576 = vadd.f32 0.0, %v3575
      %v3577 = vpop.f32.mrb[0].mxu0
      %3578 = vmatprep.mubr.f32.mxu0 0.0
      %3579 = vmatmul.mubr.f32.gmra.mrb[0].mxu0 %v3352
      %v3580 = vpop.f32.mrb[0].mxu0
      %v3581 = vadd.f32 0.0, %v3580
      %v3582 = vpop.f32.mrb[0].mxu0
      %3583 = vmatprep.mubr.f32.mxu0 0.0
      %3584 = vmatmul.mubr.f32.gmra.mrb[0].mxu0 %v3355
      %v3585 = vpop.f32.mrb[0].mxu0
      %v3586 = vadd.f32 0.0, %v3585
      %v3587 = vpop.f32.mrb[0].mxu0
      %3588 = vmatprep.mubr.f32.mxu0 0.0
      %3589 = vmatmul.mubr.f32.gmra.mrb[0].mxu0 %v3358
      %v3590 = vpop.f32.mrb[0].mxu0
      %v3591 = vadd.f32 0.0, %v3590
      %v3592 = vpop.f32.mrb[0].mxu0
      %3593 = vmatprep.mubr.f32.mxu0 0.0
      %3594 = vmatmul.mubr.f32.gmra.mrb[0].mxu0 %v3361
      %v3595 = vpop.f32.mrb[0].mxu0
      %v3596 = vadd.f32 0.0, %v3595
      %v3597 = vpop.f32.mrb[0].mxu0
      %3598 = vmatprep.mubr.f32.mxu0 0.0
      %3599 = vmatmul.mubr.f32.gmra.mrb[0].mxu0 %v3364
      %v3600 = vpop.f32.mrb[0].mxu0
      %v3601 = vadd.f32 0.0, %v3600
      %v3602 = vpop.f32.mrb[0].mxu0
      %3603 = vmatprep.mubr.f32.mxu0 0.0
      %3604 = vmatmul.mubr.f32.gmra.mrb[0].mxu0 %v3367
      %v3605 = vpop.f32.mrb[0].mxu0
      %v3606 = vadd.f32 0.0, %v3605
      %v3607 = vpop.f32.mrb[0].mxu0
      %3608 = vmatprep.mubr.f32.mxu0 0.0
      %3609 = vmatmul.mubr.f32.gmra.mrb[0].mxu0 %v3370
      %v3610 = vpop.f32.mrb[0].mxu0
      %v3611 = vadd.f32 0.0, %v3610
      %v3612 = vpop.f32.mrb[0].mxu0
      %3613 = vmatprep.mubr.f32.mxu0 0.0
      %3614 = vmatmul.mubr.f32.gmra.mrb[0].mxu0 %v3373
      %v3615 = vpop.f32.mrb[0].mxu0
      %v3616 = vadd.f32 0.0, %v3615
      %v3617 = vpop.f32.mrb[0].mxu0
      %3618 = vmatprep.mubr.f32.mxu0 0.0
      %3619 = vmatmul.mubr.f32.gmra.mrb[0].mxu0 %v3376
      %v3620 = vpop.f32.mrb[0].mxu0
      %v3621 = vadd.f32 0.0, %v3620
      %v3622 = vpop.f32.mrb[0].mxu0
      %3623 = vmatprep.mubr.f32.mxu0 0.0
      %3624 = vmatmul.mubr.f32.gmra.mrb[0].mxu0 %v3379
      %v3625 = vpop.f32.mrb[0].mxu0
      %v3626 = vadd.f32 0.0, %v3625
      %v3627 = vpop.f32.mrb[0].mxu0
      %3628 = vdwg.mxu0
      %v3629 = vadd.f32 %v3199, %v3451
      %v3630 = vadd.f32 %v3200, %v3456
      %v3631 = vadd.f32 %v3201, %v3461
      %v3632 = vadd.f32 %v3202, %v3466
      %v3633 = vadd.f32 %v3203, %v3471
      %v3634 = vadd.f32 %v3204, %v3476
      %v3635 = vadd.f32 %v3205, %v3481
      %v3636 = vadd.f32 %v3206, %v3486
      %v3637 = vadd.f32 %v3207, %v3491
      %v3638 = vadd.f32 %v3208, %v3496
      %v3639 = vadd.f32 %v3209, %v3501
      %v3640 = vadd.f32 %v3210, %v3506
      %v3641 = vadd.f32 %v3211, %v3511
      %v3642 = vadd.f32 %v3212, %v3516
      %v3643 = vadd.f32 %v3213, %v3521
      %v3644 = vadd.f32 %v3214, %v3526
      %v3645 = vadd.f32 %v3215, %v3531
      %v3646 = vadd.f32 %v3216, %v3536
      %v3647 = vadd.f32 %v3217, %v3541
      %v3648 = vadd.f32 %v3218, %v3546
      %v3649 = vadd.f32 %v3219, %v3551
      %v3650 = vadd.f32 %v3220, %v3556
      %v3651 = vadd.f32 %v3221, %v3561
      %v3652 = vadd.f32 %v3222, %v3566
      %v3653 = vadd.f32 %v3223, %v3571
      %v3654 = vadd.f32 %v3224, %v3576
      %v3655 = vadd.f32 %v3225, %v3581
      %v3656 = vadd.f32 %v3226, %v3586
      %v3657 = vadd.f32 %v3227, %v3591
      %v3658 = vadd.f32 %v3228, %v3596
      %v3659 = vadd.f32 %v3229, %v3601
      %v3660 = vadd.f32 %v3230, %v3606
      %v3661 = vadd.f32 %v3231, %v3611
      %v3662 = vadd.f32 %v3232, %v3616
      %v3663 = vadd.f32 %v3233, %v3621
      %v3664 = vadd.f32 %v3234, %v3626
      %v3665 = vld [vmem:[#allocation2 + $0x24] sm:$0xff]
      %v3666 = vld [vmem:[#allocation2 + $0x2c] sm:$0xff]
      %v3667 = vld [vmem:[#allocation2 + $0x34] sm:$0xff]
      %v3668 = vld [vmem:[#allocation2 + $0x3c] sm:$0xff]
      %v3669 = vld [vmem:[#allocation2 + $0x44] sm:$0xff]
      %v3670 = vld [vmem:[#allocation2 + $0x4c] sm:$0xff]
      %v3671 = vld [vmem:[#allocation2 + $0x54] sm:$0xff]
      %v3672 = vld [vmem:[#allocation2 + $0x5c] sm:$0xff]
      %v3673 = vld [vmem:[#allocation2 + $0x64] sm:$0xff]
      %v3674 = vld [vmem:[#allocation2 + $0x6c] sm:$0xff]
      %v3675 = vld [vmem:[#allocation2 + $0x74] sm:$0xff]
      %v3676 = vld [vmem:[#allocation2 + $0x7c] sm:$0xff]
      %v3677 = vld [vmem:[#allocation2 + $0x84] sm:$0xff]
      %v3678 = vld [vmem:[#allocation2 + $0x8c] sm:$0xff]
      %v3679 = vld [vmem:[#allocation2 + $0x94] sm:$0xff]
      %v3680 = vld [vmem:[#allocation2 + $0x9c] sm:$0xff]
      %v3681 = vld [vmem:[#allocation2 + $0xa4] sm:$0xff]
      %v3682 = vld [vmem:[#allocation2 + $0xac] sm:$0xff]
      %v3683 = vld [vmem:[#allocation2 + $0xb4] sm:$0xff]
      %v3684 = vld [vmem:[#allocation2 + $0xbc] sm:$0xff]
      %v3685 = vld [vmem:[#allocation2 + $0xc4] sm:$0xff]
      %v3686 = vld [vmem:[#allocation2 + $0xcc] sm:$0xff]
      %v3687 = vld [vmem:[#allocation2 + $0xd4] sm:$0xff]
      %v3688 = vld [vmem:[#allocation2 + $0xdc] sm:$0xff]
      %v3689 = vld [vmem:[#allocation2 + $0xe4] sm:$0xff]
      %v3690 = vld [vmem:[#allocation2 + $0xec] sm:$0xff]
      %v3691 = vld [vmem:[#allocation2 + $0xf4] sm:$0xff]
      %v3692 = vld [vmem:[#allocation2 + $0xfc] sm:$0xff]
      %v3693 = vld [vmem:[#allocation2 + $0x104] sm:$0xff]
      %v3694 = vld [vmem:[#allocation2 + $0x10c] sm:$0xff]
      %v3695 = vld [vmem:[#allocation2 + $0x114] sm:$0xff]
      %v3696 = vld [vmem:[#allocation2 + $0x11c] sm:$0xff]
      %v3697 = vld [vmem:[#allocation2 + $0x124] sm:$0xff]
      %v3698 = vld [vmem:[#allocation2 + $0x12c] sm:$0xff]
      %v3699 = vld [vmem:[#allocation2 + $0x134] sm:$0xff]
      %v3700 = vld [vmem:[#allocation2 + $0x13c] sm:$0xff]
      %s3701 = scalar_lea.vmem %s4, 24
      %v3702 = vld [vmem:[%s3701] sm:$0xf]
      %v3704 = vsel %vm1112, %v3665, 0
      %v3707 = vsel %vm1112, %v3666, 0
      %v3710 = vsel %vm1112, %v3667, 0
      %v3713 = vsel %vm1112, %v3668, 0
      %v3716 = vsel %vm1112, %v3669, 0
      %v3719 = vsel %vm1112, %v3670, 0
      %v3722 = vsel %vm1112, %v3671, 0
      %v3725 = vsel %vm1112, %v3672, 0
      %v3728 = vsel %vm1112, %v3673, 0
      %v3731 = vsel %vm1112, %v3674, 0
      %v3734 = vsel %vm1112, %v3675, 0
      %v3737 = vsel %vm1112, %v3676, 0
      %v3740 = vsel %vm1112, %v3677, 0
      %v3743 = vsel %vm1112, %v3678, 0
      %v3746 = vsel %vm1112, %v3679, 0
      %v3749 = vsel %vm1112, %v3680, 0
      %v3752 = vsel %vm1112, %v3681, 0
      %v3755 = vsel %vm1112, %v3682, 0
      %v3758 = vsel %vm1112, %v3683, 0
      %v3761 = vsel %vm1112, %v3684, 0
      %v3764 = vsel %vm1112, %v3685, 0
      %v3767 = vsel %vm1112, %v3686, 0
      %v3770 = vsel %vm1112, %v3687, 0
      %v3773 = vsel %vm1112, %v3688, 0
      %v3776 = vsel %vm1112, %v3689, 0
      %v3779 = vsel %vm1112, %v3690, 0
      %v3782 = vsel %vm1112, %v3691, 0
      %v3785 = vsel %vm1112, %v3692, 0
      %v3788 = vsel %vm1112, %v3693, 0
      %v3791 = vsel %vm1112, %v3694, 0
      %v3794 = vsel %vm1112, %v3695, 0
      %v3797 = vsel %vm1112, %v3696, 0
      %v3800 = vsel %vm1112, %v3697, 0
      %v3803 = vsel %vm1112, %v3698, 0
      %v3806 = vsel %vm1112, %v3699, 0
      %v3809 = vsel %vm1112, %v3700, 0
      %v3812 = vsel %vm1340, %v3702, 0
      %3814 = vmatprep.subr.mxu0 0.0
      %3815 = vmatpush1.msra.mxu0 %v3812
      %3816 = vmatprep.subr.mxu0 0.0
      %3817 = vmatpush1.msra.mxu0 0.0
      %3818 = vmatprep.subr.mxu0 0.0
      %3819 = vmatpush1.msra.mxu0 0.0
      %3820 = vmatprep.subr.mxu0 0.0
      %3821 = vmatpush1.msra.mxu0 0.0
      %3822 = vmatprep.subr.mxu0 0.0
      %3823 = vmatpush1.msra.mxu0 0.0
      %3824 = vmatprep.subr.mxu0 0.0
      %3825 = vmatpush1.msra.mxu0 0.0
      %3826 = vmatprep.subr.mxu0 0.0
      %3827 = vmatpush1.msra.mxu0 0.0
      %3828 = vmatprep.subr.mxu0 0.0
      %3829 = vmatpush1.msra.mxu0 0.0
      %3830 = vmatprep.subr.mxu0 0.0
      %3831 = vmatpush1.msra.mxu0 0.0
      %3832 = vmatprep.subr.mxu0 0.0
      %3833 = vmatpush1.msra.mxu0 0.0
      %3834 = vmatprep.subr.mxu0 0.0
      %3835 = vmatpush1.msra.mxu0 0.0
      %3836 = vmatprep.subr.mxu0 0.0
      %3837 = vmatpush1.msra.mxu0 0.0
      %3838 = vmatprep.subr.mxu0 0.0
      %3839 = vmatpush1.msra.mxu0 0.0
      %3840 = vmatprep.subr.mxu0 0.0
      %3841 = vmatpush1.msra.mxu0 0.0
      %3842 = vmatprep.subr.mxu0 0.0
      %3843 = vmatpush1.msra.mxu0 0.0
      %3844 = vmatprep.subr.mxu0 0.0
      %3845 = vmatpush1.msra.mxu0 0.0
      %3846 = vmatprep.subr.mxu0 0.0
      %3847 = vmatpush1.msra.mxu0 0.0
      %3848 = vmatprep.subr.mxu0 0.0
      %3849 = vmatpush1.msra.mxu0 0.0
      %3850 = vmatprep.subr.mxu0 0.0
      %3851 = vmatpush1.msra.mxu0 0.0
      %3852 = vmatprep.subr.mxu0 0.0
      %3853 = vmatpush1.msra.mxu0 0.0
      %3854 = vmatprep.subr.mxu0 0.0
      %3855 = vmatpush1.msra.mxu0 0.0
      %3856 = vmatprep.subr.mxu0 0.0
      %3857 = vmatpush1.msra.mxu0 0.0
      %3858 = vmatprep.subr.mxu0 0.0
      %3859 = vmatpush1.msra.mxu0 0.0
      %3860 = vmatprep.subr.mxu0 0.0
      %3861 = vmatpush1.msra.mxu0 0.0
      %3862 = vmatprep.subr.mxu0 0.0
      %3863 = vmatpush1.msra.mxu0 0.0
      %3864 = vmatprep.subr.mxu0 0.0
      %3865 = vmatpush1.msra.mxu0 0.0
      %3866 = vmatprep.subr.mxu0 0.0
      %3867 = vmatpush1.msra.mxu0 0.0
      %3868 = vmatprep.subr.mxu0 0.0
      %3869 = vmatpush1.msra.mxu0 0.0
      %3870 = vmatprep.subr.mxu0 0.0
      %3871 = vmatpush1.msra.mxu0 0.0
      %3872 = vmatprep.subr.mxu0 0.0
      %3873 = vmatpush1.msra.mxu0 0.0
      %3874 = vmatprep.subr.mxu0 0.0
      %3875 = vmatpush1.msra.mxu0 0.0
      %3876 = vmatprep.subr.mxu0 0.0
      %3877 = vmatpush1.msra.mxu0 0.0
      %3878 = vmatprep.mubr.f32.mxu0 0.0
      %3879 = vmatmul.mubr.f32.gmra.mrb[0].mxu0 %v3704
      %v3880 = vpop.f32.mrb[0].mxu0
      %v3881 = vadd.f32 0.0, %v3880
      %v3882 = vpop.f32.mrb[0].mxu0
      %3883 = vmatprep.mubr.f32.mxu0 0.0
      %3884 = vmatmul.mubr.f32.gmra.mrb[0].mxu0 %v3707
      %v3885 = vpop.f32.mrb[0].mxu0
      %v3886 = vadd.f32 0.0, %v3885
      %v3887 = vpop.f32.mrb[0].mxu0
      %3888 = vmatprep.mubr.f32.mxu0 0.0
      %3889 = vmatmul.mubr.f32.gmra.mrb[0].mxu0 %v3710
      %v3890 = vpop.f32.mrb[0].mxu0
      %v3891 = vadd.f32 0.0, %v3890
      %v3892 = vpop.f32.mrb[0].mxu0
      %3893 = vmatprep.mubr.f32.mxu0 0.0
      %3894 = vmatmul.mubr.f32.gmra.mrb[0].mxu0 %v3713
      %v3895 = vpop.f32.mrb[0].mxu0
      %v3896 = vadd.f32 0.0, %v3895
      %v3897 = vpop.f32.mrb[0].mxu0
      %3898 = vmatprep.mubr.f32.mxu0 0.0
      %3899 = vmatmul.mubr.f32.gmra.mrb[0].mxu0 %v3716
      %v3900 = vpop.f32.mrb[0].mxu0
      %v3901 = vadd.f32 0.0, %v3900
      %v3902 = vpop.f32.mrb[0].mxu0
      %3903 = vmatprep.mubr.f32.mxu0 0.0
      %3904 = vmatmul.mubr.f32.gmra.mrb[0].mxu0 %v3719
      %v3905 = vpop.f32.mrb[0].mxu0
      %v3906 = vadd.f32 0.0, %v3905
      %v3907 = vpop.f32.mrb[0].mxu0
      %3908 = vmatprep.mubr.f32.mxu0 0.0
      %3909 = vmatmul.mubr.f32.gmra.mrb[0].mxu0 %v3722
      %v3910 = vpop.f32.mrb[0].mxu0
      %v3911 = vadd.f32 0.0, %v3910
      %v3912 = vpop.f32.mrb[0].mxu0
      %3913 = vmatprep.mubr.f32.mxu0 0.0
      %3914 = vmatmul.mubr.f32.gmra.mrb[0].mxu0 %v3725
      %v3915 = vpop.f32.mrb[0].mxu0
      %v3916 = vadd.f32 0.0, %v3915
      %v3917 = vpop.f32.mrb[0].mxu0
      %3918 = vmatprep.mubr.f32.mxu0 0.0
      %3919 = vmatmul.mubr.f32.gmra.mrb[0].mxu0 %v3728
      %v3920 = vpop.f32.mrb[0].mxu0
      %v3921 = vadd.f32 0.0, %v3920
      %v3922 = vpop.f32.mrb[0].mxu0
      %3923 = vmatprep.mubr.f32.mxu0 0.0
      %3924 = vmatmul.mubr.f32.gmra.mrb[0].mxu0 %v3731
      %v3925 = vpop.f32.mrb[0].mxu0
      %v3926 = vadd.f32 0.0, %v3925
      %v3927 = vpop.f32.mrb[0].mxu0
      %3928 = vmatprep.mubr.f32.mxu0 0.0
      %3929 = vmatmul.mubr.f32.gmra.mrb[0].mxu0 %v3734
      %v3930 = vpop.f32.mrb[0].mxu0
      %v3931 = vadd.f32 0.0, %v3930
      %v3932 = vpop.f32.mrb[0].mxu0
      %3933 = vmatprep.mubr.f32.mxu0 0.0
      %3934 = vmatmul.mubr.f32.gmra.mrb[0].mxu0 %v3737
      %v3935 = vpop.f32.mrb[0].mxu0
      %v3936 = vadd.f32 0.0, %v3935
      %v3937 = vpop.f32.mrb[0].mxu0
      %3938 = vmatprep.mubr.f32.mxu0 0.0
      %3939 = vmatmul.mubr.f32.gmra.mrb[0].mxu0 %v3740
      %v3940 = vpop.f32.mrb[0].mxu0
      %v3941 = vadd.f32 0.0, %v3940
      %v3942 = vpop.f32.mrb[0].mxu0
      %3943 = vmatprep.mubr.f32.mxu0 0.0
      %3944 = vmatmul.mubr.f32.gmra.mrb[0].mxu0 %v3743
      %v3945 = vpop.f32.mrb[0].mxu0
      %v3946 = vadd.f32 0.0, %v3945
      %v3947 = vpop.f32.mrb[0].mxu0
      %3948 = vmatprep.mubr.f32.mxu0 0.0
      %3949 = vmatmul.mubr.f32.gmra.mrb[0].mxu0 %v3746
      %v3950 = vpop.f32.mrb[0].mxu0
      %v3951 = vadd.f32 0.0, %v3950
      %v3952 = vpop.f32.mrb[0].mxu0
      %3953 = vmatprep.mubr.f32.mxu0 0.0
      %3954 = vmatmul.mubr.f32.gmra.mrb[0].mxu0 %v3749
      %v3955 = vpop.f32.mrb[0].mxu0
      %v3956 = vadd.f32 0.0, %v3955
      %v3957 = vpop.f32.mrb[0].mxu0
      %3958 = vmatprep.mubr.f32.mxu0 0.0
      %3959 = vmatmul.mubr.f32.gmra.mrb[0].mxu0 %v3752
      %v3960 = vpop.f32.mrb[0].mxu0
      %v3961 = vadd.f32 0.0, %v3960
      %v3962 = vpop.f32.mrb[0].mxu0
      %3963 = vmatprep.mubr.f32.mxu0 0.0
      %3964 = vmatmul.mubr.f32.gmra.mrb[0].mxu0 %v3755
      %v3965 = vpop.f32.mrb[0].mxu0
      %v3966 = vadd.f32 0.0, %v3965
      %v3967 = vpop.f32.mrb[0].mxu0
      %3968 = vmatprep.mubr.f32.mxu0 0.0
      %3969 = vmatmul.mubr.f32.gmra.mrb[0].mxu0 %v3758
      %v3970 = vpop.f32.mrb[0].mxu0
      %v3971 = vadd.f32 0.0, %v3970
      %v3972 = vpop.f32.mrb[0].mxu0
      %3973 = vmatprep.mubr.f32.mxu0 0.0
      %3974 = vmatmul.mubr.f32.gmra.mrb[0].mxu0 %v3761
      %v3975 = vpop.f32.mrb[0].mxu0
      %v3976 = vadd.f32 0.0, %v3975
      %v3977 = vpop.f32.mrb[0].mxu0
      %3978 = vmatprep.mubr.f32.mxu0 0.0
      %3979 = vmatmul.mubr.f32.gmra.mrb[0].mxu0 %v3764
      %v3980 = vpop.f32.mrb[0].mxu0
      %v3981 = vadd.f32 0.0, %v3980
      %v3982 = vpop.f32.mrb[0].mxu0
      %3983 = vmatprep.mubr.f32.mxu0 0.0
      %3984 = vmatmul.mubr.f32.gmra.mrb[0].mxu0 %v3767
      %v3985 = vpop.f32.mrb[0].mxu0
      %v3986 = vadd.f32 0.0, %v3985
      %v3987 = vpop.f32.mrb[0].mxu0
      %3988 = vmatprep.mubr.f32.mxu0 0.0
      %3989 = vmatmul.mubr.f32.gmra.mrb[0].mxu0 %v3770
      %v3990 = vpop.f32.mrb[0].mxu0
      %v3991 = vadd.f32 0.0, %v3990
      %v3992 = vpop.f32.mrb[0].mxu0
      %3993 = vmatprep.mubr.f32.mxu0 0.0
      %3994 = vmatmul.mubr.f32.gmra.mrb[0].mxu0 %v3773
      %v3995 = vpop.f32.mrb[0].mxu0
      %v3996 = vadd.f32 0.0, %v3995
      %v3997 = vpop.f32.mrb[0].mxu0
      %3998 = vmatprep.mubr.f32.mxu0 0.0
      %3999 = vmatmul.mubr.f32.gmra.mrb[0].mxu0 %v3776
      %v4000 = vpop.f32.mrb[0].mxu0
      %v4001 = vadd.f32 0.0, %v4000
      %v4002 = vpop.f32.mrb[0].mxu0
      %4003 = vmatprep.mubr.f32.mxu0 0.0
      %4004 = vmatmul.mubr.f32.gmra.mrb[0].mxu0 %v3779
      %v4005 = vpop.f32.mrb[0].mxu0
      %v4006 = vadd.f32 0.0, %v4005
      %v4007 = vpop.f32.mrb[0].mxu0
      %4008 = vmatprep.mubr.f32.mxu0 0.0
      %4009 = vmatmul.mubr.f32.gmra.mrb[0].mxu0 %v3782
      %v4010 = vpop.f32.mrb[0].mxu0
      %v4011 = vadd.f32 0.0, %v4010
      %v4012 = vpop.f32.mrb[0].mxu0
      %4013 = vmatprep.mubr.f32.mxu0 0.0
      %4014 = vmatmul.mubr.f32.gmra.mrb[0].mxu0 %v3785
      %v4015 = vpop.f32.mrb[0].mxu0
      %v4016 = vadd.f32 0.0, %v4015
      %v4017 = vpop.f32.mrb[0].mxu0
      %4018 = vmatprep.mubr.f32.mxu0 0.0
      %4019 = vmatmul.mubr.f32.gmra.mrb[0].mxu0 %v3788
      %v4020 = vpop.f32.mrb[0].mxu0
      %v4021 = vadd.f32 0.0, %v4020
      %v4022 = vpop.f32.mrb[0].mxu0
      %4023 = vmatprep.mubr.f32.mxu0 0.0
      %4024 = vmatmul.mubr.f32.gmra.mrb[0].mxu0 %v3791
      %v4025 = vpop.f32.mrb[0].mxu0
      %v4026 = vadd.f32 0.0, %v4025
      %v4027 = vpop.f32.mrb[0].mxu0
      %4028 = vmatprep.mubr.f32.mxu0 0.0
      %4029 = vmatmul.mubr.f32.gmra.mrb[0].mxu0 %v3794
      %v4030 = vpop.f32.mrb[0].mxu0
      %v4031 = vadd.f32 0.0, %v4030
      %v4032 = vpop.f32.mrb[0].mxu0
      %4033 = vmatprep.mubr.f32.mxu0 0.0
      %4034 = vmatmul.mubr.f32.gmra.mrb[0].mxu0 %v3797
      %v4035 = vpop.f32.mrb[0].mxu0
      %v4036 = vadd.f32 0.0, %v4035
      %v4037 = vpop.f32.mrb[0].mxu0
      %4038 = vmatprep.mubr.f32.mxu0 0.0
      %4039 = vmatmul.mubr.f32.gmra.mrb[0].mxu0 %v3800
      %v4040 = vpop.f32.mrb[0].mxu0
      %v4041 = vadd.f32 0.0, %v4040
      %v4042 = vpop.f32.mrb[0].mxu0
      %4043 = vmatprep.mubr.f32.mxu0 0.0
      %4044 = vmatmul.mubr.f32.gmra.mrb[0].mxu0 %v3803
      %v4045 = vpop.f32.mrb[0].mxu0
      %v4046 = vadd.f32 0.0, %v4045
      %v4047 = vpop.f32.mrb[0].mxu0
      %4048 = vmatprep.mubr.f32.mxu0 0.0
      %4049 = vmatmul.mubr.f32.gmra.mrb[0].mxu0 %v3806
      %v4050 = vpop.f32.mrb[0].mxu0
      %v4051 = vadd.f32 0.0, %v4050
      %v4052 = vpop.f32.mrb[0].mxu0
      %4053 = vmatprep.mubr.f32.mxu0 0.0
      %4054 = vmatmul.mubr.f32.gmra.mrb[0].mxu0 %v3809
      %v4055 = vpop.f32.mrb[0].mxu0
      %v4056 = vadd.f32 0.0, %v4055
      %v4057 = vpop.f32.mrb[0].mxu0
      %4058 = vdwg.mxu0
      %v4059 = vadd.f32 %v3629, %v3881
      %v4060 = vadd.f32 %v3630, %v3886
      %v4061 = vadd.f32 %v3631, %v3891
      %v4062 = vadd.f32 %v3632, %v3896
      %v4063 = vadd.f32 %v3633, %v3901
      %v4064 = vadd.f32 %v3634, %v3906
      %v4065 = vadd.f32 %v3635, %v3911
      %v4066 = vadd.f32 %v3636, %v3916
      %v4067 = vadd.f32 %v3637, %v3921
      %v4068 = vadd.f32 %v3638, %v3926
      %v4069 = vadd.f32 %v3639, %v3931
      %v4070 = vadd.f32 %v3640, %v3936
      %v4071 = vadd.f32 %v3641, %v3941
      %v4072 = vadd.f32 %v3642, %v3946
      %v4073 = vadd.f32 %v3643, %v3951
      %v4074 = vadd.f32 %v3644, %v3956
      %v4075 = vadd.f32 %v3645, %v3961
      %v4076 = vadd.f32 %v3646, %v3966
      %v4077 = vadd.f32 %v3647, %v3971
      %v4078 = vadd.f32 %v3648, %v3976
      %v4079 = vadd.f32 %v3649, %v3981
      %v4080 = vadd.f32 %v3650, %v3986
      %v4081 = vadd.f32 %v3651, %v3991
      %v4082 = vadd.f32 %v3652, %v3996
      %v4083 = vadd.f32 %v3653, %v4001
      %v4084 = vadd.f32 %v3654, %v4006
      %v4085 = vadd.f32 %v3655, %v4011
      %v4086 = vadd.f32 %v3656, %v4016
      %v4087 = vadd.f32 %v3657, %v4021
      %v4088 = vadd.f32 %v3658, %v4026
      %v4089 = vadd.f32 %v3659, %v4031
      %v4090 = vadd.f32 %v3660, %v4036
      %v4091 = vadd.f32 %v3661, %v4041
      %v4092 = vadd.f32 %v3662, %v4046
      %v4093 = vadd.f32 %v3663, %v4051
      %v4094 = vadd.f32 %v3664, %v4056
      %v4095 = vld [vmem:[#allocation2 + $0x25] sm:$0xff]
      %v4096 = vld [vmem:[#allocation2 + $0x2d] sm:$0xff]
      %v4097 = vld [vmem:[#allocation2 + $0x35] sm:$0xff]
      %v4098 = vld [vmem:[#allocation2 + $0x3d] sm:$0xff]
      %v4099 = vld [vmem:[#allocation2 + $0x45] sm:$0xff]
      %v4100 = vld [vmem:[#allocation2 + $0x4d] sm:$0xff]
      %v4101 = vld [vmem:[#allocation2 + $0x55] sm:$0xff]
      %v4102 = vld [vmem:[#allocation2 + $0x5d] sm:$0xff]
      %v4103 = vld [vmem:[#allocation2 + $0x65] sm:$0xff]
      %v4104 = vld [vmem:[#allocation2 + $0x6d] sm:$0xff]
      %v4105 = vld [vmem:[#allocation2 + $0x75] sm:$0xff]
      %v4106 = vld [vmem:[#allocation2 + $0x7d] sm:$0xff]
      %v4107 = vld [vmem:[#allocation2 + $0x85] sm:$0xff]
      %v4108 = vld [vmem:[#allocation2 + $0x8d] sm:$0xff]
      %v4109 = vld [vmem:[#allocation2 + $0x95] sm:$0xff]
      %v4110 = vld [vmem:[#allocation2 + $0x9d] sm:$0xff]
      %v4111 = vld [vmem:[#allocation2 + $0xa5] sm:$0xff]
      %v4112 = vld [vmem:[#allocation2 + $0xad] sm:$0xff]
      %v4113 = vld [vmem:[#allocation2 + $0xb5] sm:$0xff]
      %v4114 = vld [vmem:[#allocation2 + $0xbd] sm:$0xff]
      %v4115 = vld [vmem:[#allocation2 + $0xc5] sm:$0xff]
      %v4116 = vld [vmem:[#allocation2 + $0xcd] sm:$0xff]
      %v4117 = vld [vmem:[#allocation2 + $0xd5] sm:$0xff]
      %v4118 = vld [vmem:[#allocation2 + $0xdd] sm:$0xff]
      %v4119 = vld [vmem:[#allocation2 + $0xe5] sm:$0xff]
      %v4120 = vld [vmem:[#allocation2 + $0xed] sm:$0xff]
      %v4121 = vld [vmem:[#allocation2 + $0xf5] sm:$0xff]
      %v4122 = vld [vmem:[#allocation2 + $0xfd] sm:$0xff]
      %v4123 = vld [vmem:[#allocation2 + $0x105] sm:$0xff]
      %v4124 = vld [vmem:[#allocation2 + $0x10d] sm:$0xff]
      %v4125 = vld [vmem:[#allocation2 + $0x115] sm:$0xff]
      %v4126 = vld [vmem:[#allocation2 + $0x11d] sm:$0xff]
      %v4127 = vld [vmem:[#allocation2 + $0x125] sm:$0xff]
      %v4128 = vld [vmem:[#allocation2 + $0x12d] sm:$0xff]
      %v4129 = vld [vmem:[#allocation2 + $0x135] sm:$0xff]
      %v4130 = vld [vmem:[#allocation2 + $0x13d] sm:$0xff]
      %s4131 = scalar_lea.vmem %s4, 28
      %v4132 = vld [vmem:[%s4131] sm:$0xf]
      %v4134 = vsel %vm1112, %v4095, 0
      %v4137 = vsel %vm1112, %v4096, 0
      %v4140 = vsel %vm1112, %v4097, 0
      %v4143 = vsel %vm1112, %v4098, 0
      %v4146 = vsel %vm1112, %v4099, 0
      %v4149 = vsel %vm1112, %v4100, 0
      %v4152 = vsel %vm1112, %v4101, 0
      %v4155 = vsel %vm1112, %v4102, 0
      %v4158 = vsel %vm1112, %v4103, 0
      %v4161 = vsel %vm1112, %v4104, 0
      %v4164 = vsel %vm1112, %v4105, 0
      %v4167 = vsel %vm1112, %v4106, 0
      %v4170 = vsel %vm1112, %v4107, 0
      %v4173 = vsel %vm1112, %v4108, 0
      %v4176 = vsel %vm1112, %v4109, 0
      %v4179 = vsel %vm1112, %v4110, 0
      %v4182 = vsel %vm1112, %v4111, 0
      %v4185 = vsel %vm1112, %v4112, 0
      %v4188 = vsel %vm1112, %v4113, 0
      %v4191 = vsel %vm1112, %v4114, 0
      %v4194 = vsel %vm1112, %v4115, 0
      %v4197 = vsel %vm1112, %v4116, 0
      %v4200 = vsel %vm1112, %v4117, 0
      %v4203 = vsel %vm1112, %v4118, 0
      %v4206 = vsel %vm1112, %v4119, 0
      %v4209 = vsel %vm1112, %v4120, 0
      %v4212 = vsel %vm1112, %v4121, 0
      %v4215 = vsel %vm1112, %v4122, 0
      %v4218 = vsel %vm1112, %v4123, 0
      %v4221 = vsel %vm1112, %v4124, 0
      %v4224 = vsel %vm1112, %v4125, 0
      %v4227 = vsel %vm1112, %v4126, 0
      %v4230 = vsel %vm1112, %v4127, 0
      %v4233 = vsel %vm1112, %v4128, 0
      %v4236 = vsel %vm1112, %v4129, 0
      %v4239 = vsel %vm1112, %v4130, 0
      %v4242 = vsel %vm1340, %v4132, 0
      %4244 = vmatprep.subr.mxu0 0.0
      %4245 = vmatpush1.msra.mxu0 %v4242
      %4246 = vmatprep.subr.mxu0 0.0
      %4247 = vmatpush1.msra.mxu0 0.0
      %4248 = vmatprep.subr.mxu0 0.0
      %4249 = vmatpush1.msra.mxu0 0.0
      %4250 = vmatprep.subr.mxu0 0.0
      %4251 = vmatpush1.msra.mxu0 0.0
      %4252 = vmatprep.subr.mxu0 0.0
      %4253 = vmatpush1.msra.mxu0 0.0
      %4254 = vmatprep.subr.mxu0 0.0
      %4255 = vmatpush1.msra.mxu0 0.0
      %4256 = vmatprep.subr.mxu0 0.0
      %4257 = vmatpush1.msra.mxu0 0.0
      %4258 = vmatprep.subr.mxu0 0.0
      %4259 = vmatpush1.msra.mxu0 0.0
      %4260 = vmatprep.subr.mxu0 0.0
      %4261 = vmatpush1.msra.mxu0 0.0
      %4262 = vmatprep.subr.mxu0 0.0
      %4263 = vmatpush1.msra.mxu0 0.0
      %4264 = vmatprep.subr.mxu0 0.0
      %4265 = vmatpush1.msra.mxu0 0.0
      %4266 = vmatprep.subr.mxu0 0.0
      %4267 = vmatpush1.msra.mxu0 0.0
      %4268 = vmatprep.subr.mxu0 0.0
      %4269 = vmatpush1.msra.mxu0 0.0
      %4270 = vmatprep.subr.mxu0 0.0
      %4271 = vmatpush1.msra.mxu0 0.0
      %4272 = vmatprep.subr.mxu0 0.0
      %4273 = vmatpush1.msra.mxu0 0.0
      %4274 = vmatprep.subr.mxu0 0.0
      %4275 = vmatpush1.msra.mxu0 0.0
      %4276 = vmatprep.subr.mxu0 0.0
      %4277 = vmatpush1.msra.mxu0 0.0
      %4278 = vmatprep.subr.mxu0 0.0
      %4279 = vmatpush1.msra.mxu0 0.0
      %4280 = vmatprep.subr.mxu0 0.0
      %4281 = vmatpush1.msra.mxu0 0.0
      %4282 = vmatprep.subr.mxu0 0.0
      %4283 = vmatpush1.msra.mxu0 0.0
      %4284 = vmatprep.subr.mxu0 0.0
      %4285 = vmatpush1.msra.mxu0 0.0
      %4286 = vmatprep.subr.mxu0 0.0
      %4287 = vmatpush1.msra.mxu0 0.0
      %4288 = vmatprep.subr.mxu0 0.0
      %4289 = vmatpush1.msra.mxu0 0.0
      %4290 = vmatprep.subr.mxu0 0.0
      %4291 = vmatpush1.msra.mxu0 0.0
      %4292 = vmatprep.subr.mxu0 0.0
      %4293 = vmatpush1.msra.mxu0 0.0
      %4294 = vmatprep.subr.mxu0 0.0
      %4295 = vmatpush1.msra.mxu0 0.0
      %4296 = vmatprep.subr.mxu0 0.0
      %4297 = vmatpush1.msra.mxu0 0.0
      %4298 = vmatprep.subr.mxu0 0.0
      %4299 = vmatpush1.msra.mxu0 0.0
      %4300 = vmatprep.subr.mxu0 0.0
      %4301 = vmatpush1.msra.mxu0 0.0
      %4302 = vmatprep.subr.mxu0 0.0
      %4303 = vmatpush1.msra.mxu0 0.0
      %4304 = vmatprep.subr.mxu0 0.0
      %4305 = vmatpush1.msra.mxu0 0.0
      %4306 = vmatprep.subr.mxu0 0.0
      %4307 = vmatpush1.msra.mxu0 0.0
      %4308 = vmatprep.mubr.f32.mxu0 0.0
      %4309 = vmatmul.mubr.f32.gmra.mrb[0].mxu0 %v4134
      %v4310 = vpop.f32.mrb[0].mxu0
      %v4311 = vadd.f32 0.0, %v4310
      %v4312 = vpop.f32.mrb[0].mxu0
      %4313 = vmatprep.mubr.f32.mxu0 0.0
      %4314 = vmatmul.mubr.f32.gmra.mrb[0].mxu0 %v4137
      %v4315 = vpop.f32.mrb[0].mxu0
      %v4316 = vadd.f32 0.0, %v4315
      %v4317 = vpop.f32.mrb[0].mxu0
      %4318 = vmatprep.mubr.f32.mxu0 0.0
      %4319 = vmatmul.mubr.f32.gmra.mrb[0].mxu0 %v4140
      %v4320 = vpop.f32.mrb[0].mxu0
      %v4321 = vadd.f32 0.0, %v4320
      %v4322 = vpop.f32.mrb[0].mxu0
      %4323 = vmatprep.mubr.f32.mxu0 0.0
      %4324 = vmatmul.mubr.f32.gmra.mrb[0].mxu0 %v4143
      %v4325 = vpop.f32.mrb[0].mxu0
      %v4326 = vadd.f32 0.0, %v4325
      %v4327 = vpop.f32.mrb[0].mxu0
      %4328 = vmatprep.mubr.f32.mxu0 0.0
      %4329 = vmatmul.mubr.f32.gmra.mrb[0].mxu0 %v4146
      %v4330 = vpop.f32.mrb[0].mxu0
      %v4331 = vadd.f32 0.0, %v4330
      %v4332 = vpop.f32.mrb[0].mxu0
      %4333 = vmatprep.mubr.f32.mxu0 0.0
      %4334 = vmatmul.mubr.f32.gmra.mrb[0].mxu0 %v4149
      %v4335 = vpop.f32.mrb[0].mxu0
      %v4336 = vadd.f32 0.0, %v4335
      %v4337 = vpop.f32.mrb[0].mxu0
      %4338 = vmatprep.mubr.f32.mxu0 0.0
      %4339 = vmatmul.mubr.f32.gmra.mrb[0].mxu0 %v4152
      %v4340 = vpop.f32.mrb[0].mxu0
      %v4341 = vadd.f32 0.0, %v4340
      %v4342 = vpop.f32.mrb[0].mxu0
      %4343 = vmatprep.mubr.f32.mxu0 0.0
      %4344 = vmatmul.mubr.f32.gmra.mrb[0].mxu0 %v4155
      %v4345 = vpop.f32.mrb[0].mxu0
      %v4346 = vadd.f32 0.0, %v4345
      %v4347 = vpop.f32.mrb[0].mxu0
      %4348 = vmatprep.mubr.f32.mxu0 0.0
      %4349 = vmatmul.mubr.f32.gmra.mrb[0].mxu0 %v4158
      %v4350 = vpop.f32.mrb[0].mxu0
      %v4351 = vadd.f32 0.0, %v4350
      %v4352 = vpop.f32.mrb[0].mxu0
      %4353 = vmatprep.mubr.f32.mxu0 0.0
      %4354 = vmatmul.mubr.f32.gmra.mrb[0].mxu0 %v4161
      %v4355 = vpop.f32.mrb[0].mxu0
      %v4356 = vadd.f32 0.0, %v4355
      %v4357 = vpop.f32.mrb[0].mxu0
      %4358 = vmatprep.mubr.f32.mxu0 0.0
      %4359 = vmatmul.mubr.f32.gmra.mrb[0].mxu0 %v4164
      %v4360 = vpop.f32.mrb[0].mxu0
      %v4361 = vadd.f32 0.0, %v4360
      %v4362 = vpop.f32.mrb[0].mxu0
      %4363 = vmatprep.mubr.f32.mxu0 0.0
      %4364 = vmatmul.mubr.f32.gmra.mrb[0].mxu0 %v4167
      %v4365 = vpop.f32.mrb[0].mxu0
      %v4366 = vadd.f32 0.0, %v4365
      %v4367 = vpop.f32.mrb[0].mxu0
      %4368 = vmatprep.mubr.f32.mxu0 0.0
      %4369 = vmatmul.mubr.f32.gmra.mrb[0].mxu0 %v4170
      %v4370 = vpop.f32.mrb[0].mxu0
      %v4371 = vadd.f32 0.0, %v4370
      %v4372 = vpop.f32.mrb[0].mxu0
      %4373 = vmatprep.mubr.f32.mxu0 0.0
      %4374 = vmatmul.mubr.f32.gmra.mrb[0].mxu0 %v4173
      %v4375 = vpop.f32.mrb[0].mxu0
      %v4376 = vadd.f32 0.0, %v4375
      %v4377 = vpop.f32.mrb[0].mxu0
      %4378 = vmatprep.mubr.f32.mxu0 0.0
      %4379 = vmatmul.mubr.f32.gmra.mrb[0].mxu0 %v4176
      %v4380 = vpop.f32.mrb[0].mxu0
      %v4381 = vadd.f32 0.0, %v4380
      %v4382 = vpop.f32.mrb[0].mxu0
      %4383 = vmatprep.mubr.f32.mxu0 0.0
      %4384 = vmatmul.mubr.f32.gmra.mrb[0].mxu0 %v4179
      %v4385 = vpop.f32.mrb[0].mxu0
      %v4386 = vadd.f32 0.0, %v4385
      %v4387 = vpop.f32.mrb[0].mxu0
      %4388 = vmatprep.mubr.f32.mxu0 0.0
      %4389 = vmatmul.mubr.f32.gmra.mrb[0].mxu0 %v4182
      %v4390 = vpop.f32.mrb[0].mxu0
      %v4391 = vadd.f32 0.0, %v4390
      %v4392 = vpop.f32.mrb[0].mxu0
      %4393 = vmatprep.mubr.f32.mxu0 0.0
      %4394 = vmatmul.mubr.f32.gmra.mrb[0].mxu0 %v4185
      %v4395 = vpop.f32.mrb[0].mxu0
      %v4396 = vadd.f32 0.0, %v4395
      %v4397 = vpop.f32.mrb[0].mxu0
      %4398 = vmatprep.mubr.f32.mxu0 0.0
      %4399 = vmatmul.mubr.f32.gmra.mrb[0].mxu0 %v4188
      %v4400 = vpop.f32.mrb[0].mxu0
      %v4401 = vadd.f32 0.0, %v4400
      %v4402 = vpop.f32.mrb[0].mxu0
      %4403 = vmatprep.mubr.f32.mxu0 0.0
      %4404 = vmatmul.mubr.f32.gmra.mrb[0].mxu0 %v4191
      %v4405 = vpop.f32.mrb[0].mxu0
      %v4406 = vadd.f32 0.0, %v4405
      %v4407 = vpop.f32.mrb[0].mxu0
      %4408 = vmatprep.mubr.f32.mxu0 0.0
      %4409 = vmatmul.mubr.f32.gmra.mrb[0].mxu0 %v4194
      %v4410 = vpop.f32.mrb[0].mxu0
      %v4411 = vadd.f32 0.0, %v4410
      %v4412 = vpop.f32.mrb[0].mxu0
      %4413 = vmatprep.mubr.f32.mxu0 0.0
      %4414 = vmatmul.mubr.f32.gmra.mrb[0].mxu0 %v4197
      %v4415 = vpop.f32.mrb[0].mxu0
      %v4416 = vadd.f32 0.0, %v4415
      %v4417 = vpop.f32.mrb[0].mxu0
      %4418 = vmatprep.mubr.f32.mxu0 0.0
      %4419 = vmatmul.mubr.f32.gmra.mrb[0].mxu0 %v4200
      %v4420 = vpop.f32.mrb[0].mxu0
      %v4421 = vadd.f32 0.0, %v4420
      %v4422 = vpop.f32.mrb[0].mxu0
      %4423 = vmatprep.mubr.f32.mxu0 0.0
      %4424 = vmatmul.mubr.f32.gmra.mrb[0].mxu0 %v4203
      %v4425 = vpop.f32.mrb[0].mxu0
      %v4426 = vadd.f32 0.0, %v4425
      %v4427 = vpop.f32.mrb[0].mxu0
      %4428 = vmatprep.mubr.f32.mxu0 0.0
      %4429 = vmatmul.mubr.f32.gmra.mrb[0].mxu0 %v4206
      %v4430 = vpop.f32.mrb[0].mxu0
      %v4431 = vadd.f32 0.0, %v4430
      %v4432 = vpop.f32.mrb[0].mxu0
      %4433 = vmatprep.mubr.f32.mxu0 0.0
      %4434 = vmatmul.mubr.f32.gmra.mrb[0].mxu0 %v4209
      %v4435 = vpop.f32.mrb[0].mxu0
      %v4436 = vadd.f32 0.0, %v4435
      %v4437 = vpop.f32.mrb[0].mxu0
      %4438 = vmatprep.mubr.f32.mxu0 0.0
      %4439 = vmatmul.mubr.f32.gmra.mrb[0].mxu0 %v4212
      %v4440 = vpop.f32.mrb[0].mxu0
      %v4441 = vadd.f32 0.0, %v4440
      %v4442 = vpop.f32.mrb[0].mxu0
      %4443 = vmatprep.mubr.f32.mxu0 0.0
      %4444 = vmatmul.mubr.f32.gmra.mrb[0].mxu0 %v4215
      %v4445 = vpop.f32.mrb[0].mxu0
      %v4446 = vadd.f32 0.0, %v4445
      %v4447 = vpop.f32.mrb[0].mxu0
      %4448 = vmatprep.mubr.f32.mxu0 0.0
      %4449 = vmatmul.mubr.f32.gmra.mrb[0].mxu0 %v4218
      %v4450 = vpop.f32.mrb[0].mxu0
      %v4451 = vadd.f32 0.0, %v4450
      %v4452 = vpop.f32.mrb[0].mxu0
      %4453 = vmatprep.mubr.f32.mxu0 0.0
      %4454 = vmatmul.mubr.f32.gmra.mrb[0].mxu0 %v4221
      %v4455 = vpop.f32.mrb[0].mxu0
      %v4456 = vadd.f32 0.0, %v4455
      %v4457 = vpop.f32.mrb[0].mxu0
      %4458 = vmatprep.mubr.f32.mxu0 0.0
      %4459 = vmatmul.mubr.f32.gmra.mrb[0].mxu0 %v4224
      %v4460 = vpop.f32.mrb[0].mxu0
      %v4461 = vadd.f32 0.0, %v4460
      %v4462 = vpop.f32.mrb[0].mxu0
      %4463 = vmatprep.mubr.f32.mxu0 0.0
      %4464 = vmatmul.mubr.f32.gmra.mrb[0].mxu0 %v4227
      %v4465 = vpop.f32.mrb[0].mxu0
      %v4466 = vadd.f32 0.0, %v4465
      %v4467 = vpop.f32.mrb[0].mxu0
      %4468 = vmatprep.mubr.f32.mxu0 0.0
      %4469 = vmatmul.mubr.f32.gmra.mrb[0].mxu0 %v4230
      %v4470 = vpop.f32.mrb[0].mxu0
      %v4471 = vadd.f32 0.0, %v4470
      %v4472 = vpop.f32.mrb[0].mxu0
      %4473 = vmatprep.mubr.f32.mxu0 0.0
      %4474 = vmatmul.mubr.f32.gmra.mrb[0].mxu0 %v4233
      %v4475 = vpop.f32.mrb[0].mxu0
      %v4476 = vadd.f32 0.0, %v4475
      %v4477 = vpop.f32.mrb[0].mxu0
      %4478 = vmatprep.mubr.f32.mxu0 0.0
      %4479 = vmatmul.mubr.f32.gmra.mrb[0].mxu0 %v4236
      %v4480 = vpop.f32.mrb[0].mxu0
      %v4481 = vadd.f32 0.0, %v4480
      %v4482 = vpop.f32.mrb[0].mxu0
      %4483 = vmatprep.mubr.f32.mxu0 0.0
      %4484 = vmatmul.mubr.f32.gmra.mrb[0].mxu0 %v4239
      %v4485 = vpop.f32.mrb[0].mxu0
      %v4486 = vadd.f32 0.0, %v4485
      %v4487 = vpop.f32.mrb[0].mxu0
      %4488 = vdwg.mxu0
      %v4489 = vadd.f32 %v4059, %v4311
      %v4490 = vadd.f32 %v4060, %v4316
      %v4491 = vadd.f32 %v4061, %v4321
      %v4492 = vadd.f32 %v4062, %v4326
      %v4493 = vadd.f32 %v4063, %v4331
      %v4494 = vadd.f32 %v4064, %v4336
      %v4495 = vadd.f32 %v4065, %v4341
      %v4496 = vadd.f32 %v4066, %v4346
      %v4497 = vadd.f32 %v4067, %v4351
      %v4498 = vadd.f32 %v4068, %v4356
      %v4499 = vadd.f32 %v4069, %v4361
      %v4500 = vadd.f32 %v4070, %v4366
      %v4501 = vadd.f32 %v4071, %v4371
      %v4502 = vadd.f32 %v4072, %v4376
      %v4503 = vadd.f32 %v4073, %v4381
      %v4504 = vadd.f32 %v4074, %v4386
      %v4505 = vadd.f32 %v4075, %v4391
      %v4506 = vadd.f32 %v4076, %v4396
      %v4507 = vadd.f32 %v4077, %v4401
      %v4508 = vadd.f32 %v4078, %v4406
      %v4509 = vadd.f32 %v4079, %v4411
      %v4510 = vadd.f32 %v4080, %v4416
      %v4511 = vadd.f32 %v4081, %v4421
      %v4512 = vadd.f32 %v4082, %v4426
      %v4513 = vadd.f32 %v4083, %v4431
      %v4514 = vadd.f32 %v4084, %v4436
      %v4515 = vadd.f32 %v4085, %v4441
      %v4516 = vadd.f32 %v4086, %v4446
      %v4517 = vadd.f32 %v4087, %v4451
      %v4518 = vadd.f32 %v4088, %v4456
      %v4519 = vadd.f32 %v4089, %v4461
      %v4520 = vadd.f32 %v4090, %v4466
      %v4521 = vadd.f32 %v4091, %v4471
      %v4522 = vadd.f32 %v4092, %v4476
      %v4523 = vadd.f32 %v4093, %v4481
      %v4524 = vadd.f32 %v4094, %v4486
      %v4525 = vld [vmem:[#allocation2 + $0x26] sm:$0xff]
      %v4526 = vld [vmem:[#allocation2 + $0x2e] sm:$0xff]
      %v4527 = vld [vmem:[#allocation2 + $0x36] sm:$0xff]
      %v4528 = vld [vmem:[#allocation2 + $0x3e] sm:$0xff]
      %v4529 = vld [vmem:[#allocation2 + $0x46] sm:$0xff]
      %v4530 = vld [vmem:[#allocation2 + $0x4e] sm:$0xff]
      %v4531 = vld [vmem:[#allocation2 + $0x56] sm:$0xff]
      %v4532 = vld [vmem:[#allocation2 + $0x5e] sm:$0xff]
      %v4533 = vld [vmem:[#allocation2 + $0x66] sm:$0xff]
      %v4534 = vld [vmem:[#allocation2 + $0x6e] sm:$0xff]
      %v4535 = vld [vmem:[#allocation2 + $0x76] sm:$0xff]
      %v4536 = vld [vmem:[#allocation2 + $0x7e] sm:$0xff]
      %v4537 = vld [vmem:[#allocation2 + $0x86] sm:$0xff]
      %v4538 = vld [vmem:[#allocation2 + $0x8e] sm:$0xff]
      %v4539 = vld [vmem:[#allocation2 + $0x96] sm:$0xff]
      %v4540 = vld [vmem:[#allocation2 + $0x9e] sm:$0xff]
      %v4541 = vld [vmem:[#allocation2 + $0xa6] sm:$0xff]
      %v4542 = vld [vmem:[#allocation2 + $0xae] sm:$0xff]
      %v4543 = vld [vmem:[#allocation2 + $0xb6] sm:$0xff]
      %v4544 = vld [vmem:[#allocation2 + $0xbe] sm:$0xff]
      %v4545 = vld [vmem:[#allocation2 + $0xc6] sm:$0xff]
      %v4546 = vld [vmem:[#allocation2 + $0xce] sm:$0xff]
      %v4547 = vld [vmem:[#allocation2 + $0xd6] sm:$0xff]
      %v4548 = vld [vmem:[#allocation2 + $0xde] sm:$0xff]
      %v4549 = vld [vmem:[#allocation2 + $0xe6] sm:$0xff]
      %v4550 = vld [vmem:[#allocation2 + $0xee] sm:$0xff]
      %v4551 = vld [vmem:[#allocation2 + $0xf6] sm:$0xff]
      %v4552 = vld [vmem:[#allocation2 + $0xfe] sm:$0xff]
      %v4553 = vld [vmem:[#allocation2 + $0x106] sm:$0xff]
      %v4554 = vld [vmem:[#allocation2 + $0x10e] sm:$0xff]
      %v4555 = vld [vmem:[#allocation2 + $0x116] sm:$0xff]
      %v4556 = vld [vmem:[#allocation2 + $0x11e] sm:$0xff]
      %v4557 = vld [vmem:[#allocation2 + $0x126] sm:$0xff]
      %v4558 = vld [vmem:[#allocation2 + $0x12e] sm:$0xff]
      %v4559 = vld [vmem:[#allocation2 + $0x136] sm:$0xff]
      %v4560 = vld [vmem:[#allocation2 + $0x13e] sm:$0xff]
      %s4561 = scalar_lea.vmem %s4, 32
      %v4562 = vld [vmem:[%s4561] sm:$0xf]
      %v4564 = vsel %vm1112, %v4525, 0
      %v4567 = vsel %vm1112, %v4526, 0
      %v4570 = vsel %vm1112, %v4527, 0
      %v4573 = vsel %vm1112, %v4528, 0
      %v4576 = vsel %vm1112, %v4529, 0
      %v4579 = vsel %vm1112, %v4530, 0
      %v4582 = vsel %vm1112, %v4531, 0
      %v4585 = vsel %vm1112, %v4532, 0
      %v4588 = vsel %vm1112, %v4533, 0
      %v4591 = vsel %vm1112, %v4534, 0
      %v4594 = vsel %vm1112, %v4535, 0
      %v4597 = vsel %vm1112, %v4536, 0
      %v4600 = vsel %vm1112, %v4537, 0
      %v4603 = vsel %vm1112, %v4538, 0
      %v4606 = vsel %vm1112, %v4539, 0
      %v4609 = vsel %vm1112, %v4540, 0
      %v4612 = vsel %vm1112, %v4541, 0
      %v4615 = vsel %vm1112, %v4542, 0
      %v4618 = vsel %vm1112, %v4543, 0
      %v4621 = vsel %vm1112, %v4544, 0
      %v4624 = vsel %vm1112, %v4545, 0
      %v4627 = vsel %vm1112, %v4546, 0
      %v4630 = vsel %vm1112, %v4547, 0
      %v4633 = vsel %vm1112, %v4548, 0
      %v4636 = vsel %vm1112, %v4549, 0
      %v4639 = vsel %vm1112, %v4550, 0
      %v4642 = vsel %vm1112, %v4551, 0
      %v4645 = vsel %vm1112, %v4552, 0
      %v4648 = vsel %vm1112, %v4553, 0
      %v4651 = vsel %vm1112, %v4554, 0
      %v4654 = vsel %vm1112, %v4555, 0
      %v4657 = vsel %vm1112, %v4556, 0
      %v4660 = vsel %vm1112, %v4557, 0
      %v4663 = vsel %vm1112, %v4558, 0
      %v4666 = vsel %vm1112, %v4559, 0
      %v4669 = vsel %vm1112, %v4560, 0
      %v4672 = vsel %vm1340, %v4562, 0
      %4674 = vmatprep.subr.mxu0 0.0
      %4675 = vmatpush1.msra.mxu0 %v4672
      %4676 = vmatprep.subr.mxu0 0.0
      %4677 = vmatpush1.msra.mxu0 0.0
      %4678 = vmatprep.subr.mxu0 0.0
      %4679 = vmatpush1.msra.mxu0 0.0
      %4680 = vmatprep.subr.mxu0 0.0
      %4681 = vmatpush1.msra.mxu0 0.0
      %4682 = vmatprep.subr.mxu0 0.0
      %4683 = vmatpush1.msra.mxu0 0.0
      %4684 = vmatprep.subr.mxu0 0.0
      %4685 = vmatpush1.msra.mxu0 0.0
      %4686 = vmatprep.subr.mxu0 0.0
      %4687 = vmatpush1.msra.mxu0 0.0
      %4688 = vmatprep.subr.mxu0 0.0
      %4689 = vmatpush1.msra.mxu0 0.0
      %4690 = vmatprep.subr.mxu0 0.0
      %4691 = vmatpush1.msra.mxu0 0.0
      %4692 = vmatprep.subr.mxu0 0.0
      %4693 = vmatpush1.msra.mxu0 0.0
      %4694 = vmatprep.subr.mxu0 0.0
      %4695 = vmatpush1.msra.mxu0 0.0
      %4696 = vmatprep.subr.mxu0 0.0
      %4697 = vmatpush1.msra.mxu0 0.0
      %4698 = vmatprep.subr.mxu0 0.0
      %4699 = vmatpush1.msra.mxu0 0.0
      %4700 = vmatprep.subr.mxu0 0.0
      %4701 = vmatpush1.msra.mxu0 0.0
      %4702 = vmatprep.subr.mxu0 0.0
      %4703 = vmatpush1.msra.mxu0 0.0
      %4704 = vmatprep.subr.mxu0 0.0
      %4705 = vmatpush1.msra.mxu0 0.0
      %4706 = vmatprep.subr.mxu0 0.0
      %4707 = vmatpush1.msra.mxu0 0.0
      %4708 = vmatprep.subr.mxu0 0.0
      %4709 = vmatpush1.msra.mxu0 0.0
      %4710 = vmatprep.subr.mxu0 0.0
      %4711 = vmatpush1.msra.mxu0 0.0
      %4712 = vmatprep.subr.mxu0 0.0
      %4713 = vmatpush1.msra.mxu0 0.0
      %4714 = vmatprep.subr.mxu0 0.0
      %4715 = vmatpush1.msra.mxu0 0.0
      %4716 = vmatprep.subr.mxu0 0.0
      %4717 = vmatpush1.msra.mxu0 0.0
      %4718 = vmatprep.subr.mxu0 0.0
      %4719 = vmatpush1.msra.mxu0 0.0
      %4720 = vmatprep.subr.mxu0 0.0
      %4721 = vmatpush1.msra.mxu0 0.0
      %4722 = vmatprep.subr.mxu0 0.0
      %4723 = vmatpush1.msra.mxu0 0.0
      %4724 = vmatprep.subr.mxu0 0.0
      %4725 = vmatpush1.msra.mxu0 0.0
      %4726 = vmatprep.subr.mxu0 0.0
      %4727 = vmatpush1.msra.mxu0 0.0
      %4728 = vmatprep.subr.mxu0 0.0
      %4729 = vmatpush1.msra.mxu0 0.0
      %4730 = vmatprep.subr.mxu0 0.0
      %4731 = vmatpush1.msra.mxu0 0.0
      %4732 = vmatprep.subr.mxu0 0.0
      %4733 = vmatpush1.msra.mxu0 0.0
      %4734 = vmatprep.subr.mxu0 0.0
      %4735 = vmatpush1.msra.mxu0 0.0
      %4736 = vmatprep.subr.mxu0 0.0
      %4737 = vmatpush1.msra.mxu0 0.0
      %4738 = vmatprep.mubr.f32.mxu0 0.0
      %4739 = vmatmul.mubr.f32.gmra.mrb[0].mxu0 %v4564
      %v4740 = vpop.f32.mrb[0].mxu0
      %v4741 = vadd.f32 0.0, %v4740
      %v4742 = vpop.f32.mrb[0].mxu0
      %4743 = vmatprep.mubr.f32.mxu0 0.0
      %4744 = vmatmul.mubr.f32.gmra.mrb[0].mxu0 %v4567
      %v4745 = vpop.f32.mrb[0].mxu0
      %v4746 = vadd.f32 0.0, %v4745
      %v4747 = vpop.f32.mrb[0].mxu0
      %4748 = vmatprep.mubr.f32.mxu0 0.0
      %4749 = vmatmul.mubr.f32.gmra.mrb[0].mxu0 %v4570
      %v4750 = vpop.f32.mrb[0].mxu0
      %v4751 = vadd.f32 0.0, %v4750
      %v4752 = vpop.f32.mrb[0].mxu0
      %4753 = vmatprep.mubr.f32.mxu0 0.0
      %4754 = vmatmul.mubr.f32.gmra.mrb[0].mxu0 %v4573
      %v4755 = vpop.f32.mrb[0].mxu0
      %v4756 = vadd.f32 0.0, %v4755
      %v4757 = vpop.f32.mrb[0].mxu0
      %4758 = vmatprep.mubr.f32.mxu0 0.0
      %4759 = vmatmul.mubr.f32.gmra.mrb[0].mxu0 %v4576
      %v4760 = vpop.f32.mrb[0].mxu0
      %v4761 = vadd.f32 0.0, %v4760
      %v4762 = vpop.f32.mrb[0].mxu0
      %4763 = vmatprep.mubr.f32.mxu0 0.0
      %4764 = vmatmul.mubr.f32.gmra.mrb[0].mxu0 %v4579
      %v4765 = vpop.f32.mrb[0].mxu0
      %v4766 = vadd.f32 0.0, %v4765
      %v4767 = vpop.f32.mrb[0].mxu0
      %4768 = vmatprep.mubr.f32.mxu0 0.0
      %4769 = vmatmul.mubr.f32.gmra.mrb[0].mxu0 %v4582
      %v4770 = vpop.f32.mrb[0].mxu0
      %v4771 = vadd.f32 0.0, %v4770
      %v4772 = vpop.f32.mrb[0].mxu0
      %4773 = vmatprep.mubr.f32.mxu0 0.0
      %4774 = vmatmul.mubr.f32.gmra.mrb[0].mxu0 %v4585
      %v4775 = vpop.f32.mrb[0].mxu0
      %v4776 = vadd.f32 0.0, %v4775
      %v4777 = vpop.f32.mrb[0].mxu0
      %4778 = vmatprep.mubr.f32.mxu0 0.0
      %4779 = vmatmul.mubr.f32.gmra.mrb[0].mxu0 %v4588
      %v4780 = vpop.f32.mrb[0].mxu0
      %v4781 = vadd.f32 0.0, %v4780
      %v4782 = vpop.f32.mrb[0].mxu0
      %4783 = vmatprep.mubr.f32.mxu0 0.0
      %4784 = vmatmul.mubr.f32.gmra.mrb[0].mxu0 %v4591
      %v4785 = vpop.f32.mrb[0].mxu0
      %v4786 = vadd.f32 0.0, %v4785
      %v4787 = vpop.f32.mrb[0].mxu0
      %4788 = vmatprep.mubr.f32.mxu0 0.0
      %4789 = vmatmul.mubr.f32.gmra.mrb[0].mxu0 %v4594
      %v4790 = vpop.f32.mrb[0].mxu0
      %v4791 = vadd.f32 0.0, %v4790
      %v4792 = vpop.f32.mrb[0].mxu0
      %4793 = vmatprep.mubr.f32.mxu0 0.0
      %4794 = vmatmul.mubr.f32.gmra.mrb[0].mxu0 %v4597
      %v4795 = vpop.f32.mrb[0].mxu0
      %v4796 = vadd.f32 0.0, %v4795
      %v4797 = vpop.f32.mrb[0].mxu0
      %4798 = vmatprep.mubr.f32.mxu0 0.0
      %4799 = vmatmul.mubr.f32.gmra.mrb[0].mxu0 %v4600
      %v4800 = vpop.f32.mrb[0].mxu0
      %v4801 = vadd.f32 0.0, %v4800
      %v4802 = vpop.f32.mrb[0].mxu0
      %4803 = vmatprep.mubr.f32.mxu0 0.0
      %4804 = vmatmul.mubr.f32.gmra.mrb[0].mxu0 %v4603
      %v4805 = vpop.f32.mrb[0].mxu0
      %v4806 = vadd.f32 0.0, %v4805
      %v4807 = vpop.f32.mrb[0].mxu0
      %4808 = vmatprep.mubr.f32.mxu0 0.0
      %4809 = vmatmul.mubr.f32.gmra.mrb[0].mxu0 %v4606
      %v4810 = vpop.f32.mrb[0].mxu0
      %v4811 = vadd.f32 0.0, %v4810
      %v4812 = vpop.f32.mrb[0].mxu0
      %4813 = vmatprep.mubr.f32.mxu0 0.0
      %4814 = vmatmul.mubr.f32.gmra.mrb[0].mxu0 %v4609
      %v4815 = vpop.f32.mrb[0].mxu0
      %v4816 = vadd.f32 0.0, %v4815
      %v4817 = vpop.f32.mrb[0].mxu0
      %4818 = vmatprep.mubr.f32.mxu0 0.0
      %4819 = vmatmul.mubr.f32.gmra.mrb[0].mxu0 %v4612
      %v4820 = vpop.f32.mrb[0].mxu0
      %v4821 = vadd.f32 0.0, %v4820
      %v4822 = vpop.f32.mrb[0].mxu0
      %4823 = vmatprep.mubr.f32.mxu0 0.0
      %4824 = vmatmul.mubr.f32.gmra.mrb[0].mxu0 %v4615
      %v4825 = vpop.f32.mrb[0].mxu0
      %v4826 = vadd.f32 0.0, %v4825
      %v4827 = vpop.f32.mrb[0].mxu0
      %4828 = vmatprep.mubr.f32.mxu0 0.0
      %4829 = vmatmul.mubr.f32.gmra.mrb[0].mxu0 %v4618
      %v4830 = vpop.f32.mrb[0].mxu0
      %v4831 = vadd.f32 0.0, %v4830
      %v4832 = vpop.f32.mrb[0].mxu0
      %4833 = vmatprep.mubr.f32.mxu0 0.0
      %4834 = vmatmul.mubr.f32.gmra.mrb[0].mxu0 %v4621
      %v4835 = vpop.f32.mrb[0].mxu0
      %v4836 = vadd.f32 0.0, %v4835
      %v4837 = vpop.f32.mrb[0].mxu0
      %4838 = vmatprep.mubr.f32.mxu0 0.0
      %4839 = vmatmul.mubr.f32.gmra.mrb[0].mxu0 %v4624
      %v4840 = vpop.f32.mrb[0].mxu0
      %v4841 = vadd.f32 0.0, %v4840
      %v4842 = vpop.f32.mrb[0].mxu0
      %4843 = vmatprep.mubr.f32.mxu0 0.0
      %4844 = vmatmul.mubr.f32.gmra.mrb[0].mxu0 %v4627
      %v4845 = vpop.f32.mrb[0].mxu0
      %v4846 = vadd.f32 0.0, %v4845
      %v4847 = vpop.f32.mrb[0].mxu0
      %4848 = vmatprep.mubr.f32.mxu0 0.0
      %4849 = vmatmul.mubr.f32.gmra.mrb[0].mxu0 %v4630
      %v4850 = vpop.f32.mrb[0].mxu0
      %v4851 = vadd.f32 0.0, %v4850
      %v4852 = vpop.f32.mrb[0].mxu0
      %4853 = vmatprep.mubr.f32.mxu0 0.0
      %4854 = vmatmul.mubr.f32.gmra.mrb[0].mxu0 %v4633
      %v4855 = vpop.f32.mrb[0].mxu0
      %v4856 = vadd.f32 0.0, %v4855
      %v4857 = vpop.f32.mrb[0].mxu0
      %4858 = vmatprep.mubr.f32.mxu0 0.0
      %4859 = vmatmul.mubr.f32.gmra.mrb[0].mxu0 %v4636
      %v4860 = vpop.f32.mrb[0].mxu0
      %v4861 = vadd.f32 0.0, %v4860
      %v4862 = vpop.f32.mrb[0].mxu0
      %4863 = vmatprep.mubr.f32.mxu0 0.0
      %4864 = vmatmul.mubr.f32.gmra.mrb[0].mxu0 %v4639
      %v4865 = vpop.f32.mrb[0].mxu0
      %v4866 = vadd.f32 0.0, %v4865
      %v4867 = vpop.f32.mrb[0].mxu0
      %4868 = vmatprep.mubr.f32.mxu0 0.0
      %4869 = vmatmul.mubr.f32.gmra.mrb[0].mxu0 %v4642
      %v4870 = vpop.f32.mrb[0].mxu0
      %v4871 = vadd.f32 0.0, %v4870
      %v4872 = vpop.f32.mrb[0].mxu0
      %4873 = vmatprep.mubr.f32.mxu0 0.0
      %4874 = vmatmul.mubr.f32.gmra.mrb[0].mxu0 %v4645
      %v4875 = vpop.f32.mrb[0].mxu0
      %v4876 = vadd.f32 0.0, %v4875
      %v4877 = vpop.f32.mrb[0].mxu0
      %4878 = vmatprep.mubr.f32.mxu0 0.0
      %4879 = vmatmul.mubr.f32.gmra.mrb[0].mxu0 %v4648
      %v4880 = vpop.f32.mrb[0].mxu0
      %v4881 = vadd.f32 0.0, %v4880
      %v4882 = vpop.f32.mrb[0].mxu0
      %4883 = vmatprep.mubr.f32.mxu0 0.0
      %4884 = vmatmul.mubr.f32.gmra.mrb[0].mxu0 %v4651
      %v4885 = vpop.f32.mrb[0].mxu0
      %v4886 = vadd.f32 0.0, %v4885
      %v4887 = vpop.f32.mrb[0].mxu0
      %4888 = vmatprep.mubr.f32.mxu0 0.0
      %4889 = vmatmul.mubr.f32.gmra.mrb[0].mxu0 %v4654
      %v4890 = vpop.f32.mrb[0].mxu0
      %v4891 = vadd.f32 0.0, %v4890
      %v4892 = vpop.f32.mrb[0].mxu0
      %4893 = vmatprep.mubr.f32.mxu0 0.0
      %4894 = vmatmul.mubr.f32.gmra.mrb[0].mxu0 %v4657
      %v4895 = vpop.f32.mrb[0].mxu0
      %v4896 = vadd.f32 0.0, %v4895
      %v4897 = vpop.f32.mrb[0].mxu0
      %4898 = vmatprep.mubr.f32.mxu0 0.0
      %4899 = vmatmul.mubr.f32.gmra.mrb[0].mxu0 %v4660
      %v4900 = vpop.f32.mrb[0].mxu0
      %v4901 = vadd.f32 0.0, %v4900
      %v4902 = vpop.f32.mrb[0].mxu0
      %4903 = vmatprep.mubr.f32.mxu0 0.0
      %4904 = vmatmul.mubr.f32.gmra.mrb[0].mxu0 %v4663
      %v4905 = vpop.f32.mrb[0].mxu0
      %v4906 = vadd.f32 0.0, %v4905
      %v4907 = vpop.f32.mrb[0].mxu0
      %4908 = vmatprep.mubr.f32.mxu0 0.0
      %4909 = vmatmul.mubr.f32.gmra.mrb[0].mxu0 %v4666
      %v4910 = vpop.f32.mrb[0].mxu0
      %v4911 = vadd.f32 0.0, %v4910
      %v4912 = vpop.f32.mrb[0].mxu0
      %4913 = vmatprep.mubr.f32.mxu0 0.0
      %4914 = vmatmul.mubr.f32.gmra.mrb[0].mxu0 %v4669
      %v4915 = vpop.f32.mrb[0].mxu0
      %v4916 = vadd.f32 0.0, %v4915
      %v4917 = vpop.f32.mrb[0].mxu0
      %4918 = vdwg.mxu0
      %v4919 = vadd.f32 %v4489, %v4741
      %v4920 = vadd.f32 %v4490, %v4746
      %v4921 = vadd.f32 %v4491, %v4751
      %v4922 = vadd.f32 %v4492, %v4756
      %v4923 = vadd.f32 %v4493, %v4761
      %v4924 = vadd.f32 %v4494, %v4766
      %v4925 = vadd.f32 %v4495, %v4771
      %v4926 = vadd.f32 %v4496, %v4776
      %v4927 = vadd.f32 %v4497, %v4781
      %v4928 = vadd.f32 %v4498, %v4786
      %v4929 = vadd.f32 %v4499, %v4791
      %v4930 = vadd.f32 %v4500, %v4796
      %v4931 = vadd.f32 %v4501, %v4801
      %v4932 = vadd.f32 %v4502, %v4806
      %v4933 = vadd.f32 %v4503, %v4811
      %v4934 = vadd.f32 %v4504, %v4816
      %v4935 = vadd.f32 %v4505, %v4821
      %v4936 = vadd.f32 %v4506, %v4826
      %v4937 = vadd.f32 %v4507, %v4831
      %v4938 = vadd.f32 %v4508, %v4836
      %v4939 = vadd.f32 %v4509, %v4841
      %v4940 = vadd.f32 %v4510, %v4846
      %v4941 = vadd.f32 %v4511, %v4851
      %v4942 = vadd.f32 %v4512, %v4856
      %v4943 = vadd.f32 %v4513, %v4861
      %v4944 = vadd.f32 %v4514, %v4866
      %v4945 = vadd.f32 %v4515, %v4871
      %v4946 = vadd.f32 %v4516, %v4876
      %v4947 = vadd.f32 %v4517, %v4881
      %v4948 = vadd.f32 %v4518, %v4886
      %v4949 = vadd.f32 %v4519, %v4891
      %v4950 = vadd.f32 %v4520, %v4896
      %v4951 = vadd.f32 %v4521, %v4901
      %v4952 = vadd.f32 %v4522, %v4906
      %v4953 = vadd.f32 %v4523, %v4911
      %v4954 = vadd.f32 %v4524, %v4916
      %v4955 = vld [vmem:[%s5] sm:$0x1]
      %v4957 = vlaneseq
      %v4958 = vshrl.u32 %v4957, 7
      %v4959 = vsub.s32 0, %v4958
      %v4960 = vrot.slane %v4955, %v4959
      %v4962 = vadd.f32 %v4919, %v4960
      %v4963 = vadd.f32 %v4920, %v4960
      %v4964 = vadd.f32 %v4921, %v4960
      %v4965 = vadd.f32 %v4922, %v4960
      %v4966 = vadd.f32 %v4923, %v4960
      %v4967 = vadd.f32 %v4924, %v4960
      %v4968 = vadd.f32 %v4925, %v4960
      %v4969 = vadd.f32 %v4926, %v4960
      %v4970 = vadd.f32 %v4927, %v4960
      %v4971 = vadd.f32 %v4928, %v4960
      %v4972 = vadd.f32 %v4929, %v4960
      %v4973 = vadd.f32 %v4930, %v4960
      %v4974 = vadd.f32 %v4931, %v4960
      %v4975 = vadd.f32 %v4932, %v4960
      %v4976 = vadd.f32 %v4933, %v4960
      %v4977 = vadd.f32 %v4934, %v4960
      %v4978 = vadd.f32 %v4935, %v4960
      %v4979 = vadd.f32 %v4936, %v4960
      %v4980 = vadd.f32 %v4937, %v4960
      %v4981 = vadd.f32 %v4938, %v4960
      %v4982 = vadd.f32 %v4939, %v4960
      %v4983 = vadd.f32 %v4940, %v4960
      %v4984 = vadd.f32 %v4941, %v4960
      %v4985 = vadd.f32 %v4942, %v4960
      %v4986 = vadd.f32 %v4943, %v4960
      %v4987 = vadd.f32 %v4944, %v4960
      %v4988 = vadd.f32 %v4945, %v4960
      %v4989 = vadd.f32 %v4946, %v4960
      %v4990 = vadd.f32 %v4947, %v4960
      %v4991 = vadd.f32 %v4948, %v4960
      %v4992 = vadd.f32 %v4949, %v4960
      %v4993 = vadd.f32 %v4950, %v4960
      %v4994 = vadd.f32 %v4951, %v4960
      %v4995 = vadd.f32 %v4952, %v4960
      %v4996 = vadd.f32 %v4953, %v4960
      %v4997 = vadd.f32 %v4954, %v4960
      %v4998 = vmax.f32 %v4962, 0.0
      %v4999 = vmax.f32 %v4963, 0.0
      %v5000 = vmax.f32 %v4964, 0.0
      %v5001 = vmax.f32 %v4965, 0.0
      %v5002 = vmax.f32 %v4966, 0.0
      %v5003 = vmax.f32 %v4967, 0.0
      %v5004 = vmax.f32 %v4968, 0.0
      %v5005 = vmax.f32 %v4969, 0.0
      %v5006 = vmax.f32 %v4970, 0.0
      %v5007 = vmax.f32 %v4971, 0.0
      %v5008 = vmax.f32 %v4972, 0.0
      %v5009 = vmax.f32 %v4973, 0.0
      %v5010 = vmax.f32 %v4974, 0.0
      %v5011 = vmax.f32 %v4975, 0.0
      %v5012 = vmax.f32 %v4976, 0.0
      %v5013 = vmax.f32 %v4977, 0.0
      %v5014 = vmax.f32 %v4978, 0.0
      %v5015 = vmax.f32 %v4979, 0.0
      %v5016 = vmax.f32 %v4980, 0.0
      %v5017 = vmax.f32 %v4981, 0.0
      %v5018 = vmax.f32 %v4982, 0.0
      %v5019 = vmax.f32 %v4983, 0.0
      %v5020 = vmax.f32 %v4984, 0.0
      %v5021 = vmax.f32 %v4985, 0.0
      %v5022 = vmax.f32 %v4986, 0.0
      %v5023 = vmax.f32 %v4987, 0.0
      %v5024 = vmax.f32 %v4988, 0.0
      %v5025 = vmax.f32 %v4989, 0.0
      %v5026 = vmax.f32 %v4990, 0.0
      %v5027 = vmax.f32 %v4991, 0.0
      %v5028 = vmax.f32 %v4992, 0.0
      %v5029 = vmax.f32 %v4993, 0.0
      %v5030 = vmax.f32 %v4994, 0.0
      %v5031 = vmax.f32 %v4995, 0.0
      %v5032 = vmax.f32 %v4996, 0.0
      %v5033 = vmax.f32 %v4997, 0.0
      %v5034 = vld [vmem:[%s6] sm:$0xff]
      %v5035 = vld [vmem:[%s6 + $0x8] sm:$0xff]
      %v5036 = vld [vmem:[%s7] sm:$0x1]
      %v5038 = vlaneseq
      %v5039 = vshrl.u32 %v5038, 7
      %v5040 = vsub.s32 0, %v5039
      %v5041 = vrot.slane %v5036, %v5040
      %v5044 = vsel %vm358, %v4998, 0
      %v5047 = vsel %vm358, %v4999, 0
      %v5050 = vsel %vm358, %v5000, 0
      %v5053 = vsel %vm358, %v5001, 0
      %v5056 = vsel %vm358, %v5002, 0
      %v5059 = vsel %vm358, %v5003, 0
      %v5062 = vsel %vm358, %v5004, 0
      %v5065 = vsel %vm358, %v5005, 0
      %v5068 = vsel %vm358, %v5006, 0
      %v5071 = vsel %vm358, %v5007, 0
      %v5074 = vsel %vm358, %v5008, 0
      %v5077 = vsel %vm358, %v5009, 0
      %v5080 = vsel %vm358, %v5010, 0
      %v5083 = vsel %vm358, %v5011, 0
      %v5086 = vsel %vm358, %v5012, 0
      %v5089 = vsel %vm358, %v5013, 0
      %v5092 = vsel %vm358, %v5014, 0
      %v5095 = vsel %vm358, %v5015, 0
      %v5098 = vsel %vm358, %v5016, 0
      %v5101 = vsel %vm358, %v5017, 0
      %v5104 = vsel %vm358, %v5018, 0
      %v5107 = vsel %vm358, %v5019, 0
      %v5110 = vsel %vm358, %v5020, 0
      %v5113 = vsel %vm358, %v5021, 0
      %v5116 = vsel %vm358, %v5022, 0
      %v5119 = vsel %vm358, %v5023, 0
      %v5122 = vsel %vm358, %v5024, 0
      %v5125 = vsel %vm358, %v5025, 0
      %v5128 = vsel %vm358, %v5026, 0
      %v5131 = vsel %vm358, %v5027, 0
      %v5134 = vsel %vm358, %v5028, 0
      %v5137 = vsel %vm358, %v5029, 0
      %v5140 = vsel %vm358, %v5030, 0
      %v5143 = vsel %vm358, %v5031, 0
      %v5146 = vsel %vm358, %v5032, 0
      %v5149 = vsel %vm358, %v5033, 0
      %5151 = vmatprep.subr.mxu0 0.0
      %5152 = vmatpush1.msra.mxu0 %v5034
      %5153 = vmatprep.subr.mxu0 0.0
      %5154 = vmatpush1.msra.mxu0 %v5035
      %5155 = vmatprep.subr.mxu0 0.0
      %5156 = vmatpush1.msra.mxu0 0.0
      %5157 = vmatprep.subr.mxu0 0.0
      %5158 = vmatpush1.msra.mxu0 0.0
      %5159 = vmatprep.subr.mxu0 0.0
      %5160 = vmatpush1.msra.mxu0 0.0
      %5161 = vmatprep.subr.mxu0 0.0
      %5162 = vmatpush1.msra.mxu0 0.0
      %5163 = vmatprep.subr.mxu0 0.0
      %5164 = vmatpush1.msra.mxu0 0.0
      %5165 = vmatprep.subr.mxu0 0.0
      %5166 = vmatpush1.msra.mxu0 0.0
      %5167 = vmatprep.subr.mxu0 0.0
      %5168 = vmatpush1.msra.mxu0 0.0
      %5169 = vmatprep.subr.mxu0 0.0
      %5170 = vmatpush1.msra.mxu0 0.0
      %5171 = vmatprep.subr.mxu0 0.0
      %5172 = vmatpush1.msra.mxu0 0.0
      %5173 = vmatprep.subr.mxu0 0.0
      %5174 = vmatpush1.msra.mxu0 0.0
      %5175 = vmatprep.subr.mxu0 0.0
      %5176 = vmatpush1.msra.mxu0 0.0
      %5177 = vmatprep.subr.mxu0 0.0
      %5178 = vmatpush1.msra.mxu0 0.0
      %5179 = vmatprep.subr.mxu0 0.0
      %5180 = vmatpush1.msra.mxu0 0.0
      %5181 = vmatprep.subr.mxu0 0.0
      %5182 = vmatpush1.msra.mxu0 0.0
      %5183 = vmatprep.subr.mxu0 0.0
      %5184 = vmatpush1.msra.mxu0 0.0
      %5185 = vmatprep.subr.mxu0 0.0
      %5186 = vmatpush1.msra.mxu0 0.0
      %5187 = vmatprep.subr.mxu0 0.0
      %5188 = vmatpush1.msra.mxu0 0.0
      %5189 = vmatprep.subr.mxu0 0.0
      %5190 = vmatpush1.msra.mxu0 0.0
      %5191 = vmatprep.subr.mxu0 0.0
      %5192 = vmatpush1.msra.mxu0 0.0
      %5193 = vmatprep.subr.mxu0 0.0
      %5194 = vmatpush1.msra.mxu0 0.0
      %5195 = vmatprep.subr.mxu0 0.0
      %5196 = vmatpush1.msra.mxu0 0.0
      %5197 = vmatprep.subr.mxu0 0.0
      %5198 = vmatpush1.msra.mxu0 0.0
      %5199 = vmatprep.subr.mxu0 0.0
      %5200 = vmatpush1.msra.mxu0 0.0
      %5201 = vmatprep.subr.mxu0 0.0
      %5202 = vmatpush1.msra.mxu0 0.0
      %5203 = vmatprep.subr.mxu0 0.0
      %5204 = vmatpush1.msra.mxu0 0.0
      %5205 = vmatprep.subr.mxu0 0.0
      %5206 = vmatpush1.msra.mxu0 0.0
      %5207 = vmatprep.subr.mxu0 0.0
      %5208 = vmatpush1.msra.mxu0 0.0
      %5209 = vmatprep.subr.mxu0 0.0
      %5210 = vmatpush1.msra.mxu0 0.0
      %5211 = vmatprep.subr.mxu0 0.0
      %5212 = vmatpush1.msra.mxu0 0.0
      %5213 = vmatprep.subr.mxu0 0.0
      %5214 = vmatpush1.msra.mxu0 0.0
      %5215 = vmatprep.mubr.f32.mxu0 0.0
      %5216 = vmatmul.mubr.f32.gmra.mrb[0].mxu0 %v5044
      %v5217 = vpop.f32.mrb[0].mxu0
      %v5218 = vadd.f32 %v5041, %v5217
      %v5219 = vpop.f32.mrb[0].mxu0
      %5220 = vmatprep.mubr.f32.mxu0 0.0
      %5221 = vmatmul.mubr.f32.gmra.mrb[0].mxu0 %v5047
      %v5222 = vpop.f32.mrb[0].mxu0
      %v5223 = vadd.f32 %v5041, %v5222
      %v5224 = vpop.f32.mrb[0].mxu0
      %5225 = vmatprep.mubr.f32.mxu0 0.0
      %5226 = vmatmul.mubr.f32.gmra.mrb[0].mxu0 %v5050
      %v5227 = vpop.f32.mrb[0].mxu0
      %v5228 = vadd.f32 %v5041, %v5227
      %v5229 = vpop.f32.mrb[0].mxu0
      %5230 = vmatprep.mubr.f32.mxu0 0.0
      %5231 = vmatmul.mubr.f32.gmra.mrb[0].mxu0 %v5053
      %v5232 = vpop.f32.mrb[0].mxu0
      %v5233 = vadd.f32 %v5041, %v5232
      %v5234 = vpop.f32.mrb[0].mxu0
      %5235 = vmatprep.mubr.f32.mxu0 0.0
      %5236 = vmatmul.mubr.f32.gmra.mrb[0].mxu0 %v5056
      %v5237 = vpop.f32.mrb[0].mxu0
      %v5238 = vadd.f32 %v5041, %v5237
      %v5239 = vpop.f32.mrb[0].mxu0
      %5240 = vmatprep.mubr.f32.mxu0 0.0
      %5241 = vmatmul.mubr.f32.gmra.mrb[0].mxu0 %v5059
      %v5242 = vpop.f32.mrb[0].mxu0
      %v5243 = vadd.f32 %v5041, %v5242
      %v5244 = vpop.f32.mrb[0].mxu0
      %5245 = vmatprep.mubr.f32.mxu0 0.0
      %5246 = vmatmul.mubr.f32.gmra.mrb[0].mxu0 %v5062
      %v5247 = vpop.f32.mrb[0].mxu0
      %v5248 = vadd.f32 %v5041, %v5247
      %v5249 = vpop.f32.mrb[0].mxu0
      %5250 = vmatprep.mubr.f32.mxu0 0.0
      %5251 = vmatmul.mubr.f32.gmra.mrb[0].mxu0 %v5065
      %v5252 = vpop.f32.mrb[0].mxu0
      %v5253 = vadd.f32 %v5041, %v5252
      %v5254 = vpop.f32.mrb[0].mxu0
      %5255 = vmatprep.mubr.f32.mxu0 0.0
      %5256 = vmatmul.mubr.f32.gmra.mrb[0].mxu0 %v5068
      %v5257 = vpop.f32.mrb[0].mxu0
      %v5258 = vadd.f32 %v5041, %v5257
      %v5259 = vpop.f32.mrb[0].mxu0
      %5260 = vmatprep.mubr.f32.mxu0 0.0
      %5261 = vmatmul.mubr.f32.gmra.mrb[0].mxu0 %v5071
      %v5262 = vpop.f32.mrb[0].mxu0
      %v5263 = vadd.f32 %v5041, %v5262
      %v5264 = vpop.f32.mrb[0].mxu0
      %5265 = vmatprep.mubr.f32.mxu0 0.0
      %5266 = vmatmul.mubr.f32.gmra.mrb[0].mxu0 %v5074
      %v5267 = vpop.f32.mrb[0].mxu0
      %v5268 = vadd.f32 %v5041, %v5267
      %v5269 = vpop.f32.mrb[0].mxu0
      %5270 = vmatprep.mubr.f32.mxu0 0.0
      %5271 = vmatmul.mubr.f32.gmra.mrb[0].mxu0 %v5077
      %v5272 = vpop.f32.mrb[0].mxu0
      %v5273 = vadd.f32 %v5041, %v5272
      %v5274 = vpop.f32.mrb[0].mxu0
      %5275 = vmatprep.mubr.f32.mxu0 0.0
      %5276 = vmatmul.mubr.f32.gmra.mrb[0].mxu0 %v5080
      %v5277 = vpop.f32.mrb[0].mxu0
      %v5278 = vadd.f32 %v5041, %v5277
      %v5279 = vpop.f32.mrb[0].mxu0
      %5280 = vmatprep.mubr.f32.mxu0 0.0
      %5281 = vmatmul.mubr.f32.gmra.mrb[0].mxu0 %v5083
      %v5282 = vpop.f32.mrb[0].mxu0
      %v5283 = vadd.f32 %v5041, %v5282
      %v5284 = vpop.f32.mrb[0].mxu0
      %5285 = vmatprep.mubr.f32.mxu0 0.0
      %5286 = vmatmul.mubr.f32.gmra.mrb[0].mxu0 %v5086
      %v5287 = vpop.f32.mrb[0].mxu0
      %v5288 = vadd.f32 %v5041, %v5287
      %v5289 = vpop.f32.mrb[0].mxu0
      %5290 = vmatprep.mubr.f32.mxu0 0.0
      %5291 = vmatmul.mubr.f32.gmra.mrb[0].mxu0 %v5089
      %v5292 = vpop.f32.mrb[0].mxu0
      %v5293 = vadd.f32 %v5041, %v5292
      %v5294 = vpop.f32.mrb[0].mxu0
      %5295 = vmatprep.mubr.f32.mxu0 0.0
      %5296 = vmatmul.mubr.f32.gmra.mrb[0].mxu0 %v5092
      %v5297 = vpop.f32.mrb[0].mxu0
      %v5298 = vadd.f32 %v5041, %v5297
      %v5299 = vpop.f32.mrb[0].mxu0
      %5300 = vmatprep.mubr.f32.mxu0 0.0
      %5301 = vmatmul.mubr.f32.gmra.mrb[0].mxu0 %v5095
      %v5302 = vpop.f32.mrb[0].mxu0
      %v5303 = vadd.f32 %v5041, %v5302
      %v5304 = vpop.f32.mrb[0].mxu0
      %5305 = vmatprep.mubr.f32.mxu0 0.0
      %5306 = vmatmul.mubr.f32.gmra.mrb[0].mxu0 %v5098
      %v5307 = vpop.f32.mrb[0].mxu0
      %v5308 = vadd.f32 %v5041, %v5307
      %v5309 = vpop.f32.mrb[0].mxu0
      %5310 = vmatprep.mubr.f32.mxu0 0.0
      %5311 = vmatmul.mubr.f32.gmra.mrb[0].mxu0 %v5101
      %v5312 = vpop.f32.mrb[0].mxu0
      %v5313 = vadd.f32 %v5041, %v5312
      %v5314 = vpop.f32.mrb[0].mxu0
      %5315 = vmatprep.mubr.f32.mxu0 0.0
      %5316 = vmatmul.mubr.f32.gmra.mrb[0].mxu0 %v5104
      %v5317 = vpop.f32.mrb[0].mxu0
      %v5318 = vadd.f32 %v5041, %v5317
      %v5319 = vpop.f32.mrb[0].mxu0
      %5320 = vmatprep.mubr.f32.mxu0 0.0
      %5321 = vmatmul.mubr.f32.gmra.mrb[0].mxu0 %v5107
      %v5322 = vpop.f32.mrb[0].mxu0
      %v5323 = vadd.f32 %v5041, %v5322
      %v5324 = vpop.f32.mrb[0].mxu0
      %5325 = vmatprep.mubr.f32.mxu0 0.0
      %5326 = vmatmul.mubr.f32.gmra.mrb[0].mxu0 %v5110
      %v5327 = vpop.f32.mrb[0].mxu0
      %v5328 = vadd.f32 %v5041, %v5327
      %v5329 = vpop.f32.mrb[0].mxu0
      %5330 = vmatprep.mubr.f32.mxu0 0.0
      %5331 = vmatmul.mubr.f32.gmra.mrb[0].mxu0 %v5113
      %v5332 = vpop.f32.mrb[0].mxu0
      %v5333 = vadd.f32 %v5041, %v5332
      %v5334 = vpop.f32.mrb[0].mxu0
      %5335 = vmatprep.mubr.f32.mxu0 0.0
      %5336 = vmatmul.mubr.f32.gmra.mrb[0].mxu0 %v5116
      %v5337 = vpop.f32.mrb[0].mxu0
      %v5338 = vadd.f32 %v5041, %v5337
      %v5339 = vpop.f32.mrb[0].mxu0
      %5340 = vmatprep.mubr.f32.mxu0 0.0
      %5341 = vmatmul.mubr.f32.gmra.mrb[0].mxu0 %v5119
      %v5342 = vpop.f32.mrb[0].mxu0
      %v5343 = vadd.f32 %v5041, %v5342
      %v5344 = vpop.f32.mrb[0].mxu0
      %5345 = vmatprep.mubr.f32.mxu0 0.0
      %5346 = vmatmul.mubr.f32.gmra.mrb[0].mxu0 %v5122
      %v5347 = vpop.f32.mrb[0].mxu0
      %v5348 = vadd.f32 %v5041, %v5347
      %v5349 = vpop.f32.mrb[0].mxu0
      %5350 = vmatprep.mubr.f32.mxu0 0.0
      %5351 = vmatmul.mubr.f32.gmra.mrb[0].mxu0 %v5125
      %v5352 = vpop.f32.mrb[0].mxu0
      %v5353 = vadd.f32 %v5041, %v5352
      %v5354 = vpop.f32.mrb[0].mxu0
      %5355 = vmatprep.mubr.f32.mxu0 0.0
      %5356 = vmatmul.mubr.f32.gmra.mrb[0].mxu0 %v5128
      %v5357 = vpop.f32.mrb[0].mxu0
      %v5358 = vadd.f32 %v5041, %v5357
      %v5359 = vpop.f32.mrb[0].mxu0
      %5360 = vmatprep.mubr.f32.mxu0 0.0
      %5361 = vmatmul.mubr.f32.gmra.mrb[0].mxu0 %v5131
      %v5362 = vpop.f32.mrb[0].mxu0
      %v5363 = vadd.f32 %v5041, %v5362
      %v5364 = vpop.f32.mrb[0].mxu0
      %5365 = vmatprep.mubr.f32.mxu0 0.0
      %5366 = vmatmul.mubr.f32.gmra.mrb[0].mxu0 %v5134
      %v5367 = vpop.f32.mrb[0].mxu0
      %v5368 = vadd.f32 %v5041, %v5367
      %v5369 = vpop.f32.mrb[0].mxu0
      %5370 = vmatprep.mubr.f32.mxu0 0.0
      %5371 = vmatmul.mubr.f32.gmra.mrb[0].mxu0 %v5137
      %v5372 = vpop.f32.mrb[0].mxu0
      %v5373 = vadd.f32 %v5041, %v5372
      %v5374 = vpop.f32.mrb[0].mxu0
      %5375 = vmatprep.mubr.f32.mxu0 0.0
      %5376 = vmatmul.mubr.f32.gmra.mrb[0].mxu0 %v5140
      %v5377 = vpop.f32.mrb[0].mxu0
      %v5378 = vadd.f32 %v5041, %v5377
      %v5379 = vpop.f32.mrb[0].mxu0
      %5380 = vmatprep.mubr.f32.mxu0 0.0
      %5381 = vmatmul.mubr.f32.gmra.mrb[0].mxu0 %v5143
      %v5382 = vpop.f32.mrb[0].mxu0
      %v5383 = vadd.f32 %v5041, %v5382
      %v5384 = vpop.f32.mrb[0].mxu0
      %5385 = vmatprep.mubr.f32.mxu0 0.0
      %5386 = vmatmul.mubr.f32.gmra.mrb[0].mxu0 %v5146
      %v5387 = vpop.f32.mrb[0].mxu0
      %v5388 = vadd.f32 %v5041, %v5387
      %v5389 = vpop.f32.mrb[0].mxu0
      %5390 = vmatprep.mubr.f32.mxu0 0.0
      %5391 = vmatmul.mubr.f32.gmra.mrb[0].mxu0 %v5149
      %v5392 = vpop.f32.mrb[0].mxu0
      %v5393 = vadd.f32 %v5041, %v5392
      %v5394 = vpop.f32.mrb[0].mxu0
      %5395 = vdwg.mxu0
      %v5396 = vmax.f32 %v5218, 0.0
      %v5397 = vmax.f32 %v5223, 0.0
      %v5398 = vmax.f32 %v5228, 0.0
      %v5399 = vmax.f32 %v5233, 0.0
      %v5400 = vmax.f32 %v5238, 0.0
      %v5401 = vmax.f32 %v5243, 0.0
      %v5402 = vmax.f32 %v5248, 0.0
      %v5403 = vmax.f32 %v5253, 0.0
      %v5404 = vmax.f32 %v5258, 0.0
      %v5405 = vmax.f32 %v5263, 0.0
      %v5406 = vmax.f32 %v5268, 0.0
      %v5407 = vmax.f32 %v5273, 0.0
      %v5408 = vmax.f32 %v5278, 0.0
      %v5409 = vmax.f32 %v5283, 0.0
      %v5410 = vmax.f32 %v5288, 0.0
      %v5411 = vmax.f32 %v5293, 0.0
      %v5412 = vmax.f32 %v5298, 0.0
      %v5413 = vmax.f32 %v5303, 0.0
      %v5414 = vmax.f32 %v5308, 0.0
      %v5415 = vmax.f32 %v5313, 0.0
      %v5416 = vmax.f32 %v5318, 0.0
      %v5417 = vmax.f32 %v5323, 0.0
      %v5418 = vmax.f32 %v5328, 0.0
      %v5419 = vmax.f32 %v5333, 0.0
      %v5420 = vmax.f32 %v5338, 0.0
      %v5421 = vmax.f32 %v5343, 0.0
      %v5422 = vmax.f32 %v5348, 0.0
      %v5423 = vmax.f32 %v5353, 0.0
      %v5424 = vmax.f32 %v5358, 0.0
      %v5425 = vmax.f32 %v5363, 0.0
      %v5426 = vmax.f32 %v5368, 0.0
      %v5427 = vmax.f32 %v5373, 0.0
      %v5428 = vmax.f32 %v5378, 0.0
      %v5429 = vmax.f32 %v5383, 0.0
      %v5430 = vmax.f32 %v5388, 0.0
      %v5431 = vmax.f32 %v5393, 0.0
      %vm5432 = vcmask 261120
      %5433 = vst.msk [vmem:[%s305] sm:$0xff] %vm5432, %v5396
      %5434 = vst.msk [vmem:[%s305 + $0x8] sm:$0xff] %vm5432, %v5397
      %5435 = vst.msk [vmem:[%s305 + $0x10] sm:$0xff] %vm5432, %v5398
      %5436 = vst.msk [vmem:[%s305 + $0x18] sm:$0xff] %vm5432, %v5399
      %5437 = vst.msk [vmem:[%s305 + $0x20] sm:$0xff] %vm5432, %v5400
      %5438 = vst.msk [vmem:[%s305 + $0x28] sm:$0xff] %vm5432, %v5401
      %5439 = vst.msk [vmem:[%s305 + $0x30] sm:$0xff] %vm5432, %v5402
      %5440 = vst.msk [vmem:[%s305 + $0x38] sm:$0xff] %vm5432, %v5403
      %5441 = vst.msk [vmem:[%s305 + $0x40] sm:$0xff] %vm5432, %v5404
      %5442 = vst.msk [vmem:[%s305 + $0x48] sm:$0xff] %vm5432, %v5405
      %5443 = vst.msk [vmem:[%s305 + $0x50] sm:$0xff] %vm5432, %v5406
      %5444 = vst.msk [vmem:[%s305 + $0x58] sm:$0xff] %vm5432, %v5407
      %5445 = vst.msk [vmem:[%s305 + $0x60] sm:$0xff] %vm5432, %v5408
      %5446 = vst.msk [vmem:[%s305 + $0x68] sm:$0xff] %vm5432, %v5409
      %5447 = vst.msk [vmem:[%s305 + $0x70] sm:$0xff] %vm5432, %v5410
      %5448 = vst.msk [vmem:[%s305 + $0x78] sm:$0xff] %vm5432, %v5411
      %5449 = vst.msk [vmem:[%s305 + $0x80] sm:$0xff] %vm5432, %v5412
      %5450 = vst.msk [vmem:[%s305 + $0x88] sm:$0xff] %vm5432, %v5413
      %5451 = vst.msk [vmem:[%s305 + $0x90] sm:$0xff] %vm5432, %v5414
      %5452 = vst.msk [vmem:[%s305 + $0x98] sm:$0xff] %vm5432, %v5415
      %5453 = vst.msk [vmem:[%s305 + $0xa0] sm:$0xff] %vm5432, %v5416
      %5454 = vst.msk [vmem:[%s305 + $0xa8] sm:$0xff] %vm5432, %v5417
      %5455 = vst.msk [vmem:[%s305 + $0xb0] sm:$0xff] %vm5432, %v5418
      %5456 = vst.msk [vmem:[%s305 + $0xb8] sm:$0xff] %vm5432, %v5419
      %5457 = vst.msk [vmem:[%s305 + $0xc0] sm:$0xff] %vm5432, %v5420
      %5458 = vst.msk [vmem:[%s305 + $0xc8] sm:$0xff] %vm5432, %v5421
      %5459 = vst.msk [vmem:[%s305 + $0xd0] sm:$0xff] %vm5432, %v5422
      %5460 = vst.msk [vmem:[%s305 + $0xd8] sm:$0xff] %vm5432, %v5423
      %5461 = vst.msk [vmem:[%s305 + $0xe0] sm:$0xff] %vm5432, %v5424
      %5462 = vst.msk [vmem:[%s305 + $0xe8] sm:$0xff] %vm5432, %v5425
      %5463 = vst.msk [vmem:[%s305 + $0xf0] sm:$0xff] %vm5432, %v5426
      %5464 = vst.msk [vmem:[%s305 + $0xf8] sm:$0xff] %vm5432, %v5427
      %5465 = vst.msk [vmem:[%s305 + $0x100] sm:$0xff] %vm5432, %v5428
      %5466 = vst.msk [vmem:[%s305 + $0x108] sm:$0xff] %vm5432, %v5429
      %5467 = vst.msk [vmem:[%s305 + $0x110] sm:$0xff] %vm5432, %v5430
      %5468 = vst.msk [vmem:[%s305 + $0x118] sm:$0xff] %vm5432, %v5431
      %p5469 = scmp.lt.s32.totalorder %s19, 1
      %s5470 = scalar_select %p5469, %s19, 1
      %s5471 = smul.addr %s5470, 36
      %s5472 = smul.addr %s5471, 8
      %s5473 = scalar_lea.vmem %s8, %s5472
      // Predicated region
      $region53: #{decoder_block_forward.1} parent=51 // pred_check
        %p5474 = pneg %p210
      $region54: #{decoder_block_forward.1} parent=51 // pred_check_branch
        %5476 = sbr.rel (%p5474) target = $region56
      $region55: #{decoder_block_forward.1} parent=51 // pred_region
        _
      $region56: #{decoder_block_forward.1} parent=51 // pred_fallthru
        _
    $region52: #{decoder_block_forward.1} parent=5 // pred_fallthru
      _
    %p5477 = scmp.le.s32.totalorder 2, %s14
    // Predicated region
    $region57: #{decoder_block_forward.1} parent=5 // pred_check
      %p5478 = pneg %p5477
    $region58: #{decoder_block_forward.1} parent=5 // pred_check_branch
      %5480 = sbr.rel (%p5478) target = $region60
    $region59: #{decoder_block_forward.1} parent=5 // pred_region
      %s5481 = ssub.s32 %s14, 2
      // Predicated region
      $region61: #{decoder_block_forward.1} parent=59 // pred_check
        %p5482 = pneg %p216
      $region62: #{decoder_block_forward.1} parent=59 // pred_check_branch
        %5484 = sbr.rel (%p5482) target = $region64
      $region63: #{decoder_block_forward.1} parent=59 // pred_region
        %p5485 = scmp.lt.s32.totalorder %s20, 1
        %s5486 = scalar_select %p5485, %s20, 1
        %s5487 = smul.addr %s5486, 36
        %s5488 = smul.addr %s5487, 8
        %s5489 = scalar_lea.vmem %s8, %s5488
      $region64: #{decoder_block_forward.1} parent=59 // pred_fallthru
        _
    $region60: #{decoder_block_forward.1} parent=5 // pred_fallthru
      _
  $region6: #{decoder_block_forward.1} parent=0 // loop_footer
    %s18 = sadd.s32 1, %s14
  $region7: #{decoder_block_forward.1} parent=0 // loop_footer_branch
    %13 = sbr.rel target = $region3
  $region8: #{decoder_block_forward.1} parent=0 // loop_exit
    _

</llo_original>
